<compile_context>
chip_gen: v5e
topology: v5e:2x2
jax: 0.10.0
libtpu: 0.0.40
codegen_flags: <defaults>
</compile_context>

<pallas_src>
import jax
import jax.numpy as jnp
from jax.experimental import pallas as pl
from jax.experimental.pallas import tpu as pltpu


_LEFT = 8  # left column pad of xp: >= 2 halo cols, multiple of 8 (aligned residual)


def _round_up(v, m):
    return (v + m - 1) // m * m


def basic_block_kernel(xp_ref, w1_ref, b1_ref, w2_ref, b2_ref, o_ref):
    """One grid step = one batch element.

    xp_ref : (1, H+4, Wp, Cp)  f32  zero-padded NHWC input (2-row halo top/bottom,
                                    _LEFT-col halo left, alignment pad right)
    w1_ref : (9, Cp, Cp)       bf16 conv1 weights (BN1 scale folded), tap k = dx*3+dy
    b1_ref : (1, Cp)           f32  folded BN1 bias
    w2_ref : (9, Cp, Cp)       bf16 conv2 weights (BN2 scale folded)
    b2_ref : (1, Cp)           f32  folded BN2 bias
    o_ref  : (1, H, W, Cp)     f32  output
    """
    H = o_ref.shape[1]
    W = o_ref.shape[2]
    Cp = o_ref.shape[3]
    A1 = H + 2                      # extended row count of conv1's output
    Wv = _round_up(W + 2, 8)        # conv1 compute width (multiple of 8)

    x_f32 = xp_ref[0]                           # (H+4, Wp, Cp) f32
    x_bf = x_f32.astype(jnp.bfloat16)           # bf16 MXU operand, cast once

    def conv9(src_bf, w_ref, out_h, out_w, row0, col0):
        """3x3 conv as 9 accumulated bf16 MXU dots with f32 accumulation."""
        acc = None
        for dx in range(3):
            for dy in range(3):
                tap = src_bf[row0 + dy:row0 + dy + out_h,
                             col0 + dx:col0 + dx + out_w, :]
                d = jnp.dot(tap.reshape(out_h * out_w, Cp),
                            w_ref[dx * 3 + dy],
                            preferred_element_type=jnp.float32)
                acc = d if acc is None else acc + d
        return acc                                   # (out_h*out_w, Cp) f32

    # ---- conv1 (+ folded BN1 scale) over the extended (A1 x Wv) domain ----
    acc1 = conv9(x_bf, w1_ref, A1, Wv, 0, _LEFT - 2)

    # ---- bn1 bias + relu; ring mask zeroes the 1-pixel halo (= conv2 zero pad) ----
    mid = jnp.maximum(acc1 + b1_ref[0, :], 0.0).reshape(A1, Wv, Cp)
    rows = jax.lax.broadcasted_iota(jnp.int32, (A1, Wv, Cp), 0)
    cols = jax.lax.broadcasted_iota(jnp.int32, (A1, Wv, Cp), 1)
    valid = (rows >= 1) & (rows <= H) & (cols >= 1) & (cols <= W)
    mid_bf = jnp.where(valid, mid, 0.0).astype(jnp.bfloat16)

    # ---- conv2 (+ folded BN2 scale) over the (H x W) output domain ----
    acc2 = conv9(mid_bf, w2_ref, H, W, 0, 0)

    # ---- bn2 bias + residual add + relu (residual stays f32, aligned load) ----
    resid = x_f32[2:2 + H, _LEFT:_LEFT + W, :].reshape(H * W, Cp)
    out = jnp.maximum(acc2 + b2_ref[0, :] + resid, 0.0)
    o_ref[...] = out.reshape(1, H, W, Cp)


@jax.jit
def basic_block_forward(x_nchw, w1, g1, be1, rm1, rv1, w2, g2, be2, rm2, rv2):
    """x_nchw: (N, C, H, W) float32. conv weights: (Cout, Cin, 3, 3)."""
    eps = 1e-5
    N, C, H, W = x_nchw.shape
    Cp = _round_up(max(C, 128), 128)   # lane-dense channel padding
    Wv = _round_up(W + 2, 8)           # conv1 compute width
    Wp = _LEFT + Wv                    # padded input width (multiple of 8)

    # NCHW -> NHWC; 2-row halo top/bottom, _LEFT-col halo left, pad right + channels.
    x = jnp.transpose(x_nchw, (0, 2, 3, 1)).astype(jnp.float32)
    xp = jnp.pad(x, ((0, 0), (2, 2), (_LEFT, Wp - W - _LEFT), (0, Cp - C)))

    # Fold inference-mode BN into per-output-channel scale/bias.
    def fold_bn(g, be, rm, rv):
        s = g / jnp.sqrt(rv + eps)
        b = be - rm * s
        return s, jnp.pad(b, (0, Cp - C)).reshape(1, Cp).astype(jnp.float32)

    # (Cout, Cin, kh, kw) -> (kw, kh, Cin, Cout); fold BN scale into Cout; bf16.
    def prep_w(w, s):
        wt = jnp.transpose(w, (3, 2, 1, 0)).astype(jnp.float32) * s
        wt = jnp.pad(wt, ((0, 0), (0, 0), (0, Cp - C), (0, Cp - C)))
        return wt.reshape(9, Cp, Cp).astype(jnp.bfloat16)   # tap k = dx*3 + dy

    s1, b1 = fold_bn(g1, be1, rm1, rv1)
    s2, b2 = fold_bn(g2, be2, rm2, rv2)
    w1r = prep_w(w1, s1)
    w2r = prep_w(w2, s2)

    out_nhwc = pl.pallas_call(
        basic_block_kernel,
        out_shape=jax.ShapeDtypeStruct((N, H, W, Cp), jnp.float32),
        grid_spec=pltpu.PrefetchScalarGridSpec(
            num_scalar_prefetch=0,
            grid=(N,),
            in_specs=[
                pl.BlockSpec((1, H + 4, Wp, Cp), lambda n: (n, 0, 0, 0)),
                pl.BlockSpec((9, Cp, Cp), lambda n: (0, 0, 0)),
                pl.BlockSpec((1, Cp), lambda n: (0, 0)),
                pl.BlockSpec((9, Cp, Cp), lambda n: (0, 0, 0)),
                pl.BlockSpec((1, Cp), lambda n: (0, 0)),
            ],
            out_specs=pl.BlockSpec((1, H, W, Cp), lambda n: (n, 0, 0, 0)),
        ),
        compiler_params=pltpu.CompilerParams(
            dimension_semantics=("parallel",),
            vmem_limit_bytes=32 * 1024 * 1024,
        ),
    )(xp, w1r, b1, w2r, b2)

    # Strip channel padding, NHWC -> NCHW to match PyTorch output convention.
    return jnp.transpose(out_nhwc[..., :C], (0, 3, 1, 2))


def _reference_forward(x_nchw, w1, g1, be1, rm1, rv1, w2, g2, be2, rm2, rv2):
    """Plain-JAX f32 reference for validation."""
    eps = 1e-5
    x = jnp.transpose(x_nchw, (0, 2, 3, 1))

    def conv(inp, w):
        w_hwio = jnp.transpose(w, (2, 3, 1, 0))
        return jax.lax.conv_general_dilated(
            inp, w_hwio, window_strides=(1, 1), padding="SAME",
            dimension_numbers=("NHWC", "HWIO", "NHWC"))

    def bn(inp, g, b, m, v):
        return (inp - m) / jnp.sqrt(v + eps) * g + b

    o = jax.nn.relu(bn(conv(x, w1), g1, be1, rm1, rv1))
    o = bn(conv(o, w2), g2, be2, rm2, rv2)
    o = jax.nn.relu(o + x)
    return jnp.transpose(o, (0, 3, 1, 2))


if __name__ == "__main__":
    key = jax.random.PRNGKey(0)
    N, C, H, W = 2, 4, 16, 16  # inplanes == planes, stride=1, downsample=None

    ks = jax.random.split(key, 11)
    x = jax.random.normal(ks[0], (N, C, H, W), jnp.float32)

    # conv weights (Cout, Cin, 3, 3), deterministic init.
    w1 = jax.random.normal(ks[1], (C, C, 3, 3), jnp.float32) * 0.1
    w2 = jax.random.normal(ks[2], (C, C, 3, 3), jnp.float32) * 0.1

    # BatchNorm params / running stats, deterministic init.
    g1 = 1.0 + 0.1 * jax.random.normal(ks[3], (C,), jnp.float32)
    be1 = 0.1 * jax.random.normal(ks[4], (C,), jnp.float32)
    rm1 = 0.1 * jax.random.normal(ks[5], (C,), jnp.float32)
    rv1 = 1.0 + 0.1 * jax.random.uniform(ks[6], (C,), jnp.float32)
    g2 = 1.0 + 0.1 * jax.random.normal(ks[7], (C,), jnp.float32)
    be2 = 0.1 * jax.random.normal(ks[8], (C,), jnp.float32)
    rm2 = 0.1 * jax.random.normal(ks[9], (C,), jnp.float32)
    rv2 = 1.0 + 0.1 * jax.random.uniform(ks[10], (C,), jnp.float32)

    args = (x, w1, g1, be1, rm1, rv1, w2, g2, be2, rm2, rv2)

    out = basic_block_forward(*args)
    out = jax.block_until_ready(out)

    ref = jax.block_until_ready(_reference_forward(*args))
    assert out.shape == (N, C, H, W)
    max_err = float(jnp.max(jnp.abs(out - ref)))
    # bf16 MXU operands (f32 accumulation) -> loosened tolerance vs. f32 reference.
    assert jnp.allclose(out, ref, atol=5e-2, rtol=5e-2), (
        f"mismatch vs reference (max abs err {max_err})")

    print("KERNEL_OK")
</pallas_src>

<mosaic_0001>
module attributes {stable_mosaic.version = 11 : i64} {
  func.func @basic_block_kernel(%arg0: i32, %arg1: memref<1x20x32x128xf32, #tpu.memory_space<vmem>>, %arg2: memref<9x128x128xbf16, #tpu.memory_space<vmem>>, %arg3: memref<1x128xf32, #tpu.memory_space<vmem>>, %arg4: memref<9x128x128xbf16, #tpu.memory_space<vmem>>, %arg5: memref<1x128xf32, #tpu.memory_space<vmem>>, %arg6: memref<1x16x16x128xf32, #tpu.memory_space<vmem>>) attributes {dimension_semantics = [#tpu.dimension_semantics<parallel>], iteration_bounds = array<i64: 2>, scalar_prefetch = 0 : i64, scratch_operands = 0 : i64, tpu.core_type = #tpu.core_type<tc>, window_params = [{transform_indices = @transform_0, window_bounds = array<i64: 1, 20, 32, 128>}, {pipeline_mode = #tpu.pipeline_mode<synchronous>, transform_indices = @transform_1, window_bounds = array<i64: 9, 128, 128>}, {pipeline_mode = #tpu.pipeline_mode<synchronous>, transform_indices = @transform_2, window_bounds = array<i64: 1, 128>}, {pipeline_mode = #tpu.pipeline_mode<synchronous>, transform_indices = @transform_3, window_bounds = array<i64: 9, 128, 128>}, {pipeline_mode = #tpu.pipeline_mode<synchronous>, transform_indices = @transform_4, window_bounds = array<i64: 1, 128>}, {transform_indices = @transform_5, window_bounds = array<i64: 1, 16, 16, 128>}]} {
    %c0 = arith.constant 0 : index
    %c0_0 = arith.constant 0 : index
    %c0_1 = arith.constant 0 : index
    %c0_2 = arith.constant 0 : index
    %0 = vector.load %arg1[%c0, %c0_0, %c0_1, %c0_2] : memref<1x20x32x128xf32, #tpu.memory_space<vmem>>, vector<1x20x32x128xf32>
    %1 = vector.shape_cast %0 : vector<1x20x32x128xf32> to vector<20x32x128xf32>
    %2 = arith.truncf %1 : vector<20x32x128xf32> to vector<20x32x128xbf16>
    %3 = vector.extract_strided_slice %2 {offsets = [0, 6, 0], sizes = [18, 24, 128], strides = [1, 1, 1]} : vector<20x32x128xbf16> to vector<18x24x128xbf16>
    %4 = vector.shape_cast %3 : vector<18x24x128xbf16> to vector<432x128xbf16>
    %c0_3 = arith.constant 0 : index
    %c0_4 = arith.constant 0 : index
    %c0_5 = arith.constant 0 : index
    %5 = vector.load %arg2[%c0_3, %c0_4, %c0_5] : memref<9x128x128xbf16, #tpu.memory_space<vmem>>, vector<1x128x128xbf16>
    %6 = vector.shape_cast %5 : vector<1x128x128xbf16> to vector<128x128xbf16>
    %cst = arith.constant dense<0.000000e+00> : vector<432x128xf32>
    %7 = tpu.matmul %4, %6, %cst {dimension_numbers = #tpu.dot_dimension_numbers<[1], [0], [0], [1], [0, 0, 1, 1], [], []>} : vector<432x128xbf16>, vector<128x128xbf16>, vector<432x128xf32> -> vector<432x128xf32>
    %8 = vector.extract_strided_slice %2 {offsets = [1, 6, 0], sizes = [18, 24, 128], strides = [1, 1, 1]} : vector<20x32x128xbf16> to vector<18x24x128xbf16>
    %9 = vector.shape_cast %8 : vector<18x24x128xbf16> to vector<432x128xbf16>
    %c1 = arith.constant 1 : index
    %c0_6 = arith.constant 0 : index
    %c0_7 = arith.constant 0 : index
    %10 = vector.load %arg2[%c1, %c0_6, %c0_7] : memref<9x128x128xbf16, #tpu.memory_space<vmem>>, vector<1x128x128xbf16>
    %11 = vector.shape_cast %10 : vector<1x128x128xbf16> to vector<128x128xbf16>
    %cst_8 = arith.constant dense<0.000000e+00> : vector<432x128xf32>
    %12 = tpu.matmul %9, %11, %cst_8 {dimension_numbers = #tpu.dot_dimension_numbers<[1], [0], [0], [1], [0, 0, 1, 1], [], []>} : vector<432x128xbf16>, vector<128x128xbf16>, vector<432x128xf32> -> vector<432x128xf32>
    %13 = arith.addf %7, %12 : vector<432x128xf32>
    %14 = vector.extract_strided_slice %2 {offsets = [2, 6, 0], sizes = [18, 24, 128], strides = [1, 1, 1]} : vector<20x32x128xbf16> to vector<18x24x128xbf16>
    %15 = vector.shape_cast %14 : vector<18x24x128xbf16> to vector<432x128xbf16>
    %c2 = arith.constant 2 : index
    %c0_9 = arith.constant 0 : index
    %c0_10 = arith.constant 0 : index
    %16 = vector.load %arg2[%c2, %c0_9, %c0_10] : memref<9x128x128xbf16, #tpu.memory_space<vmem>>, vector<1x128x128xbf16>
    %17 = vector.shape_cast %16 : vector<1x128x128xbf16> to vector<128x128xbf16>
    %cst_11 = arith.constant dense<0.000000e+00> : vector<432x128xf32>
    %18 = tpu.matmul %15, %17, %cst_11 {dimension_numbers = #tpu.dot_dimension_numbers<[1], [0], [0], [1], [0, 0, 1, 1], [], []>} : vector<432x128xbf16>, vector<128x128xbf16>, vector<432x128xf32> -> vector<432x128xf32>
    %19 = arith.addf %13, %18 : vector<432x128xf32>
    %20 = vector.extract_strided_slice %2 {offsets = [0, 7, 0], sizes = [18, 24, 128], strides = [1, 1, 1]} : vector<20x32x128xbf16> to vector<18x24x128xbf16>
    %21 = vector.shape_cast %20 : vector<18x24x128xbf16> to vector<432x128xbf16>
    %c3 = arith.constant 3 : index
    %c0_12 = arith.constant 0 : index
    %c0_13 = arith.constant 0 : index
    %22 = vector.load %arg2[%c3, %c0_12, %c0_13] : memref<9x128x128xbf16, #tpu.memory_space<vmem>>, vector<1x128x128xbf16>
    %23 = vector.shape_cast %22 : vector<1x128x128xbf16> to vector<128x128xbf16>
    %cst_14 = arith.constant dense<0.000000e+00> : vector<432x128xf32>
    %24 = tpu.matmul %21, %23, %cst_14 {dimension_numbers = #tpu.dot_dimension_numbers<[1], [0], [0], [1], [0, 0, 1, 1], [], []>} : vector<432x128xbf16>, vector<128x128xbf16>, vector<432x128xf32> -> vector<432x128xf32>
    %25 = arith.addf %19, %24 : vector<432x128xf32>
    %26 = vector.extract_strided_slice %2 {offsets = [1, 7, 0], sizes = [18, 24, 128], strides = [1, 1, 1]} : vector<20x32x128xbf16> to vector<18x24x128xbf16>
    %27 = vector.shape_cast %26 : vector<18x24x128xbf16> to vector<432x128xbf16>
    %c4 = arith.constant 4 : index
    %c0_15 = arith.constant 0 : index
    %c0_16 = arith.constant 0 : index
    %28 = vector.load %arg2[%c4, %c0_15, %c0_16] : memref<9x128x128xbf16, #tpu.memory_space<vmem>>, vector<1x128x128xbf16>
    %29 = vector.shape_cast %28 : vector<1x128x128xbf16> to vector<128x128xbf16>
    %cst_17 = arith.constant dense<0.000000e+00> : vector<432x128xf32>
    %30 = tpu.matmul %27, %29, %cst_17 {dimension_numbers = #tpu.dot_dimension_numbers<[1], [0], [0], [1], [0, 0, 1, 1], [], []>} : vector<432x128xbf16>, vector<128x128xbf16>, vector<432x128xf32> -> vector<432x128xf32>
    %31 = arith.addf %25, %30 : vector<432x128xf32>
    %32 = vector.extract_strided_slice %2 {offsets = [2, 7, 0], sizes = [18, 24, 128], strides = [1, 1, 1]} : vector<20x32x128xbf16> to vector<18x24x128xbf16>
    %33 = vector.shape_cast %32 : vector<18x24x128xbf16> to vector<432x128xbf16>
    %c5 = arith.constant 5 : index
    %c0_18 = arith.constant 0 : index
    %c0_19 = arith.constant 0 : index
    %34 = vector.load %arg2[%c5, %c0_18, %c0_19] : memref<9x128x128xbf16, #tpu.memory_space<vmem>>, vector<1x128x128xbf16>
    %35 = vector.shape_cast %34 : vector<1x128x128xbf16> to vector<128x128xbf16>
    %cst_20 = arith.constant dense<0.000000e+00> : vector<432x128xf32>
    %36 = tpu.matmul %33, %35, %cst_20 {dimension_numbers = #tpu.dot_dimension_numbers<[1], [0], [0], [1], [0, 0, 1, 1], [], []>} : vector<432x128xbf16>, vector<128x128xbf16>, vector<432x128xf32> -> vector<432x128xf32>
    %37 = arith.addf %31, %36 : vector<432x128xf32>
    %38 = vector.extract_strided_slice %2 {offsets = [0, 8, 0], sizes = [18, 24, 128], strides = [1, 1, 1]} : vector<20x32x128xbf16> to vector<18x24x128xbf16>
    %39 = vector.shape_cast %38 : vector<18x24x128xbf16> to vector<432x128xbf16>
    %c6 = arith.constant 6 : index
    %c0_21 = arith.constant 0 : index
    %c0_22 = arith.constant 0 : index
    %40 = vector.load %arg2[%c6, %c0_21, %c0_22] : memref<9x128x128xbf16, #tpu.memory_space<vmem>>, vector<1x128x128xbf16>
    %41 = vector.shape_cast %40 : vector<1x128x128xbf16> to vector<128x128xbf16>
    %cst_23 = arith.constant dense<0.000000e+00> : vector<432x128xf32>
    %42 = tpu.matmul %39, %41, %cst_23 {dimension_numbers = #tpu.dot_dimension_numbers<[1], [0], [0], [1], [0, 0, 1, 1], [], []>} : vector<432x128xbf16>, vector<128x128xbf16>, vector<432x128xf32> -> vector<432x128xf32>
    %43 = arith.addf %37, %42 : vector<432x128xf32>
    %44 = vector.extract_strided_slice %2 {offsets = [1, 8, 0], sizes = [18, 24, 128], strides = [1, 1, 1]} : vector<20x32x128xbf16> to vector<18x24x128xbf16>
    %45 = vector.shape_cast %44 : vector<18x24x128xbf16> to vector<432x128xbf16>
    %c7 = arith.constant 7 : index
    %c0_24 = arith.constant 0 : index
    %c0_25 = arith.constant 0 : index
    %46 = vector.load %arg2[%c7, %c0_24, %c0_25] : memref<9x128x128xbf16, #tpu.memory_space<vmem>>, vector<1x128x128xbf16>
    %47 = vector.shape_cast %46 : vector<1x128x128xbf16> to vector<128x128xbf16>
    %cst_26 = arith.constant dense<0.000000e+00> : vector<432x128xf32>
    %48 = tpu.matmul %45, %47, %cst_26 {dimension_numbers = #tpu.dot_dimension_numbers<[1], [0], [0], [1], [0, 0, 1, 1], [], []>} : vector<432x128xbf16>, vector<128x128xbf16>, vector<432x128xf32> -> vector<432x128xf32>
    %49 = arith.addf %43, %48 : vector<432x128xf32>
    %50 = vector.extract_strided_slice %2 {offsets = [2, 8, 0], sizes = [18, 24, 128], strides = [1, 1, 1]} : vector<20x32x128xbf16> to vector<18x24x128xbf16>
    %51 = vector.shape_cast %50 : vector<18x24x128xbf16> to vector<432x128xbf16>
    %c8 = arith.constant 8 : index
    %c0_27 = arith.constant 0 : index
    %c0_28 = arith.constant 0 : index
    %52 = vector.load %arg2[%c8, %c0_27, %c0_28] : memref<9x128x128xbf16, #tpu.memory_space<vmem>>, vector<1x128x128xbf16>
    %53 = vector.shape_cast %52 : vector<1x128x128xbf16> to vector<128x128xbf16>
    %cst_29 = arith.constant dense<0.000000e+00> : vector<432x128xf32>
    %54 = tpu.matmul %51, %53, %cst_29 {dimension_numbers = #tpu.dot_dimension_numbers<[1], [0], [0], [1], [0, 0, 1, 1], [], []>} : vector<432x128xbf16>, vector<128x128xbf16>, vector<432x128xf32> -> vector<432x128xf32>
    %55 = arith.addf %49, %54 : vector<432x128xf32>
    %c0_30 = arith.constant 0 : index
    %c0_31 = arith.constant 0 : index
    %56 = vector.load %arg3[%c0_30, %c0_31] : memref<1x128xf32, #tpu.memory_space<vmem>>, vector<1x128xf32>
    %57 = vector.shape_cast %56 : vector<1x128xf32> to vector<128xf32>
    %58 = vector.shape_cast %57 : vector<128xf32> to vector<1x128xf32>
    %59 = vector.broadcast %58 : vector<1x128xf32> to vector<432x128xf32>
    %60 = arith.addf %55, %59 : vector<432x128xf32>
    %cst_32 = arith.constant 0.000000e+00 : f32
    %61 = vector.broadcast %cst_32 : f32 to vector<432x128xf32>
    %62 = arith.maximumf %60, %61 : vector<432x128xf32>
    %63 = vector.shape_cast %62 : vector<432x128xf32> to vector<18x24x128xf32>
    %64 = tpu.iota {dimensions = array<i32: 0>} : vector<18x24x128xi32>
    %65 = tpu.iota {dimensions = array<i32: 1>} : vector<18x24x128xi32>
    %c1_i32 = arith.constant 1 : i32
    %66 = vector.broadcast %c1_i32 : i32 to vector<18x24x128xi32>
    %67 = arith.cmpi sge, %64, %66 : vector<18x24x128xi32>
    %c16_i32 = arith.constant 16 : i32
    %68 = vector.broadcast %c16_i32 : i32 to vector<18x24x128xi32>
    %69 = arith.cmpi sle, %64, %68 : vector<18x24x128xi32>
    %70 = arith.andi %67, %69 : vector<18x24x128xi1>
    %c1_i32_33 = arith.constant 1 : i32
    %71 = vector.broadcast %c1_i32_33 : i32 to vector<18x24x128xi32>
    %72 = arith.cmpi sge, %65, %71 : vector<18x24x128xi32>
    %73 = arith.andi %70, %72 : vector<18x24x128xi1>
    %c16_i32_34 = arith.constant 16 : i32
    %74 = vector.broadcast %c16_i32_34 : i32 to vector<18x24x128xi32>
    %75 = arith.cmpi sle, %65, %74 : vector<18x24x128xi32>
    %76 = arith.andi %73, %75 : vector<18x24x128xi1>
    %cst_35 = arith.constant 0.000000e+00 : f32
    %77 = vector.broadcast %cst_35 : f32 to vector<18x24x128xf32>
    %78 = arith.select %76, %63, %77 : vector<18x24x128xi1>, vector<18x24x128xf32>
    %79 = arith.truncf %78 : vector<18x24x128xf32> to vector<18x24x128xbf16>
    %80 = vector.extract_strided_slice %79 {offsets = [0, 0, 0], sizes = [16, 16, 128], strides = [1, 1, 1]} : vector<18x24x128xbf16> to vector<16x16x128xbf16>
    %81 = vector.shape_cast %80 : vector<16x16x128xbf16> to vector<256x128xbf16>
    %c0_36 = arith.constant 0 : index
    %c0_37 = arith.constant 0 : index
    %c0_38 = arith.constant 0 : index
    %82 = vector.load %arg4[%c0_36, %c0_37, %c0_38] : memref<9x128x128xbf16, #tpu.memory_space<vmem>>, vector<1x128x128xbf16>
    %83 = vector.shape_cast %82 : vector<1x128x128xbf16> to vector<128x128xbf16>
    %cst_39 = arith.constant dense<0.000000e+00> : vector<256x128xf32>
    %84 = tpu.matmul %81, %83, %cst_39 {dimension_numbers = #tpu.dot_dimension_numbers<[1], [0], [0], [1], [0, 0, 1, 1], [], []>} : vector<256x128xbf16>, vector<128x128xbf16>, vector<256x128xf32> -> vector<256x128xf32>
    %85 = vector.extract_strided_slice %79 {offsets = [1, 0, 0], sizes = [16, 16, 128], strides = [1, 1, 1]} : vector<18x24x128xbf16> to vector<16x16x128xbf16>
    %86 = vector.shape_cast %85 : vector<16x16x128xbf16> to vector<256x128xbf16>
    %c1_40 = arith.constant 1 : index
    %c0_41 = arith.constant 0 : index
    %c0_42 = arith.constant 0 : index
    %87 = vector.load %arg4[%c1_40, %c0_41, %c0_42] : memref<9x128x128xbf16, #tpu.memory_space<vmem>>, vector<1x128x128xbf16>
    %88 = vector.shape_cast %87 : vector<1x128x128xbf16> to vector<128x128xbf16>
    %cst_43 = arith.constant dense<0.000000e+00> : vector<256x128xf32>
    %89 = tpu.matmul %86, %88, %cst_43 {dimension_numbers = #tpu.dot_dimension_numbers<[1], [0], [0], [1], [0, 0, 1, 1], [], []>} : vector<256x128xbf16>, vector<128x128xbf16>, vector<256x128xf32> -> vector<256x128xf32>
    %90 = arith.addf %84, %89 : vector<256x128xf32>
    %91 = vector.extract_strided_slice %79 {offsets = [2, 0, 0], sizes = [16, 16, 128], strides = [1, 1, 1]} : vector<18x24x128xbf16> to vector<16x16x128xbf16>
    %92 = vector.shape_cast %91 : vector<16x16x128xbf16> to vector<256x128xbf16>
    %c2_44 = arith.constant 2 : index
    %c0_45 = arith.constant 0 : index
    %c0_46 = arith.constant 0 : index
    %93 = vector.load %arg4[%c2_44, %c0_45, %c0_46] : memref<9x128x128xbf16, #tpu.memory_space<vmem>>, vector<1x128x128xbf16>
    %94 = vector.shape_cast %93 : vector<1x128x128xbf16> to vector<128x128xbf16>
    %cst_47 = arith.constant dense<0.000000e+00> : vector<256x128xf32>
    %95 = tpu.matmul %92, %94, %cst_47 {dimension_numbers = #tpu.dot_dimension_numbers<[1], [0], [0], [1], [0, 0, 1, 1], [], []>} : vector<256x128xbf16>, vector<128x128xbf16>, vector<256x128xf32> -> vector<256x128xf32>
    %96 = arith.addf %90, %95 : vector<256x128xf32>
    %97 = vector.extract_strided_slice %79 {offsets = [0, 1, 0], sizes = [16, 16, 128], strides = [1, 1, 1]} : vector<18x24x128xbf16> to vector<16x16x128xbf16>
    %98 = vector.shape_cast %97 : vector<16x16x128xbf16> to vector<256x128xbf16>
    %c3_48 = arith.constant 3 : index
    %c0_49 = arith.constant 0 : index
    %c0_50 = arith.constant 0 : index
    %99 = vector.load %arg4[%c3_48, %c0_49, %c0_50] : memref<9x128x128xbf16, #tpu.memory_space<vmem>>, vector<1x128x128xbf16>
    %100 = vector.shape_cast %99 : vector<1x128x128xbf16> to vector<128x128xbf16>
    %cst_51 = arith.constant dense<0.000000e+00> : vector<256x128xf32>
    %101 = tpu.matmul %98, %100, %cst_51 {dimension_numbers = #tpu.dot_dimension_numbers<[1], [0], [0], [1], [0, 0, 1, 1], [], []>} : vector<256x128xbf16>, vector<128x128xbf16>, vector<256x128xf32> -> vector<256x128xf32>
    %102 = arith.addf %96, %101 : vector<256x128xf32>
    %103 = vector.extract_strided_slice %79 {offsets = [1, 1, 0], sizes = [16, 16, 128], strides = [1, 1, 1]} : vector<18x24x128xbf16> to vector<16x16x128xbf16>
    %104 = vector.shape_cast %103 : vector<16x16x128xbf16> to vector<256x128xbf16>
    %c4_52 = arith.constant 4 : index
    %c0_53 = arith.constant 0 : index
    %c0_54 = arith.constant 0 : index
    %105 = vector.load %arg4[%c4_52, %c0_53, %c0_54] : memref<9x128x128xbf16, #tpu.memory_space<vmem>>, vector<1x128x128xbf16>
    %106 = vector.shape_cast %105 : vector<1x128x128xbf16> to vector<128x128xbf16>
    %cst_55 = arith.constant dense<0.000000e+00> : vector<256x128xf32>
    %107 = tpu.matmul %104, %106, %cst_55 {dimension_numbers = #tpu.dot_dimension_numbers<[1], [0], [0], [1], [0, 0, 1, 1], [], []>} : vector<256x128xbf16>, vector<128x128xbf16>, vector<256x128xf32> -> vector<256x128xf32>
    %108 = arith.addf %102, %107 : vector<256x128xf32>
    %109 = vector.extract_strided_slice %79 {offsets = [2, 1, 0], sizes = [16, 16, 128], strides = [1, 1, 1]} : vector<18x24x128xbf16> to vector<16x16x128xbf16>
    %110 = vector.shape_cast %109 : vector<16x16x128xbf16> to vector<256x128xbf16>
    %c5_56 = arith.constant 5 : index
    %c0_57 = arith.constant 0 : index
    %c0_58 = arith.constant 0 : index
    %111 = vector.load %arg4[%c5_56, %c0_57, %c0_58] : memref<9x128x128xbf16, #tpu.memory_space<vmem>>, vector<1x128x128xbf16>
    %112 = vector.shape_cast %111 : vector<1x128x128xbf16> to vector<128x128xbf16>
    %cst_59 = arith.constant dense<0.000000e+00> : vector<256x128xf32>
    %113 = tpu.matmul %110, %112, %cst_59 {dimension_numbers = #tpu.dot_dimension_numbers<[1], [0], [0], [1], [0, 0, 1, 1], [], []>} : vector<256x128xbf16>, vector<128x128xbf16>, vector<256x128xf32> -> vector<256x128xf32>
    %114 = arith.addf %108, %113 : vector<256x128xf32>
    %115 = vector.extract_strided_slice %79 {offsets = [0, 2, 0], sizes = [16, 16, 128], strides = [1, 1, 1]} : vector<18x24x128xbf16> to vector<16x16x128xbf16>
    %116 = vector.shape_cast %115 : vector<16x16x128xbf16> to vector<256x128xbf16>
    %c6_60 = arith.constant 6 : index
    %c0_61 = arith.constant 0 : index
    %c0_62 = arith.constant 0 : index
    %117 = vector.load %arg4[%c6_60, %c0_61, %c0_62] : memref<9x128x128xbf16, #tpu.memory_space<vmem>>, vector<1x128x128xbf16>
    %118 = vector.shape_cast %117 : vector<1x128x128xbf16> to vector<128x128xbf16>
    %cst_63 = arith.constant dense<0.000000e+00> : vector<256x128xf32>
    %119 = tpu.matmul %116, %118, %cst_63 {dimension_numbers = #tpu.dot_dimension_numbers<[1], [0], [0], [1], [0, 0, 1, 1], [], []>} : vector<256x128xbf16>, vector<128x128xbf16>, vector<256x128xf32> -> vector<256x128xf32>
    %120 = arith.addf %114, %119 : vector<256x128xf32>
    %121 = vector.extract_strided_slice %79 {offsets = [1, 2, 0], sizes = [16, 16, 128], strides = [1, 1, 1]} : vector<18x24x128xbf16> to vector<16x16x128xbf16>
    %122 = vector.shape_cast %121 : vector<16x16x128xbf16> to vector<256x128xbf16>
    %c7_64 = arith.constant 7 : index
    %c0_65 = arith.constant 0 : index
    %c0_66 = arith.constant 0 : index
    %123 = vector.load %arg4[%c7_64, %c0_65, %c0_66] : memref<9x128x128xbf16, #tpu.memory_space<vmem>>, vector<1x128x128xbf16>
    %124 = vector.shape_cast %123 : vector<1x128x128xbf16> to vector<128x128xbf16>
    %cst_67 = arith.constant dense<0.000000e+00> : vector<256x128xf32>
    %125 = tpu.matmul %122, %124, %cst_67 {dimension_numbers = #tpu.dot_dimension_numbers<[1], [0], [0], [1], [0, 0, 1, 1], [], []>} : vector<256x128xbf16>, vector<128x128xbf16>, vector<256x128xf32> -> vector<256x128xf32>
    %126 = arith.addf %120, %125 : vector<256x128xf32>
    %127 = vector.extract_strided_slice %79 {offsets = [2, 2, 0], sizes = [16, 16, 128], strides = [1, 1, 1]} : vector<18x24x128xbf16> to vector<16x16x128xbf16>
    %128 = vector.shape_cast %127 : vector<16x16x128xbf16> to vector<256x128xbf16>
    %c8_68 = arith.constant 8 : index
    %c0_69 = arith.constant 0 : index
    %c0_70 = arith.constant 0 : index
    %129 = vector.load %arg4[%c8_68, %c0_69, %c0_70] : memref<9x128x128xbf16, #tpu.memory_space<vmem>>, vector<1x128x128xbf16>
    %130 = vector.shape_cast %129 : vector<1x128x128xbf16> to vector<128x128xbf16>
    %cst_71 = arith.constant dense<0.000000e+00> : vector<256x128xf32>
    %131 = tpu.matmul %128, %130, %cst_71 {dimension_numbers = #tpu.dot_dimension_numbers<[1], [0], [0], [1], [0, 0, 1, 1], [], []>} : vector<256x128xbf16>, vector<128x128xbf16>, vector<256x128xf32> -> vector<256x128xf32>
    %132 = arith.addf %126, %131 : vector<256x128xf32>
    %133 = vector.extract_strided_slice %1 {offsets = [2, 8, 0], sizes = [16, 16, 128], strides = [1, 1, 1]} : vector<20x32x128xf32> to vector<16x16x128xf32>
    %134 = vector.shape_cast %133 : vector<16x16x128xf32> to vector<256x128xf32>
    %c0_72 = arith.constant 0 : index
    %c0_73 = arith.constant 0 : index
    %135 = vector.load %arg5[%c0_72, %c0_73] : memref<1x128xf32, #tpu.memory_space<vmem>>, vector<1x128xf32>
    %136 = vector.shape_cast %135 : vector<1x128xf32> to vector<128xf32>
    %137 = vector.shape_cast %136 : vector<128xf32> to vector<1x128xf32>
    %138 = vector.broadcast %137 : vector<1x128xf32> to vector<256x128xf32>
    %139 = arith.addf %132, %138 : vector<256x128xf32>
    %140 = arith.addf %139, %134 : vector<256x128xf32>
    %cst_74 = arith.constant 0.000000e+00 : f32
    %141 = vector.broadcast %cst_74 : f32 to vector<256x128xf32>
    %142 = arith.maximumf %140, %141 : vector<256x128xf32>
    %143 = vector.shape_cast %142 : vector<256x128xf32> to vector<1x16x16x128xf32>
    %c0_75 = arith.constant 0 : index
    %c0_76 = arith.constant 0 : index
    %c0_77 = arith.constant 0 : index
    %c0_78 = arith.constant 0 : index
    %144 = vector.load %arg6[%c0_75, %c0_76, %c0_77, %c0_78] : memref<1x16x16x128xf32, #tpu.memory_space<vmem>>, vector<1x16x16x128xf32>
    tpu.vector_store %arg6[%c0_75, %c0_76, %c0_77, %c0_78], %143 {strides = array<i32>} : memref<1x16x16x128xf32, #tpu.memory_space<vmem>>, vector<1x16x16x128xf32>,
    return
  }
  func.func @transform_0(%arg0: i32) -> (i32, i32, i32, i32) {
    %c0_i32 = arith.constant 0 : i32
    %c0_i32_0 = arith.constant 0 : i32
    %c0_i32_1 = arith.constant 0 : i32
    %c0_i32_2 = arith.constant 0 : i32
    return %arg0, %c0_i32, %c0_i32_0, %c0_i32_1 : i32, i32, i32, i32
  }
  func.func @transform_1(%arg0: i32) -> (i32, i32, i32) {
    %c0_i32 = arith.constant 0 : i32
    %c0_i32_0 = arith.constant 0 : i32
    %c0_i32_1 = arith.constant 0 : i32
    %c0_i32_2 = arith.constant 0 : i32
    return %c0_i32, %c0_i32_0, %c0_i32_1 : i32, i32, i32
  }
  func.func @transform_2(%arg0: i32) -> (i32, i32) {
    %c0_i32 = arith.constant 0 : i32
    %c0_i32_0 = arith.constant 0 : i32
    %c0_i32_1 = arith.constant 0 : i32
    return %c0_i32, %c0_i32_0 : i32, i32
  }
  func.func @transform_3(%arg0: i32) -> (i32, i32, i32) {
    %c0_i32 = arith.constant 0 : i32
    %c0_i32_0 = arith.constant 0 : i32
    %c0_i32_1 = arith.constant 0 : i32
    %c0_i32_2 = arith.constant 0 : i32
    return %c0_i32, %c0_i32_0, %c0_i32_1 : i32, i32, i32
  }
  func.func @transform_4(%arg0: i32) -> (i32, i32) {
    %c0_i32 = arith.constant 0 : i32
    %c0_i32_0 = arith.constant 0 : i32
    %c0_i32_1 = arith.constant 0 : i32
    return %c0_i32, %c0_i32_0 : i32, i32
  }
  func.func @transform_5(%arg0: i32) -> (i32, i32, i32, i32) {
    %c0_i32 = arith.constant 0 : i32
    %c0_i32_0 = arith.constant 0 : i32
    %c0_i32_1 = arith.constant 0 : i32
    %c0_i32_2 = arith.constant 0 : i32
    return %arg0, %c0_i32, %c0_i32_0, %c0_i32_1 : i32, i32, i32, i32
  }
}

</mosaic_0001>

<llo_original>
// kernel: basic_block_forward.1
$region0: #{basic_block_forward.1}
  #allocation0 [shape = 'u32[]', space=smem, size = 0x4, offset = 0x4, fixed_abs, tag = 'smem constant byte address 0x4 - core index']
  #allocation1 [shape = 'u32[72,128]{1,0:T(1,128)}', space=vmem, size = 0x9000, scoped, tag = 'internal scratch']
  %s0 = inlined_call_operand.vmem [shape: f32[2,20,32,128], index: 0, kind: input, shape index: {}]
  %s1 = inlined_call_operand.vmem [shape: bf16[9,128,128], index: 1, kind: input, shape index: {}]
  %s2 = inlined_call_operand.vmem [shape: f32[1,128], index: 2, kind: input, shape index: {}]
  %s3 = inlined_call_operand.vmem [shape: bf16[9,128,128], index: 3, kind: input, shape index: {}]
  %s4 = inlined_call_operand.vmem [shape: f32[1,128], index: 4, kind: input, shape index: {}]
  %s5 = inlined_call_operand.vmem [shape: f32[2,16,16,128], index: 5, kind: output, shape index: {}]
  %s6 = sld [smem:[#allocation0]]
  $region53: #{basic_block_forward.1} parent=0
    _
  %s8 = ssub.s32 1, %s6
  %s9 = scalar_select 0, %s8, %s6
  loop: start=0, step=1, limit=4
  $region2: #{basic_block_forward.1} parent=0 // loop_pre_header
    _
  $region3: #{basic_block_forward.1} parent=0 // loop_header
    %s11 = sphi 0, %s15
    %p12 = scmp.ge.s32.totalorder %s11, 4
    %s21 = sphi 0, %s23
    %s24 = sphi 0, %s21
    %s25 = sphi 0, %s24
    %s41 = sphi 0, %s25
    %s45 = sphi 0, %s45
    %s47 = sphi 0, %s45
    %s48 = sphi 0, %s47
    %s62 = sphi 0, %s48
    %s66 = sphi 0, %s66
    %s68 = sphi 0, %s66
    %s69 = sphi 0, %s68
    %s83 = sphi 0, %s69
    %s87 = sphi 0, %s87
    %s89 = sphi 0, %s87
    %s90 = sphi 0, %s89
    %s104 = sphi 0, %s90
    %s108 = sphi 0, %s108
    %s110 = sphi 0, %s108
    %s111 = sphi 0, %s110
    %s125 = sphi 0, %s111
    %s131 = sphi 0, %s133
    %s134 = sphi 0, %s131
    %s135 = sphi 0, %s134
    %s151 = sphi 0, %s135
  $region4: #{basic_block_forward.1} parent=0 // loop_header_branch
    %14 = sbr.rel (%p12) target = $region8
  $region5: #{basic_block_forward.1} parent=0 // loop_body
    %s16 = ssub.s32 %s11, 1
    %s17 = ssub.s32 %s11, 2
    %s18 = sadd.s32 %s11, 1
    %s19 = ssub.s32 %s11, %s18
    %p20 = scmp.eq.s32.totalorder %s19, 0
    %s22 = sadd.s32 %s21, 1
    %s23 = scalar_select %p20, %s21, %s22
    %p26 = pneg %p20
    %p27 = scmp.eq.s32.totalorder %s11, 1
    %p28 = por %p26, %p27
    %p29 = scmp.ne.s32.totalorder %s21, %s24
    %p30 = scmp.eq.s32.totalorder %s11, 0
    %p31 = por %p29, %p30
    %p32 = scmp.ne.s32.totalorder %s21, %s24
    %p33 = scmp.eq.s32.totalorder %s16, 1
    %p34 = por %p32, %p33
    %p35 = scmp.ne.s32.totalorder %s24, %s25
    %p36 = scmp.eq.s32.totalorder %s16, 0
    %p37 = por %p35, %p36
    %p38 = scmp.ne.s32.totalorder %s24, %s25
    %p39 = scmp.eq.s32.totalorder %s17, 1
    %p40 = por %p38, %p39
    %p42 = scmp.ne.s32.totalorder %s25, %s41
    %p43 = scmp.eq.s32.totalorder %s17, 0
    %p44 = por %p42, %p43
    %s46 = sadd.s32 %s45, 1
    %p49 = scmp.eq.s32.totalorder %s11, 1
    %p50 = scmp.ne.s32.totalorder %s45, %s47
    %p51 = scmp.eq.s32.totalorder %s11, 0
    %p52 = por %p50, %p51
    %p53 = scmp.ne.s32.totalorder %s45, %s47
    %p54 = scmp.eq.s32.totalorder %s16, 1
    %p55 = por %p53, %p54
    %p56 = scmp.ne.s32.totalorder %s47, %s48
    %p57 = scmp.eq.s32.totalorder %s16, 0
    %p58 = por %p56, %p57
    %p59 = scmp.ne.s32.totalorder %s47, %s48
    %p60 = scmp.eq.s32.totalorder %s17, 1
    %p61 = por %p59, %p60
    %p63 = scmp.ne.s32.totalorder %s48, %s62
    %p64 = scmp.eq.s32.totalorder %s17, 0
    %p65 = por %p63, %p64
    %s67 = sadd.s32 %s66, 1
    %p70 = scmp.eq.s32.totalorder %s11, 1
    %p71 = scmp.ne.s32.totalorder %s66, %s68
    %p72 = scmp.eq.s32.totalorder %s11, 0
    %p73 = por %p71, %p72
    %p74 = scmp.ne.s32.totalorder %s66, %s68
    %p75 = scmp.eq.s32.totalorder %s16, 1
    %p76 = por %p74, %p75
    %p77 = scmp.ne.s32.totalorder %s68, %s69
    %p78 = scmp.eq.s32.totalorder %s16, 0
    %p79 = por %p77, %p78
    %p80 = scmp.ne.s32.totalorder %s68, %s69
    %p81 = scmp.eq.s32.totalorder %s17, 1
    %p82 = por %p80, %p81
    %p84 = scmp.ne.s32.totalorder %s69, %s83
    %p85 = scmp.eq.s32.totalorder %s17, 0
    %p86 = por %p84, %p85
    %s88 = sadd.s32 %s87, 1
    %p91 = scmp.eq.s32.totalorder %s11, 1
    %p92 = scmp.ne.s32.totalorder %s87, %s89
    %p93 = scmp.eq.s32.totalorder %s11, 0
    %p94 = por %p92, %p93
    %p95 = scmp.ne.s32.totalorder %s87, %s89
    %p96 = scmp.eq.s32.totalorder %s16, 1
    %p97 = por %p95, %p96
    %p98 = scmp.ne.s32.totalorder %s89, %s90
    %p99 = scmp.eq.s32.totalorder %s16, 0
    %p100 = por %p98, %p99
    %p101 = scmp.ne.s32.totalorder %s89, %s90
    %p102 = scmp.eq.s32.totalorder %s17, 1
    %p103 = por %p101, %p102
    %p105 = scmp.ne.s32.totalorder %s90, %s104
    %p106 = scmp.eq.s32.totalorder %s17, 0
    %p107 = por %p105, %p106
    %s109 = sadd.s32 %s108, 1
    %p112 = scmp.eq.s32.totalorder %s11, 1
    %p113 = scmp.ne.s32.totalorder %s108, %s110
    %p114 = scmp.eq.s32.totalorder %s11, 0
    %p115 = por %p113, %p114
    %p116 = scmp.ne.s32.totalorder %s108, %s110
    %p117 = scmp.eq.s32.totalorder %s16, 1
    %p118 = por %p116, %p117
    %p119 = scmp.ne.s32.totalorder %s110, %s111
    %p120 = scmp.eq.s32.totalorder %s16, 0
    %p121 = por %p119, %p120
    %p122 = scmp.ne.s32.totalorder %s110, %s111
    %p123 = scmp.eq.s32.totalorder %s17, 1
    %p124 = por %p122, %p123
    %p126 = scmp.ne.s32.totalorder %s111, %s125
    %p127 = scmp.eq.s32.totalorder %s17, 0
    %p128 = por %p126, %p127
    %s129 = ssub.s32 %s11, %s18
    %p130 = scmp.eq.s32.totalorder %s129, 0
    %s132 = sadd.s32 %s131, 1
    %s133 = scalar_select %p130, %s131, %s132
    %p136 = pneg %p130
    %p137 = scmp.eq.s32.totalorder %s11, 1
    %p138 = por %p136, %p137
    %p139 = scmp.ne.s32.totalorder %s131, %s134
    %p140 = scmp.eq.s32.totalorder %s11, 0
    %p141 = por %p139, %p140
    %p142 = scmp.ne.s32.totalorder %s131, %s134
    %p143 = scmp.eq.s32.totalorder %s16, 1
    %p144 = por %p142, %p143
    %p145 = scmp.ne.s32.totalorder %s134, %s135
    %p146 = scmp.eq.s32.totalorder %s16, 0
    %p147 = por %p145, %p146
    %p148 = scmp.ne.s32.totalorder %s134, %s135
    %p149 = scmp.eq.s32.totalorder %s17, 1
    %p150 = por %p148, %p149
    %p152 = scmp.ne.s32.totalorder %s135, %s151
    %p153 = scmp.eq.s32.totalorder %s17, 0
    %p154 = por %p152, %p153
    %p155 = scmp.le.s32.totalorder 1, %s11
    %p156 = scmp.lt.s32.totalorder %s11, 3
    %p157 = pnand %p155, %p156
    %p158 = pneg %p157
    // Predicated region
    $region9: #{basic_block_forward.1} parent=5 // pred_check
      _
    $region10: #{basic_block_forward.1} parent=5 // pred_check_branch
      %160 = sbr.rel (%p157) target = $region12
    $region11: #{basic_block_forward.1} parent=5 // pred_region
      %s161 = ssub.s32 %s11, 1
      // Predicated region
      $region13: #{basic_block_forward.1} parent=11 // pred_check
        %p162 = pneg %p58
      $region14: #{basic_block_forward.1} parent=11 // pred_check_branch
        %164 = sbr.rel (%p162) target = $region16
      $region15: #{basic_block_forward.1} parent=11 // pred_region
        _
      $region16: #{basic_block_forward.1} parent=11 // pred_fallthru
        _
      // Predicated region
      $region17: #{basic_block_forward.1} parent=11 // pred_check
        %p165 = pneg %p79
      $region18: #{basic_block_forward.1} parent=11 // pred_check_branch
        %167 = sbr.rel (%p165) target = $region20
      $region19: #{basic_block_forward.1} parent=11 // pred_region
        _
      $region20: #{basic_block_forward.1} parent=11 // pred_fallthru
        _
      // Predicated region
      $region21: #{basic_block_forward.1} parent=11 // pred_check
        %p168 = pneg %p100
      $region22: #{basic_block_forward.1} parent=11 // pred_check_branch
        %170 = sbr.rel (%p168) target = $region24
      $region23: #{basic_block_forward.1} parent=11 // pred_region
        _
      $region24: #{basic_block_forward.1} parent=11 // pred_fallthru
        _
      // Predicated region
      $region25: #{basic_block_forward.1} parent=11 // pred_check
        %p171 = pneg %p121
      $region26: #{basic_block_forward.1} parent=11 // pred_check_branch
        %173 = sbr.rel (%p171) target = $region28
      $region27: #{basic_block_forward.1} parent=11 // pred_region
        _
      $region28: #{basic_block_forward.1} parent=11 // pred_fallthru
        _
    $region12: #{basic_block_forward.1} parent=5 // pred_fallthru
      _
    %p174 = scmp.lt.s32.totalorder %s11, 2
    // Predicated region
    $region29: #{basic_block_forward.1} parent=5 // pred_check
      %p175 = pneg %p174
    $region30: #{basic_block_forward.1} parent=5 // pred_check_branch
      %177 = sbr.rel (%p175) target = $region32
    $region31: #{basic_block_forward.1} parent=5 // pred_region
      // Predicated region
      $region33: #{basic_block_forward.1} parent=31 // pred_check
        %p178 = pneg %p31
      $region34: #{basic_block_forward.1} parent=31 // pred_check_branch
        %180 = sbr.rel (%p178) target = $region36
      $region35: #{basic_block_forward.1} parent=31 // pred_region
        %p181 = scmp.lt.s32.totalorder %s11, 1
        %s182 = scalar_select %p181, %s11, 1
        %s183 = smul.addr %s182, 80
        %s184 = smul.addr %s183, 8
        %s185 = scalar_lea.vmem %s0, %s184
      $region36: #{basic_block_forward.1} parent=31 // pred_fallthru
        _
    $region32: #{basic_block_forward.1} parent=5 // pred_fallthru
      _
    %p186 = scmp.le.s32.totalorder 1, %s11
    %p187 = scmp.lt.s32.totalorder %s11, 3
    %p188 = pnand %p186, %p187
    %p189 = pneg %p188
    // Predicated region
    $region37: #{basic_block_forward.1} parent=5 // pred_check
      _
    $region38: #{basic_block_forward.1} parent=5 // pred_check_branch
      %191 = sbr.rel (%p188) target = $region40
    $region39: #{basic_block_forward.1} parent=5 // pred_region
      %s192 = ssub.s32 %s11, 1
      %p193 = scmp.lt.s32.totalorder %s16, 1
      %s194 = scalar_select %p193, %s16, 1
      %s195 = smul.addr %s194, 80
      %s196 = smul.addr %s195, 8
      %s197 = scalar_lea.vmem %s0, %s196
      %p198 = pneg %p37
      %p199 = pneg %p34
      %p200 = pneg %p58
      %p201 = pneg %p55
      %p202 = pneg %p79
      %p203 = pneg %p76
      %p204 = pneg %p100
      %p205 = pneg %p97
      %p206 = pneg %p121
      %p207 = pneg %p118
      %p208 = pneg %p147
      %p209 = pneg %p144
      %p210 = scmp.lt.s32.totalorder %s16, 1
      %s211 = scalar_select %p210, %s16, 1
      %s212 = smul.addr %s211, 32
      %s213 = smul.addr %s212, 8
      %s214 = scalar_lea.vmem %s5, %s213
      %p215 = scmp.lt.s32.totalorder %s16, 1
      %s216 = scalar_select %p215, %s16, 1
      %s217 = smul.addr %s216, 80
      %s218 = smul.addr %s217, 8
      %s219 = scalar_lea.vmem %s0, %s218
      %p220 = scmp.lt.s32.totalorder %s16, 1
      %s221 = scalar_select %p220, %s16, 1
      %s222 = smul.addr %s221, 32
      %s223 = smul.addr %s222, 8
      %s224 = scalar_lea.vmem %s5, %s223
      %v225 = vld [vmem:[%s219] sm:$0xff]
      %v226 = vld [vmem:[%s219 + $0x8] sm:$0xff]
      %v227 = vld [vmem:[%s219 + $0x10] sm:$0xff]
      %v228 = vld [vmem:[%s219 + $0x18] sm:$0xff]
      %v229 = vld [vmem:[%s219 + $0x20] sm:$0xff]
      %v230 = vld [vmem:[%s219 + $0x28] sm:$0xff]
      %v231 = vld [vmem:[%s219 + $0x30] sm:$0xff]
      %v232 = vld [vmem:[%s219 + $0x38] sm:$0xff]
      %v233 = vld [vmem:[%s219 + $0x40] sm:$0xff]
      %v234 = vld [vmem:[%s219 + $0x48] sm:$0xff]
      %v235 = vld [vmem:[%s219 + $0x50] sm:$0xff]
      %v236 = vld [vmem:[%s219 + $0x58] sm:$0xff]
      %v237 = vld [vmem:[%s219 + $0x60] sm:$0xff]
      %v238 = vld [vmem:[%s219 + $0x68] sm:$0xff]
      %v239 = vld [vmem:[%s219 + $0x70] sm:$0xff]
      %v240 = vld [vmem:[%s219 + $0x78] sm:$0xff]
      %v241 = vld [vmem:[%s219 + $0x80] sm:$0xff]
      %v242 = vld [vmem:[%s219 + $0x88] sm:$0xff]
      %v243 = vld [vmem:[%s219 + $0x90] sm:$0xff]
      %v244 = vld [vmem:[%s219 + $0x98] sm:$0xff]
      %v245 = vld [vmem:[%s219 + $0xa0] sm:$0xff]
      %v246 = vld [vmem:[%s219 + $0xa8] sm:$0xff]
      %v247 = vld [vmem:[%s219 + $0xb0] sm:$0xff]
      %v248 = vld [vmem:[%s219 + $0xb8] sm:$0xff]
      %v249 = vld [vmem:[%s219 + $0xc0] sm:$0xff]
      %v250 = vld [vmem:[%s219 + $0xc8] sm:$0xff]
      %v251 = vld [vmem:[%s219 + $0xd0] sm:$0xff]
      %v252 = vld [vmem:[%s219 + $0xd8] sm:$0xff]
      %v253 = vld [vmem:[%s219 + $0xe0] sm:$0xff]
      %v254 = vld [vmem:[%s219 + $0xe8] sm:$0xff]
      %v255 = vld [vmem:[%s219 + $0xf0] sm:$0xff]
      %v256 = vld [vmem:[%s219 + $0xf8] sm:$0xff]
      %v257 = vld [vmem:[%s219 + $0x100] sm:$0xff]
      %v258 = vld [vmem:[%s219 + $0x108] sm:$0xff]
      %v259 = vld [vmem:[%s219 + $0x110] sm:$0xff]
      %v260 = vld [vmem:[%s219 + $0x118] sm:$0xff]
      %v261 = vld [vmem:[%s219 + $0x120] sm:$0xff]
      %v262 = vld [vmem:[%s219 + $0x128] sm:$0xff]
      %v263 = vld [vmem:[%s219 + $0x130] sm:$0xff]
      %v264 = vld [vmem:[%s219 + $0x138] sm:$0xff]
      %v265 = vld [vmem:[%s219 + $0x140] sm:$0xff]
      %v266 = vld [vmem:[%s219 + $0x148] sm:$0xff]
      %v267 = vld [vmem:[%s219 + $0x150] sm:$0xff]
      %v268 = vld [vmem:[%s219 + $0x158] sm:$0xff]
      %v269 = vld [vmem:[%s219 + $0x160] sm:$0xff]
      %v270 = vld [vmem:[%s219 + $0x168] sm:$0xff]
      %v271 = vld [vmem:[%s219 + $0x170] sm:$0xff]
      %v272 = vld [vmem:[%s219 + $0x178] sm:$0xff]
      %v273 = vld [vmem:[%s219 + $0x180] sm:$0xff]
      %v274 = vld [vmem:[%s219 + $0x188] sm:$0xff]
      %v275 = vld [vmem:[%s219 + $0x190] sm:$0xff]
      %v276 = vld [vmem:[%s219 + $0x198] sm:$0xff]
      %v277 = vld [vmem:[%s219 + $0x1a0] sm:$0xff]
      %v278 = vld [vmem:[%s219 + $0x1a8] sm:$0xff]
      %v279 = vld [vmem:[%s219 + $0x1b0] sm:$0xff]
      %v280 = vld [vmem:[%s219 + $0x1b8] sm:$0xff]
      %v281 = vld [vmem:[%s219 + $0x1c0] sm:$0xff]
      %v282 = vld [vmem:[%s219 + $0x1c8] sm:$0xff]
      %v283 = vld [vmem:[%s219 + $0x1d0] sm:$0xff]
      %v284 = vld [vmem:[%s219 + $0x1d8] sm:$0xff]
      %v285 = vld [vmem:[%s219 + $0x1e0] sm:$0xff]
      %v286 = vld [vmem:[%s219 + $0x1e8] sm:$0xff]
      %v287 = vld [vmem:[%s219 + $0x1f0] sm:$0xff]
      %v288 = vld [vmem:[%s219 + $0x1f8] sm:$0xff]
      %v289 = vld [vmem:[%s219 + $0x200] sm:$0xff]
      %v290 = vld [vmem:[%s219 + $0x208] sm:$0xff]
      %v291 = vld [vmem:[%s219 + $0x210] sm:$0xff]
      %v292 = vld [vmem:[%s219 + $0x218] sm:$0xff]
      %v293 = vld [vmem:[%s219 + $0x220] sm:$0xff]
      %v294 = vld [vmem:[%s219 + $0x228] sm:$0xff]
      %v295 = vld [vmem:[%s219 + $0x230] sm:$0xff]
      %v296 = vld [vmem:[%s219 + $0x238] sm:$0xff]
      %v297 = vld [vmem:[%s219 + $0x240] sm:$0xff]
      %v298 = vld [vmem:[%s219 + $0x248] sm:$0xff]
      %v299 = vld [vmem:[%s219 + $0x250] sm:$0xff]
      %v300 = vld [vmem:[%s219 + $0x258] sm:$0xff]
      %v301 = vld [vmem:[%s219 + $0x260] sm:$0xff]
      %v302 = vld [vmem:[%s219 + $0x268] sm:$0xff]
      %v303 = vld [vmem:[%s219 + $0x270] sm:$0xff]
      %v304 = vld [vmem:[%s219 + $0x278] sm:$0xff]
      %v305 = vpack.c.bf16 %v225, %v225
      %v306 = vpack.c.bf16 %v226, %v226
      %v307 = vpack.c.bf16 %v227, %v227
      %v308 = vpack.c.bf16 %v228, %v228
      %v309 = vpack.c.bf16 %v229, %v229
      %v310 = vpack.c.bf16 %v230, %v230
      %v311 = vpack.c.bf16 %v231, %v231
      %v312 = vpack.c.bf16 %v232, %v232
      %v313 = vpack.c.bf16 %v233, %v233
      %v314 = vpack.c.bf16 %v234, %v234
      %v315 = vpack.c.bf16 %v235, %v235
      %v316 = vpack.c.bf16 %v236, %v236
      %v317 = vpack.c.bf16 %v237, %v237
      %v318 = vpack.c.bf16 %v238, %v238
      %v319 = vpack.c.bf16 %v239, %v239
      %v320 = vpack.c.bf16 %v240, %v240
      %v321 = vpack.c.bf16 %v241, %v241
      %v322 = vpack.c.bf16 %v242, %v242
      %v323 = vpack.c.bf16 %v243, %v243
      %v324 = vpack.c.bf16 %v244, %v244
      %v325 = vpack.c.bf16 %v245, %v245
      %v326 = vpack.c.bf16 %v246, %v246
      %v327 = vpack.c.bf16 %v247, %v247
      %v328 = vpack.c.bf16 %v248, %v248
      %v329 = vpack.c.bf16 %v249, %v249
      %v330 = vpack.c.bf16 %v250, %v250
      %v331 = vpack.c.bf16 %v251, %v251
      %v332 = vpack.c.bf16 %v252, %v252
      %v333 = vpack.c.bf16 %v253, %v253
      %v334 = vpack.c.bf16 %v254, %v254
      %v335 = vpack.c.bf16 %v255, %v255
      %v336 = vpack.c.bf16 %v256, %v256
      %v337 = vpack.c.bf16 %v257, %v257
      %v338 = vpack.c.bf16 %v258, %v258
      %v339 = vpack.c.bf16 %v259, %v259
      %v340 = vpack.c.bf16 %v260, %v260
      %v341 = vpack.c.bf16 %v261, %v261
      %v342 = vpack.c.bf16 %v262, %v262
      %v343 = vpack.c.bf16 %v263, %v263
      %v344 = vpack.c.bf16 %v264, %v264
      %v345 = vpack.c.bf16 %v265, %v265
      %v346 = vpack.c.bf16 %v266, %v266
      %v347 = vpack.c.bf16 %v267, %v267
      %v348 = vpack.c.bf16 %v268, %v268
      %v349 = vpack.c.bf16 %v269, %v269
      %v350 = vpack.c.bf16 %v270, %v270
      %v351 = vpack.c.bf16 %v271, %v271
      %v352 = vpack.c.bf16 %v272, %v272
      %v353 = vpack.c.bf16 %v273, %v273
      %v354 = vpack.c.bf16 %v274, %v274
      %v355 = vpack.c.bf16 %v275, %v275
      %v356 = vpack.c.bf16 %v276, %v276
      %v357 = vpack.c.bf16 %v277, %v277
      %v358 = vpack.c.bf16 %v278, %v278
      %v359 = vpack.c.bf16 %v279, %v279
      %v360 = vpack.c.bf16 %v280, %v280
      %v361 = vpack.c.bf16 %v281, %v281
      %v362 = vpack.c.bf16 %v282, %v282
      %v363 = vpack.c.bf16 %v283, %v283
      %v364 = vpack.c.bf16 %v284, %v284
      %v365 = vpack.c.bf16 %v285, %v285
      %v366 = vpack.c.bf16 %v286, %v286
      %v367 = vpack.c.bf16 %v287, %v287
      %v368 = vpack.c.bf16 %v288, %v288
      %v369 = vpack.c.bf16 %v289, %v289
      %v370 = vpack.c.bf16 %v290, %v290
      %v371 = vpack.c.bf16 %v291, %v291
      %v372 = vpack.c.bf16 %v292, %v292
      %v373 = vpack.c.bf16 %v293, %v293
      %v374 = vpack.c.bf16 %v294, %v294
      %v375 = vpack.c.bf16 %v295, %v295
      %v376 = vpack.c.bf16 %v296, %v296
      %v377 = vpack.c.bf16 %v297, %v297
      %v378 = vpack.c.bf16 %v298, %v298
      %v379 = vpack.c.bf16 %v299, %v299
      %v380 = vpack.c.bf16 %v300, %v300
      %v381 = vpack.c.bf16 %v301, %v301
      %v382 = vpack.c.bf16 %v302, %v302
      %v383 = vpack.c.bf16 %v303, %v303
      %v384 = vpack.c.bf16 %v304, %v304
      %vm457 = vcmask 1040384
      %vm458 = vcmask 1044484
      %vm459 = vmor %vm457, %vm458
      %v460 = vrot.slane %v305, 7
      %v461 = vrot.slane %v460, 4
      %v462 = vrot.slane %v306, 7
      %v463 = vsel %vm459, %v461, %v462
      %v464 = vrot.slane %v462, 4
      %v465 = vrot.slane %v307, 7
      %v466 = vsel %vm459, %v464, %v465
      %v467 = vrot.slane %v465, 4
      %v468 = vrot.slane %v308, 7
      %v469 = vsel %vm459, %v467, %v468
      %v470 = vrot.slane %v309, 7
      %v471 = vrot.slane %v470, 4
      %v472 = vrot.slane %v310, 7
      %v473 = vsel %vm459, %v471, %v472
      %v474 = vrot.slane %v472, 4
      %v475 = vrot.slane %v311, 7
      %v476 = vsel %vm459, %v474, %v475
      %v477 = vrot.slane %v475, 4
      %v478 = vrot.slane %v312, 7
      %v479 = vsel %vm459, %v477, %v478
      %v480 = vrot.slane %v313, 7
      %v481 = vrot.slane %v480, 4
      %v482 = vrot.slane %v314, 7
      %v483 = vsel %vm459, %v481, %v482
      %v484 = vrot.slane %v482, 4
      %v485 = vrot.slane %v315, 7
      %v486 = vsel %vm459, %v484, %v485
      %v487 = vrot.slane %v485, 4
      %v488 = vrot.slane %v316, 7
      %v489 = vsel %vm459, %v487, %v488
      %v490 = vrot.slane %v317, 7
      %v491 = vrot.slane %v490, 4
      %v492 = vrot.slane %v318, 7
      %v493 = vsel %vm459, %v491, %v492
      %v494 = vrot.slane %v492, 4
      %v495 = vrot.slane %v319, 7
      %v496 = vsel %vm459, %v494, %v495
      %v497 = vrot.slane %v495, 4
      %v498 = vrot.slane %v320, 7
      %v499 = vsel %vm459, %v497, %v498
      %v500 = vrot.slane %v321, 7
      %v501 = vrot.slane %v500, 4
      %v502 = vrot.slane %v322, 7
      %v503 = vsel %vm459, %v501, %v502
      %v504 = vrot.slane %v502, 4
      %v505 = vrot.slane %v323, 7
      %v506 = vsel %vm459, %v504, %v505
      %v507 = vrot.slane %v505, 4
      %v508 = vrot.slane %v324, 7
      %v509 = vsel %vm459, %v507, %v508
      %v510 = vrot.slane %v325, 7
      %v511 = vrot.slane %v510, 4
      %v512 = vrot.slane %v326, 7
      %v513 = vsel %vm459, %v511, %v512
      %v514 = vrot.slane %v512, 4
      %v515 = vrot.slane %v327, 7
      %v516 = vsel %vm459, %v514, %v515
      %v517 = vrot.slane %v515, 4
      %v518 = vrot.slane %v328, 7
      %v519 = vsel %vm459, %v517, %v518
      %v520 = vrot.slane %v329, 7
      %v521 = vrot.slane %v520, 4
      %v522 = vrot.slane %v330, 7
      %v523 = vsel %vm459, %v521, %v522
      %v524 = vrot.slane %v522, 4
      %v525 = vrot.slane %v331, 7
      %v526 = vsel %vm459, %v524, %v525
      %v527 = vrot.slane %v525, 4
      %v528 = vrot.slane %v332, 7
      %v529 = vsel %vm459, %v527, %v528
      %v530 = vrot.slane %v333, 7
      %v531 = vrot.slane %v530, 4
      %v532 = vrot.slane %v334, 7
      %v533 = vsel %vm459, %v531, %v532
      %v534 = vrot.slane %v532, 4
      %v535 = vrot.slane %v335, 7
      %v536 = vsel %vm459, %v534, %v535
      %v537 = vrot.slane %v535, 4
      %v538 = vrot.slane %v336, 7
      %v539 = vsel %vm459, %v537, %v538
      %v540 = vrot.slane %v337, 7
      %v541 = vrot.slane %v540, 4
      %v542 = vrot.slane %v338, 7
      %v543 = vsel %vm459, %v541, %v542
      %v544 = vrot.slane %v542, 4
      %v545 = vrot.slane %v339, 7
      %v546 = vsel %vm459, %v544, %v545
      %v547 = vrot.slane %v545, 4
      %v548 = vrot.slane %v340, 7
      %v549 = vsel %vm459, %v547, %v548
      %v550 = vrot.slane %v341, 7
      %v551 = vrot.slane %v550, 4
      %v552 = vrot.slane %v342, 7
      %v553 = vsel %vm459, %v551, %v552
      %v554 = vrot.slane %v552, 4
      %v555 = vrot.slane %v343, 7
      %v556 = vsel %vm459, %v554, %v555
      %v557 = vrot.slane %v555, 4
      %v558 = vrot.slane %v344, 7
      %v559 = vsel %vm459, %v557, %v558
      %v560 = vrot.slane %v345, 7
      %v561 = vrot.slane %v560, 4
      %v562 = vrot.slane %v346, 7
      %v563 = vsel %vm459, %v561, %v562
      %v564 = vrot.slane %v562, 4
      %v565 = vrot.slane %v347, 7
      %v566 = vsel %vm459, %v564, %v565
      %v567 = vrot.slane %v565, 4
      %v568 = vrot.slane %v348, 7
      %v569 = vsel %vm459, %v567, %v568
      %v570 = vrot.slane %v349, 7
      %v571 = vrot.slane %v570, 4
      %v572 = vrot.slane %v350, 7
      %v573 = vsel %vm459, %v571, %v572
      %v574 = vrot.slane %v572, 4
      %v575 = vrot.slane %v351, 7
      %v576 = vsel %vm459, %v574, %v575
      %v577 = vrot.slane %v575, 4
      %v578 = vrot.slane %v352, 7
      %v579 = vsel %vm459, %v577, %v578
      %v580 = vrot.slane %v353, 7
      %v581 = vrot.slane %v580, 4
      %v582 = vrot.slane %v354, 7
      %v583 = vsel %vm459, %v581, %v582
      %v584 = vrot.slane %v582, 4
      %v585 = vrot.slane %v355, 7
      %v586 = vsel %vm459, %v584, %v585
      %v587 = vrot.slane %v585, 4
      %v588 = vrot.slane %v356, 7
      %v589 = vsel %vm459, %v587, %v588
      %v590 = vrot.slane %v357, 7
      %v591 = vrot.slane %v590, 4
      %v592 = vrot.slane %v358, 7
      %v593 = vsel %vm459, %v591, %v592
      %v594 = vrot.slane %v592, 4
      %v595 = vrot.slane %v359, 7
      %v596 = vsel %vm459, %v594, %v595
      %v597 = vrot.slane %v595, 4
      %v598 = vrot.slane %v360, 7
      %v599 = vsel %vm459, %v597, %v598
      %v600 = vrot.slane %v361, 7
      %v601 = vrot.slane %v600, 4
      %v602 = vrot.slane %v362, 7
      %v603 = vsel %vm459, %v601, %v602
      %v604 = vrot.slane %v602, 4
      %v605 = vrot.slane %v363, 7
      %v606 = vsel %vm459, %v604, %v605
      %v607 = vrot.slane %v605, 4
      %v608 = vrot.slane %v364, 7
      %v609 = vsel %vm459, %v607, %v608
      %v610 = vrot.slane %v365, 7
      %v611 = vrot.slane %v610, 4
      %v612 = vrot.slane %v366, 7
      %v613 = vsel %vm459, %v611, %v612
      %v614 = vrot.slane %v612, 4
      %v615 = vrot.slane %v367, 7
      %v616 = vsel %vm459, %v614, %v615
      %v617 = vrot.slane %v615, 4
      %v618 = vrot.slane %v368, 7
      %v619 = vsel %vm459, %v617, %v618
      %v620 = vrot.slane %v369, 7
      %v621 = vrot.slane %v620, 4
      %v622 = vrot.slane %v370, 7
      %v623 = vsel %vm459, %v621, %v622
      %v624 = vrot.slane %v622, 4
      %v625 = vrot.slane %v371, 7
      %v626 = vsel %vm459, %v624, %v625
      %v627 = vrot.slane %v625, 4
      %v628 = vrot.slane %v372, 7
      %v629 = vsel %vm459, %v627, %v628
      %v630 = vrot.slane %v373, 7
      %v631 = vrot.slane %v630, 4
      %v632 = vrot.slane %v374, 7
      %v633 = vsel %vm459, %v631, %v632
      %v634 = vrot.slane %v632, 4
      %v635 = vrot.slane %v375, 7
      %v636 = vsel %vm459, %v634, %v635
      %v637 = vrot.slane %v635, 4
      %v638 = vrot.slane %v376, 7
      %v639 = vsel %vm459, %v637, %v638
      %v640 = vld [vmem:[%s1] sm:$0xf]
      %v641 = vld [vmem:[%s1 + $0x4] sm:$0xf]
      %v642 = vld [vmem:[%s1 + $0x8] sm:$0xf]
      %v643 = vld [vmem:[%s1 + $0xc] sm:$0xf]
      %v644 = vld [vmem:[%s1 + $0x10] sm:$0xf]
      %v645 = vld [vmem:[%s1 + $0x14] sm:$0xf]
      %v646 = vld [vmem:[%s1 + $0x18] sm:$0xf]
      %v647 = vld [vmem:[%s1 + $0x1c] sm:$0xf]
      %v648 = vld [vmem:[%s1 + $0x20] sm:$0xf]
      %v649 = vld [vmem:[%s1 + $0x24] sm:$0xf]
      %v650 = vld [vmem:[%s1 + $0x28] sm:$0xf]
      %v651 = vld [vmem:[%s1 + $0x2c] sm:$0xf]
      %v652 = vld [vmem:[%s1 + $0x30] sm:$0xf]
      %v653 = vld [vmem:[%s1 + $0x34] sm:$0xf]
      %v654 = vld [vmem:[%s1 + $0x38] sm:$0xf]
      %v655 = vld [vmem:[%s1 + $0x3c] sm:$0xf]
      %v660 = vrot.slane %v377, 7
      %v661 = vrot.slane %v660, 4
      %v662 = vrot.slane %v378, 7
      %v663 = vsel %vm459, %v661, %v662
      %v664 = vrot.slane %v662, 4
      %v665 = vrot.slane %v379, 7
      %v666 = vsel %vm459, %v664, %v665
      %v667 = vrot.slane %v665, 4
      %v668 = vrot.slane %v380, 7
      %v669 = vsel %vm459, %v667, %v668
      %s670 = scalar_lea.vmem %s1, 64
      %v671 = vld [vmem:[%s670] sm:$0xf]
      %v672 = vld [vmem:[%s670 + $0x4] sm:$0xf]
      %v673 = vld [vmem:[%s670 + $0x8] sm:$0xf]
      %v674 = vld [vmem:[%s670 + $0xc] sm:$0xf]
      %v675 = vld [vmem:[%s670 + $0x10] sm:$0xf]
      %v676 = vld [vmem:[%s670 + $0x14] sm:$0xf]
      %v677 = vld [vmem:[%s670 + $0x18] sm:$0xf]
      %v678 = vld [vmem:[%s670 + $0x1c] sm:$0xf]
      %v679 = vld [vmem:[%s670 + $0x20] sm:$0xf]
      %v680 = vld [vmem:[%s670 + $0x24] sm:$0xf]
      %v681 = vld [vmem:[%s670 + $0x28] sm:$0xf]
      %v682 = vld [vmem:[%s670 + $0x2c] sm:$0xf]
      %v683 = vld [vmem:[%s670 + $0x30] sm:$0xf]
      %v684 = vld [vmem:[%s670 + $0x34] sm:$0xf]
      %v685 = vld [vmem:[%s670 + $0x38] sm:$0xf]
      %v686 = vld [vmem:[%s670 + $0x3c] sm:$0xf]
      %v687 = vunpack.c.l.b16 %v473
      %v688 = vunpack.c.l.b16 %v476
      %v689 = vunpack.c.l.b16 %v479
      %v690 = vunpack.c.l.b16 %v483
      %v691 = vunpack.c.l.b16 %v486
      %v692 = vunpack.c.l.b16 %v489
      %v693 = vunpack.c.l.b16 %v493
      %v694 = vunpack.c.l.b16 %v496
      %v695 = vunpack.c.l.b16 %v499
      %v696 = vunpack.c.l.b16 %v503
      %v697 = vunpack.c.l.b16 %v506
      %v698 = vunpack.c.l.b16 %v509
      %v699 = vunpack.c.l.b16 %v513
      %v700 = vunpack.c.l.b16 %v516
      %v701 = vunpack.c.l.b16 %v519
      %v702 = vunpack.c.l.b16 %v523
      %v703 = vunpack.c.l.b16 %v526
      %v704 = vunpack.c.l.b16 %v529
      %v705 = vunpack.c.l.b16 %v533
      %v706 = vunpack.c.l.b16 %v536
      %v707 = vunpack.c.l.b16 %v539
      %v708 = vunpack.c.l.b16 %v543
      %v709 = vunpack.c.l.b16 %v546
      %v710 = vunpack.c.l.b16 %v549
      %v711 = vunpack.c.l.b16 %v553
      %v712 = vunpack.c.l.b16 %v556
      %v713 = vunpack.c.l.b16 %v559
      %v714 = vunpack.c.l.b16 %v563
      %v715 = vunpack.c.l.b16 %v566
      %v716 = vunpack.c.l.b16 %v569
      %v717 = vunpack.c.l.b16 %v573
      %v718 = vunpack.c.l.b16 %v576
      %v719 = vunpack.c.l.b16 %v579
      %v720 = vunpack.c.l.b16 %v583
      %v721 = vunpack.c.l.b16 %v586
      %v722 = vunpack.c.l.b16 %v589
      %v723 = vunpack.c.l.b16 %v593
      %v724 = vunpack.c.l.b16 %v596
      %v725 = vunpack.c.l.b16 %v599
      %v726 = vunpack.c.l.b16 %v603
      %v727 = vunpack.c.l.b16 %v606
      %v728 = vunpack.c.l.b16 %v609
      %v729 = vunpack.c.l.b16 %v613
      %v730 = vunpack.c.l.b16 %v616
      %v731 = vunpack.c.l.b16 %v619
      %v732 = vunpack.c.l.b16 %v623
      %v733 = vunpack.c.l.b16 %v626
      %v734 = vunpack.c.l.b16 %v629
      %v735 = vunpack.c.l.b16 %v633
      %v736 = vunpack.c.l.b16 %v636
      %v737 = vunpack.c.l.b16 %v639
      %v738 = vunpack.c.l.b16 %v663
      %v739 = vunpack.c.l.b16 %v666
      %v740 = vunpack.c.l.b16 %v669
      %v741 = vpack.c.b16 %v688, %v687
      %v742 = vpack.c.b16 %v690, %v689
      %v743 = vpack.c.b16 %v692, %v691
      %v744 = vpack.c.b16 %v694, %v693
      %v745 = vpack.c.b16 %v696, %v695
      %v746 = vpack.c.b16 %v698, %v697
      %v747 = vpack.c.b16 %v700, %v699
      %v748 = vpack.c.b16 %v702, %v701
      %v749 = vpack.c.b16 %v704, %v703
      %v750 = vpack.c.b16 %v706, %v705
      %v751 = vpack.c.b16 %v708, %v707
      %v752 = vpack.c.b16 %v710, %v709
      %v753 = vpack.c.b16 %v712, %v711
      %v754 = vpack.c.b16 %v714, %v713
      %v755 = vpack.c.b16 %v716, %v715
      %v756 = vpack.c.b16 %v718, %v717
      %v757 = vpack.c.b16 %v720, %v719
      %v758 = vpack.c.b16 %v722, %v721
      %v759 = vpack.c.b16 %v724, %v723
      %v760 = vpack.c.b16 %v726, %v725
      %v761 = vpack.c.b16 %v728, %v727
      %v762 = vpack.c.b16 %v730, %v729
      %v763 = vpack.c.b16 %v732, %v731
      %v764 = vpack.c.b16 %v734, %v733
      %v765 = vpack.c.b16 %v736, %v735
      %v766 = vpack.c.b16 %v738, %v737
      %v767 = vpack.c.b16 %v740, %v739
      %v811 = vunpack.c.l.b16 %v671
      %v812 = vunpack.c.l.b16 %v672
      %v813 = vunpack.c.l.b16 %v673
      %v814 = vunpack.c.l.b16 %v674
      %v815 = vunpack.c.l.b16 %v675
      %v816 = vunpack.c.l.b16 %v676
      %v817 = vunpack.c.l.b16 %v677
      %v818 = vunpack.c.l.b16 %v678
      %v819 = vunpack.c.l.b16 %v679
      %v820 = vunpack.c.l.b16 %v680
      %v821 = vunpack.c.l.b16 %v681
      %v822 = vunpack.c.l.b16 %v682
      %v823 = vunpack.c.l.b16 %v683
      %v824 = vunpack.c.l.b16 %v684
      %v825 = vunpack.c.l.b16 %v685
      %v826 = vunpack.c.l.b16 %v686
      %v827 = vpack.c.b16 %v812, %v811
      %v828 = vpack.c.b16 %v814, %v813
      %v829 = vpack.c.b16 %v816, %v815
      %v830 = vpack.c.b16 %v818, %v817
      %v831 = vpack.c.b16 %v820, %v819
      %v832 = vpack.c.b16 %v822, %v821
      %v833 = vpack.c.b16 %v824, %v823
      %v834 = vpack.c.b16 %v826, %v825
      %843 = vmatpush.bf16.msra.mxu0 %v834
      %844 = vmatpush.bf16.msra.mxu0 %v833
      %845 = vmatpush.bf16.msra.mxu0 %v832
      %846 = vmatpush.bf16.msra.mxu0 %v831
      %847 = vmatpush.bf16.msra.mxu0 %v830
      %848 = vmatpush.bf16.msra.mxu0 %v829
      %849 = vmatpush.bf16.msra.mxu0 %v828
      %850 = vmatpush.bf16.msra.mxu0 %v827
      %851 = vmatmul.bf16.gmra.mxu0 %v741
      %v852 = vpop.f32.mrf.mxu0
      %v853 = vadd.f32 0.0, %v852
      %v854 = vpop.f32.mrf.mxu0
      %v855 = vadd.f32 0.0, %v854
      %856 = vmatmul.bf16.gmra.mxu0 %v742
      %v857 = vpop.f32.mrf.mxu0
      %v858 = vadd.f32 0.0, %v857
      %v859 = vpop.f32.mrf.mxu0
      %v860 = vadd.f32 0.0, %v859
      %861 = vmatmul.bf16.gmra.mxu0 %v743
      %v862 = vpop.f32.mrf.mxu0
      %v863 = vadd.f32 0.0, %v862
      %v864 = vpop.f32.mrf.mxu0
      %v865 = vadd.f32 0.0, %v864
      %866 = vmatmul.bf16.gmra.mxu0 %v744
      %v867 = vpop.f32.mrf.mxu0
      %v868 = vadd.f32 0.0, %v867
      %v869 = vpop.f32.mrf.mxu0
      %v870 = vadd.f32 0.0, %v869
      %871 = vmatmul.bf16.gmra.mxu0 %v745
      %v872 = vpop.f32.mrf.mxu0
      %v873 = vadd.f32 0.0, %v872
      %v874 = vpop.f32.mrf.mxu0
      %v875 = vadd.f32 0.0, %v874
      %876 = vmatmul.bf16.gmra.mxu0 %v746
      %v877 = vpop.f32.mrf.mxu0
      %v878 = vadd.f32 0.0, %v877
      %v879 = vpop.f32.mrf.mxu0
      %v880 = vadd.f32 0.0, %v879
      %881 = vmatmul.bf16.gmra.mxu0 %v747
      %v882 = vpop.f32.mrf.mxu0
      %v883 = vadd.f32 0.0, %v882
      %v884 = vpop.f32.mrf.mxu0
      %v885 = vadd.f32 0.0, %v884
      %886 = vmatmul.bf16.gmra.mxu0 %v748
      %v887 = vpop.f32.mrf.mxu0
      %v888 = vadd.f32 0.0, %v887
      %v889 = vpop.f32.mrf.mxu0
      %v890 = vadd.f32 0.0, %v889
      %891 = vmatmul.bf16.gmra.mxu0 %v749
      %v892 = vpop.f32.mrf.mxu0
      %v893 = vadd.f32 0.0, %v892
      %v894 = vpop.f32.mrf.mxu0
      %v895 = vadd.f32 0.0, %v894
      %896 = vmatmul.bf16.gmra.mxu0 %v750
      %v897 = vpop.f32.mrf.mxu0
      %v898 = vadd.f32 0.0, %v897
      %v899 = vpop.f32.mrf.mxu0
      %v900 = vadd.f32 0.0, %v899
      %901 = vmatmul.bf16.gmra.mxu0 %v751
      %v902 = vpop.f32.mrf.mxu0
      %v903 = vadd.f32 0.0, %v902
      %v904 = vpop.f32.mrf.mxu0
      %v905 = vadd.f32 0.0, %v904
      %906 = vmatmul.bf16.gmra.mxu0 %v752
      %v907 = vpop.f32.mrf.mxu0
      %v908 = vadd.f32 0.0, %v907
      %v909 = vpop.f32.mrf.mxu0
      %v910 = vadd.f32 0.0, %v909
      %911 = vmatmul.bf16.gmra.mxu0 %v753
      %v912 = vpop.f32.mrf.mxu0
      %v913 = vadd.f32 0.0, %v912
      %v914 = vpop.f32.mrf.mxu0
      %v915 = vadd.f32 0.0, %v914
      %916 = vmatmul.bf16.gmra.mxu0 %v754
      %v917 = vpop.f32.mrf.mxu0
      %v918 = vadd.f32 0.0, %v917
      %v919 = vpop.f32.mrf.mxu0
      %v920 = vadd.f32 0.0, %v919
      %921 = vmatmul.bf16.gmra.mxu0 %v755
      %v922 = vpop.f32.mrf.mxu0
      %v923 = vadd.f32 0.0, %v922
      %v924 = vpop.f32.mrf.mxu0
      %v925 = vadd.f32 0.0, %v924
      %926 = vmatmul.bf16.gmra.mxu0 %v756
      %v927 = vpop.f32.mrf.mxu0
      %v928 = vadd.f32 0.0, %v927
      %v929 = vpop.f32.mrf.mxu0
      %v930 = vadd.f32 0.0, %v929
      %931 = vmatmul.bf16.gmra.mxu0 %v757
      %v932 = vpop.f32.mrf.mxu0
      %v933 = vadd.f32 0.0, %v932
      %v934 = vpop.f32.mrf.mxu0
      %v935 = vadd.f32 0.0, %v934
      %936 = vmatmul.bf16.gmra.mxu0 %v758
      %v937 = vpop.f32.mrf.mxu0
      %v938 = vadd.f32 0.0, %v937
      %v939 = vpop.f32.mrf.mxu0
      %v940 = vadd.f32 0.0, %v939
      %941 = vmatmul.bf16.gmra.mxu0 %v759
      %v942 = vpop.f32.mrf.mxu0
      %v943 = vadd.f32 0.0, %v942
      %v944 = vpop.f32.mrf.mxu0
      %v945 = vadd.f32 0.0, %v944
      %946 = vmatmul.bf16.gmra.mxu0 %v760
      %v947 = vpop.f32.mrf.mxu0
      %v948 = vadd.f32 0.0, %v947
      %v949 = vpop.f32.mrf.mxu0
      %v950 = vadd.f32 0.0, %v949
      %951 = vmatmul.bf16.gmra.mxu0 %v761
      %v952 = vpop.f32.mrf.mxu0
      %v953 = vadd.f32 0.0, %v952
      %v954 = vpop.f32.mrf.mxu0
      %v955 = vadd.f32 0.0, %v954
      %956 = vmatmul.bf16.gmra.mxu0 %v762
      %v957 = vpop.f32.mrf.mxu0
      %v958 = vadd.f32 0.0, %v957
      %v959 = vpop.f32.mrf.mxu0
      %v960 = vadd.f32 0.0, %v959
      %961 = vmatmul.bf16.gmra.mxu0 %v763
      %v962 = vpop.f32.mrf.mxu0
      %v963 = vadd.f32 0.0, %v962
      %v964 = vpop.f32.mrf.mxu0
      %v965 = vadd.f32 0.0, %v964
      %966 = vmatmul.bf16.gmra.mxu0 %v764
      %v967 = vpop.f32.mrf.mxu0
      %v968 = vadd.f32 0.0, %v967
      %v969 = vpop.f32.mrf.mxu0
      %v970 = vadd.f32 0.0, %v969
      %971 = vmatmul.bf16.gmra.mxu0 %v765
      %v972 = vpop.f32.mrf.mxu0
      %v973 = vadd.f32 0.0, %v972
      %v974 = vpop.f32.mrf.mxu0
      %v975 = vadd.f32 0.0, %v974
      %976 = vmatmul.bf16.gmra.mxu0 %v766
      %v977 = vpop.f32.mrf.mxu0
      %v978 = vadd.f32 0.0, %v977
      %v979 = vpop.f32.mrf.mxu0
      %v980 = vadd.f32 0.0, %v979
      %981 = vmatmul.bf16.gmra.mxu0 %v767
      %v982 = vpop.f32.mrf.mxu0
      %v983 = vadd.f32 0.0, %v982
      %v984 = vpop.f32.mrf.mxu0
      %v985 = vadd.f32 0.0, %v984
      %986 = vdwg.mxu0
      %v987 = vunpack.c.l.b16 %v463
      %v988 = vunpack.c.l.b16 %v466
      %v989 = vunpack.c.l.b16 %v469
      %v990 = vpack.c.b16 %v988, %v987
      %v991 = vpack.c.b16 %v687, %v989
      %v992 = vpack.c.b16 %v689, %v688
      %v993 = vpack.c.b16 %v691, %v690
      %v994 = vpack.c.b16 %v693, %v692
      %v995 = vpack.c.b16 %v695, %v694
      %v996 = vpack.c.b16 %v697, %v696
      %v997 = vpack.c.b16 %v699, %v698
      %v998 = vpack.c.b16 %v701, %v700
      %v999 = vpack.c.b16 %v703, %v702
      %v1000 = vpack.c.b16 %v705, %v704
      %v1001 = vpack.c.b16 %v707, %v706
      %v1002 = vpack.c.b16 %v709, %v708
      %v1003 = vpack.c.b16 %v711, %v710
      %v1004 = vpack.c.b16 %v713, %v712
      %v1005 = vpack.c.b16 %v715, %v714
      %v1006 = vpack.c.b16 %v717, %v716
      %v1007 = vpack.c.b16 %v719, %v718
      %v1008 = vpack.c.b16 %v721, %v720
      %v1009 = vpack.c.b16 %v723, %v722
      %v1010 = vpack.c.b16 %v725, %v724
      %v1011 = vpack.c.b16 %v727, %v726
      %v1012 = vpack.c.b16 %v729, %v728
      %v1013 = vpack.c.b16 %v731, %v730
      %v1014 = vpack.c.b16 %v733, %v732
      %v1015 = vpack.c.b16 %v735, %v734
      %v1016 = vpack.c.b16 %v737, %v736
      %v1060 = vunpack.c.l.b16 %v640
      %v1061 = vunpack.c.l.b16 %v641
      %v1062 = vunpack.c.l.b16 %v642
      %v1063 = vunpack.c.l.b16 %v643
      %v1064 = vunpack.c.l.b16 %v644
      %v1065 = vunpack.c.l.b16 %v645
      %v1066 = vunpack.c.l.b16 %v646
      %v1067 = vunpack.c.l.b16 %v647
      %v1068 = vunpack.c.l.b16 %v648
      %v1069 = vunpack.c.l.b16 %v649
      %v1070 = vunpack.c.l.b16 %v650
      %v1071 = vunpack.c.l.b16 %v651
      %v1072 = vunpack.c.l.b16 %v652
      %v1073 = vunpack.c.l.b16 %v653
      %v1074 = vunpack.c.l.b16 %v654
      %v1075 = vunpack.c.l.b16 %v655
      %v1076 = vpack.c.b16 %v1061, %v1060
      %v1077 = vpack.c.b16 %v1063, %v1062
      %v1078 = vpack.c.b16 %v1065, %v1064
      %v1079 = vpack.c.b16 %v1067, %v1066
      %v1080 = vpack.c.b16 %v1069, %v1068
      %v1081 = vpack.c.b16 %v1071, %v1070
      %v1082 = vpack.c.b16 %v1073, %v1072
      %v1083 = vpack.c.b16 %v1075, %v1074
      %1092 = vmatpush.bf16.msra.mxu0 %v1083
      %1093 = vmatpush.bf16.msra.mxu0 %v1082
      %1094 = vmatpush.bf16.msra.mxu0 %v1081
      %1095 = vmatpush.bf16.msra.mxu0 %v1080
      %1096 = vmatpush.bf16.msra.mxu0 %v1079
      %1097 = vmatpush.bf16.msra.mxu0 %v1078
      %1098 = vmatpush.bf16.msra.mxu0 %v1077
      %1099 = vmatpush.bf16.msra.mxu0 %v1076
      %1100 = vmatmul.bf16.gmra.mxu0 %v990
      %v1101 = vpop.f32.mrf.mxu0
      %v1102 = vadd.f32 %v853, %v1101
      %v1103 = vpop.f32.mrf.mxu0
      %v1104 = vadd.f32 %v855, %v1103
      %1105 = vmatmul.bf16.gmra.mxu0 %v991
      %v1106 = vpop.f32.mrf.mxu0
      %v1107 = vadd.f32 %v858, %v1106
      %v1108 = vpop.f32.mrf.mxu0
      %v1109 = vadd.f32 %v860, %v1108
      %1110 = vmatmul.bf16.gmra.mxu0 %v992
      %v1111 = vpop.f32.mrf.mxu0
      %v1112 = vadd.f32 %v863, %v1111
      %v1113 = vpop.f32.mrf.mxu0
      %v1114 = vadd.f32 %v865, %v1113
      %1115 = vmatmul.bf16.gmra.mxu0 %v993
      %v1116 = vpop.f32.mrf.mxu0
      %v1117 = vadd.f32 %v868, %v1116
      %v1118 = vpop.f32.mrf.mxu0
      %v1119 = vadd.f32 %v870, %v1118
      %1120 = vmatmul.bf16.gmra.mxu0 %v994
      %v1121 = vpop.f32.mrf.mxu0
      %v1122 = vadd.f32 %v873, %v1121
      %v1123 = vpop.f32.mrf.mxu0
      %v1124 = vadd.f32 %v875, %v1123
      %1125 = vmatmul.bf16.gmra.mxu0 %v995
      %v1126 = vpop.f32.mrf.mxu0
      %v1127 = vadd.f32 %v878, %v1126
      %v1128 = vpop.f32.mrf.mxu0
      %v1129 = vadd.f32 %v880, %v1128
      %1130 = vmatmul.bf16.gmra.mxu0 %v996
      %v1131 = vpop.f32.mrf.mxu0
      %v1132 = vadd.f32 %v883, %v1131
      %v1133 = vpop.f32.mrf.mxu0
      %v1134 = vadd.f32 %v885, %v1133
      %1135 = vmatmul.bf16.gmra.mxu0 %v997
      %v1136 = vpop.f32.mrf.mxu0
      %v1137 = vadd.f32 %v888, %v1136
      %v1138 = vpop.f32.mrf.mxu0
      %v1139 = vadd.f32 %v890, %v1138
      %1140 = vmatmul.bf16.gmra.mxu0 %v998
      %v1141 = vpop.f32.mrf.mxu0
      %v1142 = vadd.f32 %v893, %v1141
      %v1143 = vpop.f32.mrf.mxu0
      %v1144 = vadd.f32 %v895, %v1143
      %1145 = vmatmul.bf16.gmra.mxu0 %v999
      %v1146 = vpop.f32.mrf.mxu0
      %v1147 = vadd.f32 %v898, %v1146
      %v1148 = vpop.f32.mrf.mxu0
      %v1149 = vadd.f32 %v900, %v1148
      %1150 = vmatmul.bf16.gmra.mxu0 %v1000
      %v1151 = vpop.f32.mrf.mxu0
      %v1152 = vadd.f32 %v903, %v1151
      %v1153 = vpop.f32.mrf.mxu0
      %v1154 = vadd.f32 %v905, %v1153
      %1155 = vmatmul.bf16.gmra.mxu0 %v1001
      %v1156 = vpop.f32.mrf.mxu0
      %v1157 = vadd.f32 %v908, %v1156
      %v1158 = vpop.f32.mrf.mxu0
      %v1159 = vadd.f32 %v910, %v1158
      %1160 = vmatmul.bf16.gmra.mxu0 %v1002
      %v1161 = vpop.f32.mrf.mxu0
      %v1162 = vadd.f32 %v913, %v1161
      %v1163 = vpop.f32.mrf.mxu0
      %v1164 = vadd.f32 %v915, %v1163
      %1165 = vmatmul.bf16.gmra.mxu0 %v1003
      %v1166 = vpop.f32.mrf.mxu0
      %v1167 = vadd.f32 %v918, %v1166
      %v1168 = vpop.f32.mrf.mxu0
      %v1169 = vadd.f32 %v920, %v1168
      %1170 = vmatmul.bf16.gmra.mxu0 %v1004
      %v1171 = vpop.f32.mrf.mxu0
      %v1172 = vadd.f32 %v923, %v1171
      %v1173 = vpop.f32.mrf.mxu0
      %v1174 = vadd.f32 %v925, %v1173
      %1175 = vmatmul.bf16.gmra.mxu0 %v1005
      %v1176 = vpop.f32.mrf.mxu0
      %v1177 = vadd.f32 %v928, %v1176
      %v1178 = vpop.f32.mrf.mxu0
      %v1179 = vadd.f32 %v930, %v1178
      %1180 = vmatmul.bf16.gmra.mxu0 %v1006
      %v1181 = vpop.f32.mrf.mxu0
      %v1182 = vadd.f32 %v933, %v1181
      %v1183 = vpop.f32.mrf.mxu0
      %v1184 = vadd.f32 %v935, %v1183
      %1185 = vmatmul.bf16.gmra.mxu0 %v1007
      %v1186 = vpop.f32.mrf.mxu0
      %v1187 = vadd.f32 %v938, %v1186
      %v1188 = vpop.f32.mrf.mxu0
      %v1189 = vadd.f32 %v940, %v1188
      %1190 = vmatmul.bf16.gmra.mxu0 %v1008
      %v1191 = vpop.f32.mrf.mxu0
      %v1192 = vadd.f32 %v943, %v1191
      %v1193 = vpop.f32.mrf.mxu0
      %v1194 = vadd.f32 %v945, %v1193
      %1195 = vmatmul.bf16.gmra.mxu0 %v1009
      %v1196 = vpop.f32.mrf.mxu0
      %v1197 = vadd.f32 %v948, %v1196
      %v1198 = vpop.f32.mrf.mxu0
      %v1199 = vadd.f32 %v950, %v1198
      %1200 = vmatmul.bf16.gmra.mxu0 %v1010
      %v1201 = vpop.f32.mrf.mxu0
      %v1202 = vadd.f32 %v953, %v1201
      %v1203 = vpop.f32.mrf.mxu0
      %v1204 = vadd.f32 %v955, %v1203
      %1205 = vmatmul.bf16.gmra.mxu0 %v1011
      %v1206 = vpop.f32.mrf.mxu0
      %v1207 = vadd.f32 %v958, %v1206
      %v1208 = vpop.f32.mrf.mxu0
      %v1209 = vadd.f32 %v960, %v1208
      %1210 = vmatmul.bf16.gmra.mxu0 %v1012
      %v1211 = vpop.f32.mrf.mxu0
      %v1212 = vadd.f32 %v963, %v1211
      %v1213 = vpop.f32.mrf.mxu0
      %v1214 = vadd.f32 %v965, %v1213
      %1215 = vmatmul.bf16.gmra.mxu0 %v1013
      %v1216 = vpop.f32.mrf.mxu0
      %v1217 = vadd.f32 %v968, %v1216
      %v1218 = vpop.f32.mrf.mxu0
      %v1219 = vadd.f32 %v970, %v1218
      %1220 = vmatmul.bf16.gmra.mxu0 %v1014
      %v1221 = vpop.f32.mrf.mxu0
      %v1222 = vadd.f32 %v973, %v1221
      %v1223 = vpop.f32.mrf.mxu0
      %v1224 = vadd.f32 %v975, %v1223
      %1225 = vmatmul.bf16.gmra.mxu0 %v1015
      %v1226 = vpop.f32.mrf.mxu0
      %v1227 = vadd.f32 %v978, %v1226
      %v1228 = vpop.f32.mrf.mxu0
      %v1229 = vadd.f32 %v980, %v1228
      %1230 = vmatmul.bf16.gmra.mxu0 %v1016
      %v1231 = vpop.f32.mrf.mxu0
      %v1232 = vadd.f32 %v983, %v1231
      %v1233 = vpop.f32.mrf.mxu0
      %v1234 = vadd.f32 %v985, %v1233
      %1235 = vdwg.mxu0
      %v1240 = vrot.slane %v381, 7
      %v1241 = vrot.slane %v1240, 4
      %v1242 = vrot.slane %v382, 7
      %v1243 = vsel %vm459, %v1241, %v1242
      %v1244 = vrot.slane %v1242, 4
      %v1245 = vrot.slane %v383, 7
      %v1246 = vsel %vm459, %v1244, %v1245
      %v1247 = vrot.slane %v1245, 4
      %v1248 = vrot.slane %v384, 7
      %v1249 = vsel %vm459, %v1247, %v1248
      %s1250 = scalar_lea.vmem %s1, 128
      %v1251 = vld [vmem:[%s1250] sm:$0xf]
      %v1252 = vld [vmem:[%s1250 + $0x4] sm:$0xf]
      %v1253 = vld [vmem:[%s1250 + $0x8] sm:$0xf]
      %v1254 = vld [vmem:[%s1250 + $0xc] sm:$0xf]
      %v1255 = vld [vmem:[%s1250 + $0x10] sm:$0xf]
      %v1256 = vld [vmem:[%s1250 + $0x14] sm:$0xf]
      %v1257 = vld [vmem:[%s1250 + $0x18] sm:$0xf]
      %v1258 = vld [vmem:[%s1250 + $0x1c] sm:$0xf]
      %v1259 = vld [vmem:[%s1250 + $0x20] sm:$0xf]
      %v1260 = vld [vmem:[%s1250 + $0x24] sm:$0xf]
      %v1261 = vld [vmem:[%s1250 + $0x28] sm:$0xf]
      %v1262 = vld [vmem:[%s1250 + $0x2c] sm:$0xf]
      %v1263 = vld [vmem:[%s1250 + $0x30] sm:$0xf]
      %v1264 = vld [vmem:[%s1250 + $0x34] sm:$0xf]
      %v1265 = vld [vmem:[%s1250 + $0x38] sm:$0xf]
      %v1266 = vld [vmem:[%s1250 + $0x3c] sm:$0xf]
      %v1267 = vunpack.c.l.b16 %v1243
      %v1268 = vunpack.c.l.b16 %v1246
      %v1269 = vunpack.c.l.b16 %v1249
      %v1270 = vpack.c.b16 %v739, %v738
      %v1271 = vpack.c.b16 %v1267, %v740
      %v1272 = vpack.c.b16 %v1269, %v1268
      %v1292 = vunpack.c.l.b16 %v1251
      %v1293 = vunpack.c.l.b16 %v1252
      %v1294 = vunpack.c.l.b16 %v1253
      %v1295 = vunpack.c.l.b16 %v1254
      %v1296 = vunpack.c.l.b16 %v1255
      %v1297 = vunpack.c.l.b16 %v1256
      %v1298 = vunpack.c.l.b16 %v1257
      %v1299 = vunpack.c.l.b16 %v1258
      %v1300 = vunpack.c.l.b16 %v1259
      %v1301 = vunpack.c.l.b16 %v1260
      %v1302 = vunpack.c.l.b16 %v1261
      %v1303 = vunpack.c.l.b16 %v1262
      %v1304 = vunpack.c.l.b16 %v1263
      %v1305 = vunpack.c.l.b16 %v1264
      %v1306 = vunpack.c.l.b16 %v1265
      %v1307 = vunpack.c.l.b16 %v1266
      %v1308 = vpack.c.b16 %v1293, %v1292
      %v1309 = vpack.c.b16 %v1295, %v1294
      %v1310 = vpack.c.b16 %v1297, %v1296
      %v1311 = vpack.c.b16 %v1299, %v1298
      %v1312 = vpack.c.b16 %v1301, %v1300
      %v1313 = vpack.c.b16 %v1303, %v1302
      %v1314 = vpack.c.b16 %v1305, %v1304
      %v1315 = vpack.c.b16 %v1307, %v1306
      %1324 = vmatpush.bf16.msra.mxu0 %v1315
      %1325 = vmatpush.bf16.msra.mxu0 %v1314
      %1326 = vmatpush.bf16.msra.mxu0 %v1313
      %1327 = vmatpush.bf16.msra.mxu0 %v1312
      %1328 = vmatpush.bf16.msra.mxu0 %v1311
      %1329 = vmatpush.bf16.msra.mxu0 %v1310
      %1330 = vmatpush.bf16.msra.mxu0 %v1309
      %1331 = vmatpush.bf16.msra.mxu0 %v1308
      %1332 = vmatmul.bf16.gmra.mxu0 %v993
      %v1333 = vpop.f32.mrf.mxu0
      %v1334 = vadd.f32 0.0, %v1333
      %v1335 = vpop.f32.mrf.mxu0
      %v1336 = vadd.f32 0.0, %v1335
      %1337 = vmatmul.bf16.gmra.mxu0 %v994
      %v1338 = vpop.f32.mrf.mxu0
      %v1339 = vadd.f32 0.0, %v1338
      %v1340 = vpop.f32.mrf.mxu0
      %v1341 = vadd.f32 0.0, %v1340
      %1342 = vmatmul.bf16.gmra.mxu0 %v995
      %v1343 = vpop.f32.mrf.mxu0
      %v1344 = vadd.f32 0.0, %v1343
      %v1345 = vpop.f32.mrf.mxu0
      %v1346 = vadd.f32 0.0, %v1345
      %1347 = vmatmul.bf16.gmra.mxu0 %v996
      %v1348 = vpop.f32.mrf.mxu0
      %v1349 = vadd.f32 0.0, %v1348
      %v1350 = vpop.f32.mrf.mxu0
      %v1351 = vadd.f32 0.0, %v1350
      %1352 = vmatmul.bf16.gmra.mxu0 %v997
      %v1353 = vpop.f32.mrf.mxu0
      %v1354 = vadd.f32 0.0, %v1353
      %v1355 = vpop.f32.mrf.mxu0
      %v1356 = vadd.f32 0.0, %v1355
      %1357 = vmatmul.bf16.gmra.mxu0 %v998
      %v1358 = vpop.f32.mrf.mxu0
      %v1359 = vadd.f32 0.0, %v1358
      %v1360 = vpop.f32.mrf.mxu0
      %v1361 = vadd.f32 0.0, %v1360
      %1362 = vmatmul.bf16.gmra.mxu0 %v999
      %v1363 = vpop.f32.mrf.mxu0
      %v1364 = vadd.f32 0.0, %v1363
      %v1365 = vpop.f32.mrf.mxu0
      %v1366 = vadd.f32 0.0, %v1365
      %1367 = vmatmul.bf16.gmra.mxu0 %v1000
      %v1368 = vpop.f32.mrf.mxu0
      %v1369 = vadd.f32 0.0, %v1368
      %v1370 = vpop.f32.mrf.mxu0
      %v1371 = vadd.f32 0.0, %v1370
      %1372 = vmatmul.bf16.gmra.mxu0 %v1001
      %v1373 = vpop.f32.mrf.mxu0
      %v1374 = vadd.f32 0.0, %v1373
      %v1375 = vpop.f32.mrf.mxu0
      %v1376 = vadd.f32 0.0, %v1375
      %1377 = vmatmul.bf16.gmra.mxu0 %v1002
      %v1378 = vpop.f32.mrf.mxu0
      %v1379 = vadd.f32 0.0, %v1378
      %v1380 = vpop.f32.mrf.mxu0
      %v1381 = vadd.f32 0.0, %v1380
      %1382 = vmatmul.bf16.gmra.mxu0 %v1003
      %v1383 = vpop.f32.mrf.mxu0
      %v1384 = vadd.f32 0.0, %v1383
      %v1385 = vpop.f32.mrf.mxu0
      %v1386 = vadd.f32 0.0, %v1385
      %1387 = vmatmul.bf16.gmra.mxu0 %v1004
      %v1388 = vpop.f32.mrf.mxu0
      %v1389 = vadd.f32 0.0, %v1388
      %v1390 = vpop.f32.mrf.mxu0
      %v1391 = vadd.f32 0.0, %v1390
      %1392 = vmatmul.bf16.gmra.mxu0 %v1005
      %v1393 = vpop.f32.mrf.mxu0
      %v1394 = vadd.f32 0.0, %v1393
      %v1395 = vpop.f32.mrf.mxu0
      %v1396 = vadd.f32 0.0, %v1395
      %1397 = vmatmul.bf16.gmra.mxu0 %v1006
      %v1398 = vpop.f32.mrf.mxu0
      %v1399 = vadd.f32 0.0, %v1398
      %v1400 = vpop.f32.mrf.mxu0
      %v1401 = vadd.f32 0.0, %v1400
      %1402 = vmatmul.bf16.gmra.mxu0 %v1007
      %v1403 = vpop.f32.mrf.mxu0
      %v1404 = vadd.f32 0.0, %v1403
      %v1405 = vpop.f32.mrf.mxu0
      %v1406 = vadd.f32 0.0, %v1405
      %1407 = vmatmul.bf16.gmra.mxu0 %v1008
      %v1408 = vpop.f32.mrf.mxu0
      %v1409 = vadd.f32 0.0, %v1408
      %v1410 = vpop.f32.mrf.mxu0
      %v1411 = vadd.f32 0.0, %v1410
      %1412 = vmatmul.bf16.gmra.mxu0 %v1009
      %v1413 = vpop.f32.mrf.mxu0
      %v1414 = vadd.f32 0.0, %v1413
      %v1415 = vpop.f32.mrf.mxu0
      %v1416 = vadd.f32 0.0, %v1415
      %1417 = vmatmul.bf16.gmra.mxu0 %v1010
      %v1418 = vpop.f32.mrf.mxu0
      %v1419 = vadd.f32 0.0, %v1418
      %v1420 = vpop.f32.mrf.mxu0
      %v1421 = vadd.f32 0.0, %v1420
      %1422 = vmatmul.bf16.gmra.mxu0 %v1011
      %v1423 = vpop.f32.mrf.mxu0
      %v1424 = vadd.f32 0.0, %v1423
      %v1425 = vpop.f32.mrf.mxu0
      %v1426 = vadd.f32 0.0, %v1425
      %1427 = vmatmul.bf16.gmra.mxu0 %v1012
      %v1428 = vpop.f32.mrf.mxu0
      %v1429 = vadd.f32 0.0, %v1428
      %v1430 = vpop.f32.mrf.mxu0
      %v1431 = vadd.f32 0.0, %v1430
      %1432 = vmatmul.bf16.gmra.mxu0 %v1013
      %v1433 = vpop.f32.mrf.mxu0
      %v1434 = vadd.f32 0.0, %v1433
      %v1435 = vpop.f32.mrf.mxu0
      %v1436 = vadd.f32 0.0, %v1435
      %1437 = vmatmul.bf16.gmra.mxu0 %v1014
      %v1438 = vpop.f32.mrf.mxu0
      %v1439 = vadd.f32 0.0, %v1438
      %v1440 = vpop.f32.mrf.mxu0
      %v1441 = vadd.f32 0.0, %v1440
      %1442 = vmatmul.bf16.gmra.mxu0 %v1015
      %v1443 = vpop.f32.mrf.mxu0
      %v1444 = vadd.f32 0.0, %v1443
      %v1445 = vpop.f32.mrf.mxu0
      %v1446 = vadd.f32 0.0, %v1445
      %1447 = vmatmul.bf16.gmra.mxu0 %v1016
      %v1448 = vpop.f32.mrf.mxu0
      %v1449 = vadd.f32 0.0, %v1448
      %v1450 = vpop.f32.mrf.mxu0
      %v1451 = vadd.f32 0.0, %v1450
      %1452 = vmatmul.bf16.gmra.mxu0 %v1270
      %v1453 = vpop.f32.mrf.mxu0
      %v1454 = vadd.f32 0.0, %v1453
      %v1455 = vpop.f32.mrf.mxu0
      %v1456 = vadd.f32 0.0, %v1455
      %1457 = vmatmul.bf16.gmra.mxu0 %v1271
      %v1458 = vpop.f32.mrf.mxu0
      %v1459 = vadd.f32 0.0, %v1458
      %v1460 = vpop.f32.mrf.mxu0
      %v1461 = vadd.f32 0.0, %v1460
      %1462 = vmatmul.bf16.gmra.mxu0 %v1272
      %v1463 = vpop.f32.mrf.mxu0
      %v1464 = vadd.f32 0.0, %v1463
      %v1465 = vpop.f32.mrf.mxu0
      %v1466 = vadd.f32 0.0, %v1465
      %1467 = vdwg.mxu0
      %v1468 = vadd.f32 %v1102, %v1334
      %v1469 = vadd.f32 %v1104, %v1336
      %v1470 = vadd.f32 %v1107, %v1339
      %v1471 = vadd.f32 %v1109, %v1341
      %v1472 = vadd.f32 %v1112, %v1344
      %v1473 = vadd.f32 %v1114, %v1346
      %v1474 = vadd.f32 %v1117, %v1349
      %v1475 = vadd.f32 %v1119, %v1351
      %v1476 = vadd.f32 %v1122, %v1354
      %v1477 = vadd.f32 %v1124, %v1356
      %v1478 = vadd.f32 %v1127, %v1359
      %v1479 = vadd.f32 %v1129, %v1361
      %v1480 = vadd.f32 %v1132, %v1364
      %v1481 = vadd.f32 %v1134, %v1366
      %v1482 = vadd.f32 %v1137, %v1369
      %v1483 = vadd.f32 %v1139, %v1371
      %v1484 = vadd.f32 %v1142, %v1374
      %v1485 = vadd.f32 %v1144, %v1376
      %v1486 = vadd.f32 %v1147, %v1379
      %v1487 = vadd.f32 %v1149, %v1381
      %v1488 = vadd.f32 %v1152, %v1384
      %v1489 = vadd.f32 %v1154, %v1386
      %v1490 = vadd.f32 %v1157, %v1389
      %v1491 = vadd.f32 %v1159, %v1391
      %v1492 = vadd.f32 %v1162, %v1394
      %v1493 = vadd.f32 %v1164, %v1396
      %v1494 = vadd.f32 %v1167, %v1399
      %v1495 = vadd.f32 %v1169, %v1401
      %v1496 = vadd.f32 %v1172, %v1404
      %v1497 = vadd.f32 %v1174, %v1406
      %v1498 = vadd.f32 %v1177, %v1409
      %v1499 = vadd.f32 %v1179, %v1411
      %v1500 = vadd.f32 %v1182, %v1414
      %v1501 = vadd.f32 %v1184, %v1416
      %v1502 = vadd.f32 %v1187, %v1419
      %v1503 = vadd.f32 %v1189, %v1421
      %v1504 = vadd.f32 %v1192, %v1424
      %v1505 = vadd.f32 %v1194, %v1426
      %v1506 = vadd.f32 %v1197, %v1429
      %v1507 = vadd.f32 %v1199, %v1431
      %v1508 = vadd.f32 %v1202, %v1434
      %v1509 = vadd.f32 %v1204, %v1436
      %v1510 = vadd.f32 %v1207, %v1439
      %v1511 = vadd.f32 %v1209, %v1441
      %v1512 = vadd.f32 %v1212, %v1444
      %v1513 = vadd.f32 %v1214, %v1446
      %v1514 = vadd.f32 %v1217, %v1449
      %v1515 = vadd.f32 %v1219, %v1451
      %v1516 = vadd.f32 %v1222, %v1454
      %v1517 = vadd.f32 %v1224, %v1456
      %v1518 = vadd.f32 %v1227, %v1459
      %v1519 = vadd.f32 %v1229, %v1461
      %v1520 = vadd.f32 %v1232, %v1464
      %v1521 = vadd.f32 %v1234, %v1466
      %vm1522 = vsmask.f32 256
      %vm1523 = vsmask.f32 4368
      %vm1524 = vmor %vm1522, %vm1523
      %v1526 = vshrl.u32 %v305, 16
      %v1528 = vrot.slane %v1526, 7
      %v1529 = vrot.slane %v1528, 4
      %v1531 = vshrl.u32 %v306, 16
      %v1533 = vrot.slane %v1531, 7
      %v1534 = vshll.u32 %v306, 16
      %v1536 = vor.u32 %v1533, %v1534
      %v1537 = vsel %vm1524, %v1529, %v1536
      %v1538 = vrot.slane %v1533, 4
      %v1540 = vshrl.u32 %v307, 16
      %v1542 = vrot.slane %v1540, 7
      %v1543 = vshll.u32 %v307, 16
      %v1545 = vor.u32 %v1542, %v1543
      %v1546 = vsel %vm1524, %v1538, %v1545
      %v1547 = vrot.slane %v1542, 4
      %v1549 = vshrl.u32 %v308, 16
      %v1551 = vrot.slane %v1549, 7
      %v1552 = vshll.u32 %v308, 16
      %v1554 = vor.u32 %v1551, %v1552
      %v1555 = vsel %vm1524, %v1547, %v1554
      %v1557 = vshrl.u32 %v309, 16
      %v1559 = vrot.slane %v1557, 7
      %v1560 = vrot.slane %v1559, 4
      %v1562 = vshrl.u32 %v310, 16
      %v1564 = vrot.slane %v1562, 7
      %v1565 = vshll.u32 %v310, 16
      %v1567 = vor.u32 %v1564, %v1565
      %v1568 = vsel %vm1524, %v1560, %v1567
      %v1569 = vrot.slane %v1564, 4
      %v1571 = vshrl.u32 %v311, 16
      %v1573 = vrot.slane %v1571, 7
      %v1574 = vshll.u32 %v311, 16
      %v1576 = vor.u32 %v1573, %v1574
      %v1577 = vsel %vm1524, %v1569, %v1576
      %v1578 = vrot.slane %v1573, 4
      %v1580 = vshrl.u32 %v312, 16
      %v1582 = vrot.slane %v1580, 7
      %v1583 = vshll.u32 %v312, 16
      %v1585 = vor.u32 %v1582, %v1583
      %v1586 = vsel %vm1524, %v1578, %v1585
      %v1588 = vshrl.u32 %v313, 16
      %v1590 = vrot.slane %v1588, 7
      %v1591 = vrot.slane %v1590, 4
      %v1593 = vshrl.u32 %v314, 16
      %v1595 = vrot.slane %v1593, 7
      %v1596 = vshll.u32 %v314, 16
      %v1598 = vor.u32 %v1595, %v1596
      %v1599 = vsel %vm1524, %v1591, %v1598
      %v1600 = vrot.slane %v1595, 4
      %v1602 = vshrl.u32 %v315, 16
      %v1604 = vrot.slane %v1602, 7
      %v1605 = vshll.u32 %v315, 16
      %v1607 = vor.u32 %v1604, %v1605
      %v1608 = vsel %vm1524, %v1600, %v1607
      %v1609 = vrot.slane %v1604, 4
      %v1611 = vshrl.u32 %v316, 16
      %v1613 = vrot.slane %v1611, 7
      %v1614 = vshll.u32 %v316, 16
      %v1616 = vor.u32 %v1613, %v1614
      %v1617 = vsel %vm1524, %v1609, %v1616
      %v1619 = vshrl.u32 %v317, 16
      %v1621 = vrot.slane %v1619, 7
      %v1622 = vrot.slane %v1621, 4
      %v1624 = vshrl.u32 %v318, 16
      %v1626 = vrot.slane %v1624, 7
      %v1627 = vshll.u32 %v318, 16
      %v1629 = vor.u32 %v1626, %v1627
      %v1630 = vsel %vm1524, %v1622, %v1629
      %v1631 = vrot.slane %v1626, 4
      %v1633 = vshrl.u32 %v319, 16
      %v1635 = vrot.slane %v1633, 7
      %v1636 = vshll.u32 %v319, 16
      %v1638 = vor.u32 %v1635, %v1636
      %v1639 = vsel %vm1524, %v1631, %v1638
      %v1640 = vrot.slane %v1635, 4
      %v1642 = vshrl.u32 %v320, 16
      %v1644 = vrot.slane %v1642, 7
      %v1645 = vshll.u32 %v320, 16
      %v1647 = vor.u32 %v1644, %v1645
      %v1648 = vsel %vm1524, %v1640, %v1647
      %v1650 = vshrl.u32 %v321, 16
      %v1652 = vrot.slane %v1650, 7
      %v1653 = vrot.slane %v1652, 4
      %v1655 = vshrl.u32 %v322, 16
      %v1657 = vrot.slane %v1655, 7
      %v1658 = vshll.u32 %v322, 16
      %v1660 = vor.u32 %v1657, %v1658
      %v1661 = vsel %vm1524, %v1653, %v1660
      %v1662 = vrot.slane %v1657, 4
      %v1664 = vshrl.u32 %v323, 16
      %v1666 = vrot.slane %v1664, 7
      %v1667 = vshll.u32 %v323, 16
      %v1669 = vor.u32 %v1666, %v1667
      %v1670 = vsel %vm1524, %v1662, %v1669
      %v1671 = vrot.slane %v1666, 4
      %v1673 = vshrl.u32 %v324, 16
      %v1675 = vrot.slane %v1673, 7
      %v1676 = vshll.u32 %v324, 16
      %v1678 = vor.u32 %v1675, %v1676
      %v1679 = vsel %vm1524, %v1671, %v1678
      %v1681 = vshrl.u32 %v325, 16
      %v1683 = vrot.slane %v1681, 7
      %v1684 = vrot.slane %v1683, 4
      %v1686 = vshrl.u32 %v326, 16
      %v1688 = vrot.slane %v1686, 7
      %v1689 = vshll.u32 %v326, 16
      %v1691 = vor.u32 %v1688, %v1689
      %v1692 = vsel %vm1524, %v1684, %v1691
      %v1693 = vrot.slane %v1688, 4
      %v1695 = vshrl.u32 %v327, 16
      %v1697 = vrot.slane %v1695, 7
      %v1698 = vshll.u32 %v327, 16
      %v1700 = vor.u32 %v1697, %v1698
      %v1701 = vsel %vm1524, %v1693, %v1700
      %v1702 = vrot.slane %v1697, 4
      %v1704 = vshrl.u32 %v328, 16
      %v1706 = vrot.slane %v1704, 7
      %v1707 = vshll.u32 %v328, 16
      %v1709 = vor.u32 %v1706, %v1707
      %v1710 = vsel %vm1524, %v1702, %v1709
      %v1712 = vshrl.u32 %v329, 16
      %v1714 = vrot.slane %v1712, 7
      %v1715 = vrot.slane %v1714, 4
      %v1717 = vshrl.u32 %v330, 16
      %v1719 = vrot.slane %v1717, 7
      %v1720 = vshll.u32 %v330, 16
      %v1722 = vor.u32 %v1719, %v1720
      %v1723 = vsel %vm1524, %v1715, %v1722
      %v1724 = vrot.slane %v1719, 4
      %v1726 = vshrl.u32 %v331, 16
      %v1728 = vrot.slane %v1726, 7
      %v1729 = vshll.u32 %v331, 16
      %v1731 = vor.u32 %v1728, %v1729
      %v1732 = vsel %vm1524, %v1724, %v1731
      %v1733 = vrot.slane %v1728, 4
      %v1735 = vshrl.u32 %v332, 16
      %v1737 = vrot.slane %v1735, 7
      %v1738 = vshll.u32 %v332, 16
      %v1740 = vor.u32 %v1737, %v1738
      %v1741 = vsel %vm1524, %v1733, %v1740
      %v1743 = vshrl.u32 %v333, 16
      %v1745 = vrot.slane %v1743, 7
      %v1746 = vrot.slane %v1745, 4
      %v1748 = vshrl.u32 %v334, 16
      %v1750 = vrot.slane %v1748, 7
      %v1751 = vshll.u32 %v334, 16
      %v1753 = vor.u32 %v1750, %v1751
      %v1754 = vsel %vm1524, %v1746, %v1753
      %v1755 = vrot.slane %v1750, 4
      %v1757 = vshrl.u32 %v335, 16
      %v1759 = vrot.slane %v1757, 7
      %v1760 = vshll.u32 %v335, 16
      %v1762 = vor.u32 %v1759, %v1760
      %v1763 = vsel %vm1524, %v1755, %v1762
      %v1764 = vrot.slane %v1759, 4
      %v1766 = vshrl.u32 %v336, 16
      %v1768 = vrot.slane %v1766, 7
      %v1769 = vshll.u32 %v336, 16
      %v1771 = vor.u32 %v1768, %v1769
      %v1772 = vsel %vm1524, %v1764, %v1771
      %v1774 = vshrl.u32 %v337, 16
      %v1776 = vrot.slane %v1774, 7
      %v1777 = vrot.slane %v1776, 4
      %v1779 = vshrl.u32 %v338, 16
      %v1781 = vrot.slane %v1779, 7
      %v1782 = vshll.u32 %v338, 16
      %v1784 = vor.u32 %v1781, %v1782
      %v1785 = vsel %vm1524, %v1777, %v1784
      %v1786 = vrot.slane %v1781, 4
      %v1788 = vshrl.u32 %v339, 16
      %v1790 = vrot.slane %v1788, 7
      %v1791 = vshll.u32 %v339, 16
      %v1793 = vor.u32 %v1790, %v1791
      %v1794 = vsel %vm1524, %v1786, %v1793
      %v1795 = vrot.slane %v1790, 4
      %v1797 = vshrl.u32 %v340, 16
      %v1799 = vrot.slane %v1797, 7
      %v1800 = vshll.u32 %v340, 16
      %v1802 = vor.u32 %v1799, %v1800
      %v1803 = vsel %vm1524, %v1795, %v1802
      %v1805 = vshrl.u32 %v341, 16
      %v1807 = vrot.slane %v1805, 7
      %v1808 = vrot.slane %v1807, 4
      %v1810 = vshrl.u32 %v342, 16
      %v1812 = vrot.slane %v1810, 7
      %v1813 = vshll.u32 %v342, 16
      %v1815 = vor.u32 %v1812, %v1813
      %v1816 = vsel %vm1524, %v1808, %v1815
      %v1817 = vrot.slane %v1812, 4
      %v1819 = vshrl.u32 %v343, 16
      %v1821 = vrot.slane %v1819, 7
      %v1822 = vshll.u32 %v343, 16
      %v1824 = vor.u32 %v1821, %v1822
      %v1825 = vsel %vm1524, %v1817, %v1824
      %v1826 = vrot.slane %v1821, 4
      %v1828 = vshrl.u32 %v344, 16
      %v1830 = vrot.slane %v1828, 7
      %v1831 = vshll.u32 %v344, 16
      %v1833 = vor.u32 %v1830, %v1831
      %v1834 = vsel %vm1524, %v1826, %v1833
      %v1836 = vshrl.u32 %v345, 16
      %v1838 = vrot.slane %v1836, 7
      %v1839 = vrot.slane %v1838, 4
      %v1841 = vshrl.u32 %v346, 16
      %v1843 = vrot.slane %v1841, 7
      %v1844 = vshll.u32 %v346, 16
      %v1846 = vor.u32 %v1843, %v1844
      %v1847 = vsel %vm1524, %v1839, %v1846
      %v1848 = vrot.slane %v1843, 4
      %v1850 = vshrl.u32 %v347, 16
      %v1852 = vrot.slane %v1850, 7
      %v1853 = vshll.u32 %v347, 16
      %v1855 = vor.u32 %v1852, %v1853
      %v1856 = vsel %vm1524, %v1848, %v1855
      %v1857 = vrot.slane %v1852, 4
      %v1859 = vshrl.u32 %v348, 16
      %v1861 = vrot.slane %v1859, 7
      %v1862 = vshll.u32 %v348, 16
      %v1864 = vor.u32 %v1861, %v1862
      %v1865 = vsel %vm1524, %v1857, %v1864
      %v1867 = vshrl.u32 %v349, 16
      %v1869 = vrot.slane %v1867, 7
      %v1870 = vrot.slane %v1869, 4
      %v1872 = vshrl.u32 %v350, 16
      %v1874 = vrot.slane %v1872, 7
      %v1875 = vshll.u32 %v350, 16
      %v1877 = vor.u32 %v1874, %v1875
      %v1878 = vsel %vm1524, %v1870, %v1877
      %v1879 = vrot.slane %v1874, 4
      %v1881 = vshrl.u32 %v351, 16
      %v1883 = vrot.slane %v1881, 7
      %v1884 = vshll.u32 %v351, 16
      %v1886 = vor.u32 %v1883, %v1884
      %v1887 = vsel %vm1524, %v1879, %v1886
      %v1888 = vrot.slane %v1883, 4
      %v1890 = vshrl.u32 %v352, 16
      %v1892 = vrot.slane %v1890, 7
      %v1893 = vshll.u32 %v352, 16
      %v1895 = vor.u32 %v1892, %v1893
      %v1896 = vsel %vm1524, %v1888, %v1895
      %v1898 = vshrl.u32 %v353, 16
      %v1900 = vrot.slane %v1898, 7
      %v1901 = vrot.slane %v1900, 4
      %v1903 = vshrl.u32 %v354, 16
      %v1905 = vrot.slane %v1903, 7
      %v1906 = vshll.u32 %v354, 16
      %v1908 = vor.u32 %v1905, %v1906
      %v1909 = vsel %vm1524, %v1901, %v1908
      %v1910 = vrot.slane %v1905, 4
      %v1912 = vshrl.u32 %v355, 16
      %v1914 = vrot.slane %v1912, 7
      %v1915 = vshll.u32 %v355, 16
      %v1917 = vor.u32 %v1914, %v1915
      %v1918 = vsel %vm1524, %v1910, %v1917
      %v1919 = vrot.slane %v1914, 4
      %v1921 = vshrl.u32 %v356, 16
      %v1923 = vrot.slane %v1921, 7
      %v1924 = vshll.u32 %v356, 16
      %v1926 = vor.u32 %v1923, %v1924
      %v1927 = vsel %vm1524, %v1919, %v1926
      %v1929 = vshrl.u32 %v357, 16
      %v1931 = vrot.slane %v1929, 7
      %v1932 = vrot.slane %v1931, 4
      %v1934 = vshrl.u32 %v358, 16
      %v1936 = vrot.slane %v1934, 7
      %v1937 = vshll.u32 %v358, 16
      %v1939 = vor.u32 %v1936, %v1937
      %v1940 = vsel %vm1524, %v1932, %v1939
      %v1941 = vrot.slane %v1936, 4
      %v1943 = vshrl.u32 %v359, 16
      %v1945 = vrot.slane %v1943, 7
      %v1946 = vshll.u32 %v359, 16
      %v1948 = vor.u32 %v1945, %v1946
      %v1949 = vsel %vm1524, %v1941, %v1948
      %v1950 = vrot.slane %v1945, 4
      %v1952 = vshrl.u32 %v360, 16
      %v1954 = vrot.slane %v1952, 7
      %v1955 = vshll.u32 %v360, 16
      %v1957 = vor.u32 %v1954, %v1955
      %v1958 = vsel %vm1524, %v1950, %v1957
      %v1960 = vshrl.u32 %v361, 16
      %v1962 = vrot.slane %v1960, 7
      %v1963 = vrot.slane %v1962, 4
      %v1965 = vshrl.u32 %v362, 16
      %v1967 = vrot.slane %v1965, 7
      %v1968 = vshll.u32 %v362, 16
      %v1970 = vor.u32 %v1967, %v1968
      %v1971 = vsel %vm1524, %v1963, %v1970
      %v1972 = vrot.slane %v1967, 4
      %v1974 = vshrl.u32 %v363, 16
      %v1976 = vrot.slane %v1974, 7
      %v1977 = vshll.u32 %v363, 16
      %v1979 = vor.u32 %v1976, %v1977
      %v1980 = vsel %vm1524, %v1972, %v1979
      %v1981 = vrot.slane %v1976, 4
      %v1983 = vshrl.u32 %v364, 16
      %v1985 = vrot.slane %v1983, 7
      %v1986 = vshll.u32 %v364, 16
      %v1988 = vor.u32 %v1985, %v1986
      %v1989 = vsel %vm1524, %v1981, %v1988
      %v1991 = vshrl.u32 %v365, 16
      %v1993 = vrot.slane %v1991, 7
      %v1994 = vrot.slane %v1993, 4
      %v1996 = vshrl.u32 %v366, 16
      %v1998 = vrot.slane %v1996, 7
      %v1999 = vshll.u32 %v366, 16
      %v2001 = vor.u32 %v1998, %v1999
      %v2002 = vsel %vm1524, %v1994, %v2001
      %v2003 = vrot.slane %v1998, 4
      %v2005 = vshrl.u32 %v367, 16
      %v2007 = vrot.slane %v2005, 7
      %v2008 = vshll.u32 %v367, 16
      %v2010 = vor.u32 %v2007, %v2008
      %v2011 = vsel %vm1524, %v2003, %v2010
      %v2012 = vrot.slane %v2007, 4
      %v2014 = vshrl.u32 %v368, 16
      %v2016 = vrot.slane %v2014, 7
      %v2017 = vshll.u32 %v368, 16
      %v2019 = vor.u32 %v2016, %v2017
      %v2020 = vsel %vm1524, %v2012, %v2019
      %v2022 = vshrl.u32 %v369, 16
      %v2024 = vrot.slane %v2022, 7
      %v2025 = vrot.slane %v2024, 4
      %v2027 = vshrl.u32 %v370, 16
      %v2029 = vrot.slane %v2027, 7
      %v2030 = vshll.u32 %v370, 16
      %v2032 = vor.u32 %v2029, %v2030
      %v2033 = vsel %vm1524, %v2025, %v2032
      %v2034 = vrot.slane %v2029, 4
      %v2036 = vshrl.u32 %v371, 16
      %v2038 = vrot.slane %v2036, 7
      %v2039 = vshll.u32 %v371, 16
      %v2041 = vor.u32 %v2038, %v2039
      %v2042 = vsel %vm1524, %v2034, %v2041
      %v2043 = vrot.slane %v2038, 4
      %v2045 = vshrl.u32 %v372, 16
      %v2047 = vrot.slane %v2045, 7
      %v2048 = vshll.u32 %v372, 16
      %v2050 = vor.u32 %v2047, %v2048
      %v2051 = vsel %vm1524, %v2043, %v2050
      %v2053 = vshrl.u32 %v373, 16
      %v2055 = vrot.slane %v2053, 7
      %v2056 = vrot.slane %v2055, 4
      %v2058 = vshrl.u32 %v374, 16
      %v2060 = vrot.slane %v2058, 7
      %v2061 = vshll.u32 %v374, 16
      %v2063 = vor.u32 %v2060, %v2061
      %v2064 = vsel %vm1524, %v2056, %v2063
      %v2065 = vrot.slane %v2060, 4
      %v2067 = vshrl.u32 %v375, 16
      %v2069 = vrot.slane %v2067, 7
      %v2070 = vshll.u32 %v375, 16
      %v2072 = vor.u32 %v2069, %v2070
      %v2073 = vsel %vm1524, %v2065, %v2072
      %v2074 = vrot.slane %v2069, 4
      %v2076 = vshrl.u32 %v376, 16
      %v2078 = vrot.slane %v2076, 7
      %v2079 = vshll.u32 %v376, 16
      %v2081 = vor.u32 %v2078, %v2079
      %v2082 = vsel %vm1524, %v2074, %v2081
      %s2083 = scalar_lea.vmem %s1, 192
      %v2084 = vld [vmem:[%s2083] sm:$0xf]
      %v2085 = vld [vmem:[%s2083 + $0x4] sm:$0xf]
      %v2086 = vld [vmem:[%s2083 + $0x8] sm:$0xf]
      %v2087 = vld [vmem:[%s2083 + $0xc] sm:$0xf]
      %v2088 = vld [vmem:[%s2083 + $0x10] sm:$0xf]
      %v2089 = vld [vmem:[%s2083 + $0x14] sm:$0xf]
      %v2090 = vld [vmem:[%s2083 + $0x18] sm:$0xf]
      %v2091 = vld [vmem:[%s2083 + $0x1c] sm:$0xf]
      %v2092 = vld [vmem:[%s2083 + $0x20] sm:$0xf]
      %v2093 = vld [vmem:[%s2083 + $0x24] sm:$0xf]
      %v2094 = vld [vmem:[%s2083 + $0x28] sm:$0xf]
      %v2095 = vld [vmem:[%s2083 + $0x2c] sm:$0xf]
      %v2096 = vld [vmem:[%s2083 + $0x30] sm:$0xf]
      %v2097 = vld [vmem:[%s2083 + $0x34] sm:$0xf]
      %v2098 = vld [vmem:[%s2083 + $0x38] sm:$0xf]
      %v2099 = vld [vmem:[%s2083 + $0x3c] sm:$0xf]
      %v2100 = vunpack.c.l.b16 %v1537
      %v2101 = vunpack.c.l.b16 %v1546
      %v2102 = vunpack.c.l.b16 %v1555
      %v2103 = vunpack.c.l.b16 %v1568
      %v2104 = vunpack.c.l.b16 %v1577
      %v2105 = vunpack.c.l.b16 %v1586
      %v2106 = vunpack.c.l.b16 %v1599
      %v2107 = vunpack.c.l.b16 %v1608
      %v2108 = vunpack.c.l.b16 %v1617
      %v2109 = vunpack.c.l.b16 %v1630
      %v2110 = vunpack.c.l.b16 %v1639
      %v2111 = vunpack.c.l.b16 %v1648
      %v2112 = vunpack.c.l.b16 %v1661
      %v2113 = vunpack.c.l.b16 %v1670
      %v2114 = vunpack.c.l.b16 %v1679
      %v2115 = vunpack.c.l.b16 %v1692
      %v2116 = vunpack.c.l.b16 %v1701
      %v2117 = vunpack.c.l.b16 %v1710
      %v2118 = vunpack.c.l.b16 %v1723
      %v2119 = vunpack.c.l.b16 %v1732
      %v2120 = vunpack.c.l.b16 %v1741
      %v2121 = vunpack.c.l.b16 %v1754
      %v2122 = vunpack.c.l.b16 %v1763
      %v2123 = vunpack.c.l.b16 %v1772
      %v2124 = vunpack.c.l.b16 %v1785
      %v2125 = vunpack.c.l.b16 %v1794
      %v2126 = vunpack.c.l.b16 %v1803
      %v2127 = vunpack.c.l.b16 %v1816
      %v2128 = vunpack.c.l.b16 %v1825
      %v2129 = vunpack.c.l.b16 %v1834
      %v2130 = vunpack.c.l.b16 %v1847
      %v2131 = vunpack.c.l.b16 %v1856
      %v2132 = vunpack.c.l.b16 %v1865
      %v2133 = vunpack.c.l.b16 %v1878
      %v2134 = vunpack.c.l.b16 %v1887
      %v2135 = vunpack.c.l.b16 %v1896
      %v2136 = vunpack.c.l.b16 %v1909
      %v2137 = vunpack.c.l.b16 %v1918
      %v2138 = vunpack.c.l.b16 %v1927
      %v2139 = vunpack.c.l.b16 %v1940
      %v2140 = vunpack.c.l.b16 %v1949
      %v2141 = vunpack.c.l.b16 %v1958
      %v2142 = vunpack.c.l.b16 %v1971
      %v2143 = vunpack.c.l.b16 %v1980
      %v2144 = vunpack.c.l.b16 %v1989
      %v2145 = vunpack.c.l.b16 %v2002
      %v2146 = vunpack.c.l.b16 %v2011
      %v2147 = vunpack.c.l.b16 %v2020
      %v2148 = vunpack.c.l.b16 %v2033
      %v2149 = vunpack.c.l.b16 %v2042
      %v2150 = vunpack.c.l.b16 %v2051
      %v2151 = vunpack.c.l.b16 %v2064
      %v2152 = vunpack.c.l.b16 %v2073
      %v2153 = vunpack.c.l.b16 %v2082
      %v2154 = vpack.c.b16 %v2101, %v2100
      %v2155 = vpack.c.b16 %v2103, %v2102
      %v2156 = vpack.c.b16 %v2105, %v2104
      %v2157 = vpack.c.b16 %v2107, %v2106
      %v2158 = vpack.c.b16 %v2109, %v2108
      %v2159 = vpack.c.b16 %v2111, %v2110
      %v2160 = vpack.c.b16 %v2113, %v2112
      %v2161 = vpack.c.b16 %v2115, %v2114
      %v2162 = vpack.c.b16 %v2117, %v2116
      %v2163 = vpack.c.b16 %v2119, %v2118
      %v2164 = vpack.c.b16 %v2121, %v2120
      %v2165 = vpack.c.b16 %v2123, %v2122
      %v2166 = vpack.c.b16 %v2125, %v2124
      %v2167 = vpack.c.b16 %v2127, %v2126
      %v2168 = vpack.c.b16 %v2129, %v2128
      %v2169 = vpack.c.b16 %v2131, %v2130
      %v2170 = vpack.c.b16 %v2133, %v2132
      %v2171 = vpack.c.b16 %v2135, %v2134
      %v2172 = vpack.c.b16 %v2137, %v2136
      %v2173 = vpack.c.b16 %v2139, %v2138
      %v2174 = vpack.c.b16 %v2141, %v2140
      %v2175 = vpack.c.b16 %v2143, %v2142
      %v2176 = vpack.c.b16 %v2145, %v2144
      %v2177 = vpack.c.b16 %v2147, %v2146
      %v2178 = vpack.c.b16 %v2149, %v2148
      %v2179 = vpack.c.b16 %v2151, %v2150
      %v2180 = vpack.c.b16 %v2153, %v2152
      %v2224 = vunpack.c.l.b16 %v2084
      %v2225 = vunpack.c.l.b16 %v2085
      %v2226 = vunpack.c.l.b16 %v2086
      %v2227 = vunpack.c.l.b16 %v2087
      %v2228 = vunpack.c.l.b16 %v2088
      %v2229 = vunpack.c.l.b16 %v2089
      %v2230 = vunpack.c.l.b16 %v2090
      %v2231 = vunpack.c.l.b16 %v2091
      %v2232 = vunpack.c.l.b16 %v2092
      %v2233 = vunpack.c.l.b16 %v2093
      %v2234 = vunpack.c.l.b16 %v2094
      %v2235 = vunpack.c.l.b16 %v2095
      %v2236 = vunpack.c.l.b16 %v2096
      %v2237 = vunpack.c.l.b16 %v2097
      %v2238 = vunpack.c.l.b16 %v2098
      %v2239 = vunpack.c.l.b16 %v2099
      %v2240 = vpack.c.b16 %v2225, %v2224
      %v2241 = vpack.c.b16 %v2227, %v2226
      %v2242 = vpack.c.b16 %v2229, %v2228
      %v2243 = vpack.c.b16 %v2231, %v2230
      %v2244 = vpack.c.b16 %v2233, %v2232
      %v2245 = vpack.c.b16 %v2235, %v2234
      %v2246 = vpack.c.b16 %v2237, %v2236
      %v2247 = vpack.c.b16 %v2239, %v2238
      %2256 = vmatpush.bf16.msra.mxu0 %v2247
      %2257 = vmatpush.bf16.msra.mxu0 %v2246
      %2258 = vmatpush.bf16.msra.mxu0 %v2245
      %2259 = vmatpush.bf16.msra.mxu0 %v2244
      %2260 = vmatpush.bf16.msra.mxu0 %v2243
      %2261 = vmatpush.bf16.msra.mxu0 %v2242
      %2262 = vmatpush.bf16.msra.mxu0 %v2241
      %2263 = vmatpush.bf16.msra.mxu0 %v2240
      %2264 = vmatmul.bf16.gmra.mxu0 %v2154
      %v2265 = vpop.f32.mrf.mxu0
      %v2266 = vadd.f32 0.0, %v2265
      %v2267 = vpop.f32.mrf.mxu0
      %v2268 = vadd.f32 0.0, %v2267
      %2269 = vmatmul.bf16.gmra.mxu0 %v2155
      %v2270 = vpop.f32.mrf.mxu0
      %v2271 = vadd.f32 0.0, %v2270
      %v2272 = vpop.f32.mrf.mxu0
      %v2273 = vadd.f32 0.0, %v2272
      %2274 = vmatmul.bf16.gmra.mxu0 %v2156
      %v2275 = vpop.f32.mrf.mxu0
      %v2276 = vadd.f32 0.0, %v2275
      %v2277 = vpop.f32.mrf.mxu0
      %v2278 = vadd.f32 0.0, %v2277
      %2279 = vmatmul.bf16.gmra.mxu0 %v2157
      %v2280 = vpop.f32.mrf.mxu0
      %v2281 = vadd.f32 0.0, %v2280
      %v2282 = vpop.f32.mrf.mxu0
      %v2283 = vadd.f32 0.0, %v2282
      %2284 = vmatmul.bf16.gmra.mxu0 %v2158
      %v2285 = vpop.f32.mrf.mxu0
      %v2286 = vadd.f32 0.0, %v2285
      %v2287 = vpop.f32.mrf.mxu0
      %v2288 = vadd.f32 0.0, %v2287
      %2289 = vmatmul.bf16.gmra.mxu0 %v2159
      %v2290 = vpop.f32.mrf.mxu0
      %v2291 = vadd.f32 0.0, %v2290
      %v2292 = vpop.f32.mrf.mxu0
      %v2293 = vadd.f32 0.0, %v2292
      %2294 = vmatmul.bf16.gmra.mxu0 %v2160
      %v2295 = vpop.f32.mrf.mxu0
      %v2296 = vadd.f32 0.0, %v2295
      %v2297 = vpop.f32.mrf.mxu0
      %v2298 = vadd.f32 0.0, %v2297
      %2299 = vmatmul.bf16.gmra.mxu0 %v2161
      %v2300 = vpop.f32.mrf.mxu0
      %v2301 = vadd.f32 0.0, %v2300
      %v2302 = vpop.f32.mrf.mxu0
      %v2303 = vadd.f32 0.0, %v2302
      %2304 = vmatmul.bf16.gmra.mxu0 %v2162
      %v2305 = vpop.f32.mrf.mxu0
      %v2306 = vadd.f32 0.0, %v2305
      %v2307 = vpop.f32.mrf.mxu0
      %v2308 = vadd.f32 0.0, %v2307
      %2309 = vmatmul.bf16.gmra.mxu0 %v2163
      %v2310 = vpop.f32.mrf.mxu0
      %v2311 = vadd.f32 0.0, %v2310
      %v2312 = vpop.f32.mrf.mxu0
      %v2313 = vadd.f32 0.0, %v2312
      %2314 = vmatmul.bf16.gmra.mxu0 %v2164
      %v2315 = vpop.f32.mrf.mxu0
      %v2316 = vadd.f32 0.0, %v2315
      %v2317 = vpop.f32.mrf.mxu0
      %v2318 = vadd.f32 0.0, %v2317
      %2319 = vmatmul.bf16.gmra.mxu0 %v2165
      %v2320 = vpop.f32.mrf.mxu0
      %v2321 = vadd.f32 0.0, %v2320
      %v2322 = vpop.f32.mrf.mxu0
      %v2323 = vadd.f32 0.0, %v2322
      %2324 = vmatmul.bf16.gmra.mxu0 %v2166
      %v2325 = vpop.f32.mrf.mxu0
      %v2326 = vadd.f32 0.0, %v2325
      %v2327 = vpop.f32.mrf.mxu0
      %v2328 = vadd.f32 0.0, %v2327
      %2329 = vmatmul.bf16.gmra.mxu0 %v2167
      %v2330 = vpop.f32.mrf.mxu0
      %v2331 = vadd.f32 0.0, %v2330
      %v2332 = vpop.f32.mrf.mxu0
      %v2333 = vadd.f32 0.0, %v2332
      %2334 = vmatmul.bf16.gmra.mxu0 %v2168
      %v2335 = vpop.f32.mrf.mxu0
      %v2336 = vadd.f32 0.0, %v2335
      %v2337 = vpop.f32.mrf.mxu0
      %v2338 = vadd.f32 0.0, %v2337
      %2339 = vmatmul.bf16.gmra.mxu0 %v2169
      %v2340 = vpop.f32.mrf.mxu0
      %v2341 = vadd.f32 0.0, %v2340
      %v2342 = vpop.f32.mrf.mxu0
      %v2343 = vadd.f32 0.0, %v2342
      %2344 = vmatmul.bf16.gmra.mxu0 %v2170
      %v2345 = vpop.f32.mrf.mxu0
      %v2346 = vadd.f32 0.0, %v2345
      %v2347 = vpop.f32.mrf.mxu0
      %v2348 = vadd.f32 0.0, %v2347
      %2349 = vmatmul.bf16.gmra.mxu0 %v2171
      %v2350 = vpop.f32.mrf.mxu0
      %v2351 = vadd.f32 0.0, %v2350
      %v2352 = vpop.f32.mrf.mxu0
      %v2353 = vadd.f32 0.0, %v2352
      %2354 = vmatmul.bf16.gmra.mxu0 %v2172
      %v2355 = vpop.f32.mrf.mxu0
      %v2356 = vadd.f32 0.0, %v2355
      %v2357 = vpop.f32.mrf.mxu0
      %v2358 = vadd.f32 0.0, %v2357
      %2359 = vmatmul.bf16.gmra.mxu0 %v2173
      %v2360 = vpop.f32.mrf.mxu0
      %v2361 = vadd.f32 0.0, %v2360
      %v2362 = vpop.f32.mrf.mxu0
      %v2363 = vadd.f32 0.0, %v2362
      %2364 = vmatmul.bf16.gmra.mxu0 %v2174
      %v2365 = vpop.f32.mrf.mxu0
      %v2366 = vadd.f32 0.0, %v2365
      %v2367 = vpop.f32.mrf.mxu0
      %v2368 = vadd.f32 0.0, %v2367
      %2369 = vmatmul.bf16.gmra.mxu0 %v2175
      %v2370 = vpop.f32.mrf.mxu0
      %v2371 = vadd.f32 0.0, %v2370
      %v2372 = vpop.f32.mrf.mxu0
      %v2373 = vadd.f32 0.0, %v2372
      %2374 = vmatmul.bf16.gmra.mxu0 %v2176
      %v2375 = vpop.f32.mrf.mxu0
      %v2376 = vadd.f32 0.0, %v2375
      %v2377 = vpop.f32.mrf.mxu0
      %v2378 = vadd.f32 0.0, %v2377
      %2379 = vmatmul.bf16.gmra.mxu0 %v2177
      %v2380 = vpop.f32.mrf.mxu0
      %v2381 = vadd.f32 0.0, %v2380
      %v2382 = vpop.f32.mrf.mxu0
      %v2383 = vadd.f32 0.0, %v2382
      %2384 = vmatmul.bf16.gmra.mxu0 %v2178
      %v2385 = vpop.f32.mrf.mxu0
      %v2386 = vadd.f32 0.0, %v2385
      %v2387 = vpop.f32.mrf.mxu0
      %v2388 = vadd.f32 0.0, %v2387
      %2389 = vmatmul.bf16.gmra.mxu0 %v2179
      %v2390 = vpop.f32.mrf.mxu0
      %v2391 = vadd.f32 0.0, %v2390
      %v2392 = vpop.f32.mrf.mxu0
      %v2393 = vadd.f32 0.0, %v2392
      %2394 = vmatmul.bf16.gmra.mxu0 %v2180
      %v2395 = vpop.f32.mrf.mxu0
      %v2396 = vadd.f32 0.0, %v2395
      %v2397 = vpop.f32.mrf.mxu0
      %v2398 = vadd.f32 0.0, %v2397
      %2399 = vdwg.mxu0
      %v2400 = vadd.f32 %v1468, %v2266
      %v2401 = vadd.f32 %v1469, %v2268
      %v2402 = vadd.f32 %v1470, %v2271
      %v2403 = vadd.f32 %v1471, %v2273
      %v2404 = vadd.f32 %v1472, %v2276
      %v2405 = vadd.f32 %v1473, %v2278
      %v2406 = vadd.f32 %v1474, %v2281
      %v2407 = vadd.f32 %v1475, %v2283
      %v2408 = vadd.f32 %v1476, %v2286
      %v2409 = vadd.f32 %v1477, %v2288
      %v2410 = vadd.f32 %v1478, %v2291
      %v2411 = vadd.f32 %v1479, %v2293
      %v2412 = vadd.f32 %v1480, %v2296
      %v2413 = vadd.f32 %v1481, %v2298
      %v2414 = vadd.f32 %v1482, %v2301
      %v2415 = vadd.f32 %v1483, %v2303
      %v2416 = vadd.f32 %v1484, %v2306
      %v2417 = vadd.f32 %v1485, %v2308
      %v2418 = vadd.f32 %v1486, %v2311
      %v2419 = vadd.f32 %v1487, %v2313
      %v2420 = vadd.f32 %v1488, %v2316
      %v2421 = vadd.f32 %v1489, %v2318
      %v2422 = vadd.f32 %v1490, %v2321
      %v2423 = vadd.f32 %v1491, %v2323
      %v2424 = vadd.f32 %v1492, %v2326
      %v2425 = vadd.f32 %v1493, %v2328
      %v2426 = vadd.f32 %v1494, %v2331
      %v2427 = vadd.f32 %v1495, %v2333
      %v2428 = vadd.f32 %v1496, %v2336
      %v2429 = vadd.f32 %v1497, %v2338
      %v2430 = vadd.f32 %v1498, %v2341
      %v2431 = vadd.f32 %v1499, %v2343
      %v2432 = vadd.f32 %v1500, %v2346
      %v2433 = vadd.f32 %v1501, %v2348
      %v2434 = vadd.f32 %v1502, %v2351
      %v2435 = vadd.f32 %v1503, %v2353
      %v2436 = vadd.f32 %v1504, %v2356
      %v2437 = vadd.f32 %v1505, %v2358
      %v2438 = vadd.f32 %v1506, %v2361
      %v2439 = vadd.f32 %v1507, %v2363
      %v2440 = vadd.f32 %v1508, %v2366
      %v2441 = vadd.f32 %v1509, %v2368
      %v2442 = vadd.f32 %v1510, %v2371
      %v2443 = vadd.f32 %v1511, %v2373
      %v2444 = vadd.f32 %v1512, %v2376
      %v2445 = vadd.f32 %v1513, %v2378
      %v2446 = vadd.f32 %v1514, %v2381
      %v2447 = vadd.f32 %v1515, %v2383
      %v2448 = vadd.f32 %v1516, %v2386
      %v2449 = vadd.f32 %v1517, %v2388
      %v2450 = vadd.f32 %v1518, %v2391
      %v2451 = vadd.f32 %v1519, %v2393
      %v2452 = vadd.f32 %v1520, %v2396
      %v2453 = vadd.f32 %v1521, %v2398
      %v2455 = vshrl.u32 %v377, 16
      %v2457 = vrot.slane %v2455, 7
      %v2458 = vrot.slane %v2457, 4
      %v2460 = vshrl.u32 %v378, 16
      %v2462 = vrot.slane %v2460, 7
      %v2463 = vshll.u32 %v378, 16
      %v2465 = vor.u32 %v2462, %v2463
      %v2466 = vsel %vm1524, %v2458, %v2465
      %v2467 = vrot.slane %v2462, 4
      %v2469 = vshrl.u32 %v379, 16
      %v2471 = vrot.slane %v2469, 7
      %v2472 = vshll.u32 %v379, 16
      %v2474 = vor.u32 %v2471, %v2472
      %v2475 = vsel %vm1524, %v2467, %v2474
      %v2476 = vrot.slane %v2471, 4
      %v2478 = vshrl.u32 %v380, 16
      %v2480 = vrot.slane %v2478, 7
      %v2481 = vshll.u32 %v380, 16
      %v2483 = vor.u32 %v2480, %v2481
      %v2484 = vsel %vm1524, %v2476, %v2483
      %s2485 = scalar_lea.vmem %s1, 256
      %v2486 = vld [vmem:[%s2485] sm:$0xf]
      %v2487 = vld [vmem:[%s2485 + $0x4] sm:$0xf]
      %v2488 = vld [vmem:[%s2485 + $0x8] sm:$0xf]
      %v2489 = vld [vmem:[%s2485 + $0xc] sm:$0xf]
      %v2490 = vld [vmem:[%s2485 + $0x10] sm:$0xf]
      %v2491 = vld [vmem:[%s2485 + $0x14] sm:$0xf]
      %v2492 = vld [vmem:[%s2485 + $0x18] sm:$0xf]
      %v2493 = vld [vmem:[%s2485 + $0x1c] sm:$0xf]
      %v2494 = vld [vmem:[%s2485 + $0x20] sm:$0xf]
      %v2495 = vld [vmem:[%s2485 + $0x24] sm:$0xf]
      %v2496 = vld [vmem:[%s2485 + $0x28] sm:$0xf]
      %v2497 = vld [vmem:[%s2485 + $0x2c] sm:$0xf]
      %v2498 = vld [vmem:[%s2485 + $0x30] sm:$0xf]
      %v2499 = vld [vmem:[%s2485 + $0x34] sm:$0xf]
      %v2500 = vld [vmem:[%s2485 + $0x38] sm:$0xf]
      %v2501 = vld [vmem:[%s2485 + $0x3c] sm:$0xf]
      %v2502 = vunpack.c.l.b16 %v2466
      %v2503 = vunpack.c.l.b16 %v2475
      %v2504 = vunpack.c.l.b16 %v2484
      %v2505 = vpack.c.b16 %v2104, %v2103
      %v2506 = vpack.c.b16 %v2106, %v2105
      %v2507 = vpack.c.b16 %v2108, %v2107
      %v2508 = vpack.c.b16 %v2110, %v2109
      %v2509 = vpack.c.b16 %v2112, %v2111
      %v2510 = vpack.c.b16 %v2114, %v2113
      %v2511 = vpack.c.b16 %v2116, %v2115
      %v2512 = vpack.c.b16 %v2118, %v2117
      %v2513 = vpack.c.b16 %v2120, %v2119
      %v2514 = vpack.c.b16 %v2122, %v2121
      %v2515 = vpack.c.b16 %v2124, %v2123
      %v2516 = vpack.c.b16 %v2126, %v2125
      %v2517 = vpack.c.b16 %v2128, %v2127
      %v2518 = vpack.c.b16 %v2130, %v2129
      %v2519 = vpack.c.b16 %v2132, %v2131
      %v2520 = vpack.c.b16 %v2134, %v2133
      %v2521 = vpack.c.b16 %v2136, %v2135
      %v2522 = vpack.c.b16 %v2138, %v2137
      %v2523 = vpack.c.b16 %v2140, %v2139
      %v2524 = vpack.c.b16 %v2142, %v2141
      %v2525 = vpack.c.b16 %v2144, %v2143
      %v2526 = vpack.c.b16 %v2146, %v2145
      %v2527 = vpack.c.b16 %v2148, %v2147
      %v2528 = vpack.c.b16 %v2150, %v2149
      %v2529 = vpack.c.b16 %v2152, %v2151
      %v2530 = vpack.c.b16 %v2502, %v2153
      %v2531 = vpack.c.b16 %v2504, %v2503
      %v2575 = vunpack.c.l.b16 %v2486
      %v2576 = vunpack.c.l.b16 %v2487
      %v2577 = vunpack.c.l.b16 %v2488
      %v2578 = vunpack.c.l.b16 %v2489
      %v2579 = vunpack.c.l.b16 %v2490
      %v2580 = vunpack.c.l.b16 %v2491
      %v2581 = vunpack.c.l.b16 %v2492
      %v2582 = vunpack.c.l.b16 %v2493
      %v2583 = vunpack.c.l.b16 %v2494
      %v2584 = vunpack.c.l.b16 %v2495
      %v2585 = vunpack.c.l.b16 %v2496
      %v2586 = vunpack.c.l.b16 %v2497
      %v2587 = vunpack.c.l.b16 %v2498
      %v2588 = vunpack.c.l.b16 %v2499
      %v2589 = vunpack.c.l.b16 %v2500
      %v2590 = vunpack.c.l.b16 %v2501
      %v2591 = vpack.c.b16 %v2576, %v2575
      %v2592 = vpack.c.b16 %v2578, %v2577
      %v2593 = vpack.c.b16 %v2580, %v2579
      %v2594 = vpack.c.b16 %v2582, %v2581
      %v2595 = vpack.c.b16 %v2584, %v2583
      %v2596 = vpack.c.b16 %v2586, %v2585
      %v2597 = vpack.c.b16 %v2588, %v2587
      %v2598 = vpack.c.b16 %v2590, %v2589
      %2607 = vmatpush.bf16.msra.mxu0 %v2598
      %2608 = vmatpush.bf16.msra.mxu0 %v2597
      %2609 = vmatpush.bf16.msra.mxu0 %v2596
      %2610 = vmatpush.bf16.msra.mxu0 %v2595
      %2611 = vmatpush.bf16.msra.mxu0 %v2594
      %2612 = vmatpush.bf16.msra.mxu0 %v2593
      %2613 = vmatpush.bf16.msra.mxu0 %v2592
      %2614 = vmatpush.bf16.msra.mxu0 %v2591
      %2615 = vmatmul.bf16.gmra.mxu0 %v2505
      %v2616 = vpop.f32.mrf.mxu0
      %v2617 = vadd.f32 0.0, %v2616
      %v2618 = vpop.f32.mrf.mxu0
      %v2619 = vadd.f32 0.0, %v2618
      %2620 = vmatmul.bf16.gmra.mxu0 %v2506
      %v2621 = vpop.f32.mrf.mxu0
      %v2622 = vadd.f32 0.0, %v2621
      %v2623 = vpop.f32.mrf.mxu0
      %v2624 = vadd.f32 0.0, %v2623
      %2625 = vmatmul.bf16.gmra.mxu0 %v2507
      %v2626 = vpop.f32.mrf.mxu0
      %v2627 = vadd.f32 0.0, %v2626
      %v2628 = vpop.f32.mrf.mxu0
      %v2629 = vadd.f32 0.0, %v2628
      %2630 = vmatmul.bf16.gmra.mxu0 %v2508
      %v2631 = vpop.f32.mrf.mxu0
      %v2632 = vadd.f32 0.0, %v2631
      %v2633 = vpop.f32.mrf.mxu0
      %v2634 = vadd.f32 0.0, %v2633
      %2635 = vmatmul.bf16.gmra.mxu0 %v2509
      %v2636 = vpop.f32.mrf.mxu0
      %v2637 = vadd.f32 0.0, %v2636
      %v2638 = vpop.f32.mrf.mxu0
      %v2639 = vadd.f32 0.0, %v2638
      %2640 = vmatmul.bf16.gmra.mxu0 %v2510
      %v2641 = vpop.f32.mrf.mxu0
      %v2642 = vadd.f32 0.0, %v2641
      %v2643 = vpop.f32.mrf.mxu0
      %v2644 = vadd.f32 0.0, %v2643
      %2645 = vmatmul.bf16.gmra.mxu0 %v2511
      %v2646 = vpop.f32.mrf.mxu0
      %v2647 = vadd.f32 0.0, %v2646
      %v2648 = vpop.f32.mrf.mxu0
      %v2649 = vadd.f32 0.0, %v2648
      %2650 = vmatmul.bf16.gmra.mxu0 %v2512
      %v2651 = vpop.f32.mrf.mxu0
      %v2652 = vadd.f32 0.0, %v2651
      %v2653 = vpop.f32.mrf.mxu0
      %v2654 = vadd.f32 0.0, %v2653
      %2655 = vmatmul.bf16.gmra.mxu0 %v2513
      %v2656 = vpop.f32.mrf.mxu0
      %v2657 = vadd.f32 0.0, %v2656
      %v2658 = vpop.f32.mrf.mxu0
      %v2659 = vadd.f32 0.0, %v2658
      %2660 = vmatmul.bf16.gmra.mxu0 %v2514
      %v2661 = vpop.f32.mrf.mxu0
      %v2662 = vadd.f32 0.0, %v2661
      %v2663 = vpop.f32.mrf.mxu0
      %v2664 = vadd.f32 0.0, %v2663
      %2665 = vmatmul.bf16.gmra.mxu0 %v2515
      %v2666 = vpop.f32.mrf.mxu0
      %v2667 = vadd.f32 0.0, %v2666
      %v2668 = vpop.f32.mrf.mxu0
      %v2669 = vadd.f32 0.0, %v2668
      %2670 = vmatmul.bf16.gmra.mxu0 %v2516
      %v2671 = vpop.f32.mrf.mxu0
      %v2672 = vadd.f32 0.0, %v2671
      %v2673 = vpop.f32.mrf.mxu0
      %v2674 = vadd.f32 0.0, %v2673
      %2675 = vmatmul.bf16.gmra.mxu0 %v2517
      %v2676 = vpop.f32.mrf.mxu0
      %v2677 = vadd.f32 0.0, %v2676
      %v2678 = vpop.f32.mrf.mxu0
      %v2679 = vadd.f32 0.0, %v2678
      %2680 = vmatmul.bf16.gmra.mxu0 %v2518
      %v2681 = vpop.f32.mrf.mxu0
      %v2682 = vadd.f32 0.0, %v2681
      %v2683 = vpop.f32.mrf.mxu0
      %v2684 = vadd.f32 0.0, %v2683
      %2685 = vmatmul.bf16.gmra.mxu0 %v2519
      %v2686 = vpop.f32.mrf.mxu0
      %v2687 = vadd.f32 0.0, %v2686
      %v2688 = vpop.f32.mrf.mxu0
      %v2689 = vadd.f32 0.0, %v2688
      %2690 = vmatmul.bf16.gmra.mxu0 %v2520
      %v2691 = vpop.f32.mrf.mxu0
      %v2692 = vadd.f32 0.0, %v2691
      %v2693 = vpop.f32.mrf.mxu0
      %v2694 = vadd.f32 0.0, %v2693
      %2695 = vmatmul.bf16.gmra.mxu0 %v2521
      %v2696 = vpop.f32.mrf.mxu0
      %v2697 = vadd.f32 0.0, %v2696
      %v2698 = vpop.f32.mrf.mxu0
      %v2699 = vadd.f32 0.0, %v2698
      %2700 = vmatmul.bf16.gmra.mxu0 %v2522
      %v2701 = vpop.f32.mrf.mxu0
      %v2702 = vadd.f32 0.0, %v2701
      %v2703 = vpop.f32.mrf.mxu0
      %v2704 = vadd.f32 0.0, %v2703
      %2705 = vmatmul.bf16.gmra.mxu0 %v2523
      %v2706 = vpop.f32.mrf.mxu0
      %v2707 = vadd.f32 0.0, %v2706
      %v2708 = vpop.f32.mrf.mxu0
      %v2709 = vadd.f32 0.0, %v2708
      %2710 = vmatmul.bf16.gmra.mxu0 %v2524
      %v2711 = vpop.f32.mrf.mxu0
      %v2712 = vadd.f32 0.0, %v2711
      %v2713 = vpop.f32.mrf.mxu0
      %v2714 = vadd.f32 0.0, %v2713
      %2715 = vmatmul.bf16.gmra.mxu0 %v2525
      %v2716 = vpop.f32.mrf.mxu0
      %v2717 = vadd.f32 0.0, %v2716
      %v2718 = vpop.f32.mrf.mxu0
      %v2719 = vadd.f32 0.0, %v2718
      %2720 = vmatmul.bf16.gmra.mxu0 %v2526
      %v2721 = vpop.f32.mrf.mxu0
      %v2722 = vadd.f32 0.0, %v2721
      %v2723 = vpop.f32.mrf.mxu0
      %v2724 = vadd.f32 0.0, %v2723
      %2725 = vmatmul.bf16.gmra.mxu0 %v2527
      %v2726 = vpop.f32.mrf.mxu0
      %v2727 = vadd.f32 0.0, %v2726
      %v2728 = vpop.f32.mrf.mxu0
      %v2729 = vadd.f32 0.0, %v2728
      %2730 = vmatmul.bf16.gmra.mxu0 %v2528
      %v2731 = vpop.f32.mrf.mxu0
      %v2732 = vadd.f32 0.0, %v2731
      %v2733 = vpop.f32.mrf.mxu0
      %v2734 = vadd.f32 0.0, %v2733
      %2735 = vmatmul.bf16.gmra.mxu0 %v2529
      %v2736 = vpop.f32.mrf.mxu0
      %v2737 = vadd.f32 0.0, %v2736
      %v2738 = vpop.f32.mrf.mxu0
      %v2739 = vadd.f32 0.0, %v2738
      %2740 = vmatmul.bf16.gmra.mxu0 %v2530
      %v2741 = vpop.f32.mrf.mxu0
      %v2742 = vadd.f32 0.0, %v2741
      %v2743 = vpop.f32.mrf.mxu0
      %v2744 = vadd.f32 0.0, %v2743
      %2745 = vmatmul.bf16.gmra.mxu0 %v2531
      %v2746 = vpop.f32.mrf.mxu0
      %v2747 = vadd.f32 0.0, %v2746
      %v2748 = vpop.f32.mrf.mxu0
      %v2749 = vadd.f32 0.0, %v2748
      %2750 = vdwg.mxu0
      %v2751 = vadd.f32 %v2400, %v2617
      %v2752 = vadd.f32 %v2401, %v2619
      %v2753 = vadd.f32 %v2402, %v2622
      %v2754 = vadd.f32 %v2403, %v2624
      %v2755 = vadd.f32 %v2404, %v2627
      %v2756 = vadd.f32 %v2405, %v2629
      %v2757 = vadd.f32 %v2406, %v2632
      %v2758 = vadd.f32 %v2407, %v2634
      %v2759 = vadd.f32 %v2408, %v2637
      %v2760 = vadd.f32 %v2409, %v2639
      %v2761 = vadd.f32 %v2410, %v2642
      %v2762 = vadd.f32 %v2411, %v2644
      %v2763 = vadd.f32 %v2412, %v2647
      %v2764 = vadd.f32 %v2413, %v2649
      %v2765 = vadd.f32 %v2414, %v2652
      %v2766 = vadd.f32 %v2415, %v2654
      %v2767 = vadd.f32 %v2416, %v2657
      %v2768 = vadd.f32 %v2417, %v2659
      %v2769 = vadd.f32 %v2418, %v2662
      %v2770 = vadd.f32 %v2419, %v2664
      %v2771 = vadd.f32 %v2420, %v2667
      %v2772 = vadd.f32 %v2421, %v2669
      %v2773 = vadd.f32 %v2422, %v2672
      %v2774 = vadd.f32 %v2423, %v2674
      %v2775 = vadd.f32 %v2424, %v2677
      %v2776 = vadd.f32 %v2425, %v2679
      %v2777 = vadd.f32 %v2426, %v2682
      %v2778 = vadd.f32 %v2427, %v2684
      %v2779 = vadd.f32 %v2428, %v2687
      %v2780 = vadd.f32 %v2429, %v2689
      %v2781 = vadd.f32 %v2430, %v2692
      %v2782 = vadd.f32 %v2431, %v2694
      %v2783 = vadd.f32 %v2432, %v2697
      %v2784 = vadd.f32 %v2433, %v2699
      %v2785 = vadd.f32 %v2434, %v2702
      %v2786 = vadd.f32 %v2435, %v2704
      %v2787 = vadd.f32 %v2436, %v2707
      %v2788 = vadd.f32 %v2437, %v2709
      %v2789 = vadd.f32 %v2438, %v2712
      %v2790 = vadd.f32 %v2439, %v2714
      %v2791 = vadd.f32 %v2440, %v2717
      %v2792 = vadd.f32 %v2441, %v2719
      %v2793 = vadd.f32 %v2442, %v2722
      %v2794 = vadd.f32 %v2443, %v2724
      %v2795 = vadd.f32 %v2444, %v2727
      %v2796 = vadd.f32 %v2445, %v2729
      %v2797 = vadd.f32 %v2446, %v2732
      %v2798 = vadd.f32 %v2447, %v2734
      %v2799 = vadd.f32 %v2448, %v2737
      %v2800 = vadd.f32 %v2449, %v2739
      %v2801 = vadd.f32 %v2450, %v2742
      %v2802 = vadd.f32 %v2451, %v2744
      %v2803 = vadd.f32 %v2452, %v2747
      %v2804 = vadd.f32 %v2453, %v2749
      %v2806 = vshrl.u32 %v381, 16
      %v2808 = vrot.slane %v2806, 7
      %v2809 = vrot.slane %v2808, 4
      %v2811 = vshrl.u32 %v382, 16
      %v2813 = vrot.slane %v2811, 7
      %v2814 = vshll.u32 %v382, 16
      %v2816 = vor.u32 %v2813, %v2814
      %v2817 = vsel %vm1524, %v2809, %v2816
      %v2818 = vrot.slane %v2813, 4
      %v2820 = vshrl.u32 %v383, 16
      %v2822 = vrot.slane %v2820, 7
      %v2823 = vshll.u32 %v383, 16
      %v2825 = vor.u32 %v2822, %v2823
      %v2826 = vsel %vm1524, %v2818, %v2825
      %v2827 = vrot.slane %v2822, 4
      %v2829 = vshrl.u32 %v384, 16
      %v2831 = vrot.slane %v2829, 7
      %v2832 = vshll.u32 %v384, 16
      %v2834 = vor.u32 %v2831, %v2832
      %v2835 = vsel %vm1524, %v2827, %v2834
      %s2836 = scalar_lea.vmem %s1, 320
      %v2837 = vld [vmem:[%s2836] sm:$0xf]
      %v2838 = vld [vmem:[%s2836 + $0x4] sm:$0xf]
      %v2839 = vld [vmem:[%s2836 + $0x8] sm:$0xf]
      %v2840 = vld [vmem:[%s2836 + $0xc] sm:$0xf]
      %v2841 = vld [vmem:[%s2836 + $0x10] sm:$0xf]
      %v2842 = vld [vmem:[%s2836 + $0x14] sm:$0xf]
      %v2843 = vld [vmem:[%s2836 + $0x18] sm:$0xf]
      %v2844 = vld [vmem:[%s2836 + $0x1c] sm:$0xf]
      %v2845 = vld [vmem:[%s2836 + $0x20] sm:$0xf]
      %v2846 = vld [vmem:[%s2836 + $0x24] sm:$0xf]
      %v2847 = vld [vmem:[%s2836 + $0x28] sm:$0xf]
      %v2848 = vld [vmem:[%s2836 + $0x2c] sm:$0xf]
      %v2849 = vld [vmem:[%s2836 + $0x30] sm:$0xf]
      %v2850 = vld [vmem:[%s2836 + $0x34] sm:$0xf]
      %v2851 = vld [vmem:[%s2836 + $0x38] sm:$0xf]
      %v2852 = vld [vmem:[%s2836 + $0x3c] sm:$0xf]
      %v2853 = vunpack.c.l.b16 %v2817
      %v2854 = vunpack.c.l.b16 %v2826
      %v2855 = vunpack.c.l.b16 %v2835
      %v2856 = vpack.c.b16 %v2503, %v2502
      %v2857 = vpack.c.b16 %v2853, %v2504
      %v2858 = vpack.c.b16 %v2855, %v2854
      %v2878 = vunpack.c.l.b16 %v2837
      %v2879 = vunpack.c.l.b16 %v2838
      %v2880 = vunpack.c.l.b16 %v2839
      %v2881 = vunpack.c.l.b16 %v2840
      %v2882 = vunpack.c.l.b16 %v2841
      %v2883 = vunpack.c.l.b16 %v2842
      %v2884 = vunpack.c.l.b16 %v2843
      %v2885 = vunpack.c.l.b16 %v2844
      %v2886 = vunpack.c.l.b16 %v2845
      %v2887 = vunpack.c.l.b16 %v2846
      %v2888 = vunpack.c.l.b16 %v2847
      %v2889 = vunpack.c.l.b16 %v2848
      %v2890 = vunpack.c.l.b16 %v2849
      %v2891 = vunpack.c.l.b16 %v2850
      %v2892 = vunpack.c.l.b16 %v2851
      %v2893 = vunpack.c.l.b16 %v2852
      %v2894 = vpack.c.b16 %v2879, %v2878
      %v2895 = vpack.c.b16 %v2881, %v2880
      %v2896 = vpack.c.b16 %v2883, %v2882
      %v2897 = vpack.c.b16 %v2885, %v2884
      %v2898 = vpack.c.b16 %v2887, %v2886
      %v2899 = vpack.c.b16 %v2889, %v2888
      %v2900 = vpack.c.b16 %v2891, %v2890
      %v2901 = vpack.c.b16 %v2893, %v2892
      %2910 = vmatpush.bf16.msra.mxu0 %v2901
      %2911 = vmatpush.bf16.msra.mxu0 %v2900
      %2912 = vmatpush.bf16.msra.mxu0 %v2899
      %2913 = vmatpush.bf16.msra.mxu0 %v2898
      %2914 = vmatpush.bf16.msra.mxu0 %v2897
      %2915 = vmatpush.bf16.msra.mxu0 %v2896
      %2916 = vmatpush.bf16.msra.mxu0 %v2895
      %2917 = vmatpush.bf16.msra.mxu0 %v2894
      %2918 = vmatmul.bf16.gmra.mxu0 %v2157
      %v2919 = vpop.f32.mrf.mxu0
      %v2920 = vadd.f32 0.0, %v2919
      %v2921 = vpop.f32.mrf.mxu0
      %v2922 = vadd.f32 0.0, %v2921
      %2923 = vmatmul.bf16.gmra.mxu0 %v2158
      %v2924 = vpop.f32.mrf.mxu0
      %v2925 = vadd.f32 0.0, %v2924
      %v2926 = vpop.f32.mrf.mxu0
      %v2927 = vadd.f32 0.0, %v2926
      %2928 = vmatmul.bf16.gmra.mxu0 %v2159
      %v2929 = vpop.f32.mrf.mxu0
      %v2930 = vadd.f32 0.0, %v2929
      %v2931 = vpop.f32.mrf.mxu0
      %v2932 = vadd.f32 0.0, %v2931
      %2933 = vmatmul.bf16.gmra.mxu0 %v2160
      %v2934 = vpop.f32.mrf.mxu0
      %v2935 = vadd.f32 0.0, %v2934
      %v2936 = vpop.f32.mrf.mxu0
      %v2937 = vadd.f32 0.0, %v2936
      %2938 = vmatmul.bf16.gmra.mxu0 %v2161
      %v2939 = vpop.f32.mrf.mxu0
      %v2940 = vadd.f32 0.0, %v2939
      %v2941 = vpop.f32.mrf.mxu0
      %v2942 = vadd.f32 0.0, %v2941
      %2943 = vmatmul.bf16.gmra.mxu0 %v2162
      %v2944 = vpop.f32.mrf.mxu0
      %v2945 = vadd.f32 0.0, %v2944
      %v2946 = vpop.f32.mrf.mxu0
      %v2947 = vadd.f32 0.0, %v2946
      %2948 = vmatmul.bf16.gmra.mxu0 %v2163
      %v2949 = vpop.f32.mrf.mxu0
      %v2950 = vadd.f32 0.0, %v2949
      %v2951 = vpop.f32.mrf.mxu0
      %v2952 = vadd.f32 0.0, %v2951
      %2953 = vmatmul.bf16.gmra.mxu0 %v2164
      %v2954 = vpop.f32.mrf.mxu0
      %v2955 = vadd.f32 0.0, %v2954
      %v2956 = vpop.f32.mrf.mxu0
      %v2957 = vadd.f32 0.0, %v2956
      %2958 = vmatmul.bf16.gmra.mxu0 %v2165
      %v2959 = vpop.f32.mrf.mxu0
      %v2960 = vadd.f32 0.0, %v2959
      %v2961 = vpop.f32.mrf.mxu0
      %v2962 = vadd.f32 0.0, %v2961
      %2963 = vmatmul.bf16.gmra.mxu0 %v2166
      %v2964 = vpop.f32.mrf.mxu0
      %v2965 = vadd.f32 0.0, %v2964
      %v2966 = vpop.f32.mrf.mxu0
      %v2967 = vadd.f32 0.0, %v2966
      %2968 = vmatmul.bf16.gmra.mxu0 %v2167
      %v2969 = vpop.f32.mrf.mxu0
      %v2970 = vadd.f32 0.0, %v2969
      %v2971 = vpop.f32.mrf.mxu0
      %v2972 = vadd.f32 0.0, %v2971
      %2973 = vmatmul.bf16.gmra.mxu0 %v2168
      %v2974 = vpop.f32.mrf.mxu0
      %v2975 = vadd.f32 0.0, %v2974
      %v2976 = vpop.f32.mrf.mxu0
      %v2977 = vadd.f32 0.0, %v2976
      %2978 = vmatmul.bf16.gmra.mxu0 %v2169
      %v2979 = vpop.f32.mrf.mxu0
      %v2980 = vadd.f32 0.0, %v2979
      %v2981 = vpop.f32.mrf.mxu0
      %v2982 = vadd.f32 0.0, %v2981
      %2983 = vmatmul.bf16.gmra.mxu0 %v2170
      %v2984 = vpop.f32.mrf.mxu0
      %v2985 = vadd.f32 0.0, %v2984
      %v2986 = vpop.f32.mrf.mxu0
      %v2987 = vadd.f32 0.0, %v2986
      %2988 = vmatmul.bf16.gmra.mxu0 %v2171
      %v2989 = vpop.f32.mrf.mxu0
      %v2990 = vadd.f32 0.0, %v2989
      %v2991 = vpop.f32.mrf.mxu0
      %v2992 = vadd.f32 0.0, %v2991
      %2993 = vmatmul.bf16.gmra.mxu0 %v2172
      %v2994 = vpop.f32.mrf.mxu0
      %v2995 = vadd.f32 0.0, %v2994
      %v2996 = vpop.f32.mrf.mxu0
      %v2997 = vadd.f32 0.0, %v2996
      %2998 = vmatmul.bf16.gmra.mxu0 %v2173
      %v2999 = vpop.f32.mrf.mxu0
      %v3000 = vadd.f32 0.0, %v2999
      %v3001 = vpop.f32.mrf.mxu0
      %v3002 = vadd.f32 0.0, %v3001
      %3003 = vmatmul.bf16.gmra.mxu0 %v2174
      %v3004 = vpop.f32.mrf.mxu0
      %v3005 = vadd.f32 0.0, %v3004
      %v3006 = vpop.f32.mrf.mxu0
      %v3007 = vadd.f32 0.0, %v3006
      %3008 = vmatmul.bf16.gmra.mxu0 %v2175
      %v3009 = vpop.f32.mrf.mxu0
      %v3010 = vadd.f32 0.0, %v3009
      %v3011 = vpop.f32.mrf.mxu0
      %v3012 = vadd.f32 0.0, %v3011
      %3013 = vmatmul.bf16.gmra.mxu0 %v2176
      %v3014 = vpop.f32.mrf.mxu0
      %v3015 = vadd.f32 0.0, %v3014
      %v3016 = vpop.f32.mrf.mxu0
      %v3017 = vadd.f32 0.0, %v3016
      %3018 = vmatmul.bf16.gmra.mxu0 %v2177
      %v3019 = vpop.f32.mrf.mxu0
      %v3020 = vadd.f32 0.0, %v3019
      %v3021 = vpop.f32.mrf.mxu0
      %v3022 = vadd.f32 0.0, %v3021
      %3023 = vmatmul.bf16.gmra.mxu0 %v2178
      %v3024 = vpop.f32.mrf.mxu0
      %v3025 = vadd.f32 0.0, %v3024
      %v3026 = vpop.f32.mrf.mxu0
      %v3027 = vadd.f32 0.0, %v3026
      %3028 = vmatmul.bf16.gmra.mxu0 %v2179
      %v3029 = vpop.f32.mrf.mxu0
      %v3030 = vadd.f32 0.0, %v3029
      %v3031 = vpop.f32.mrf.mxu0
      %v3032 = vadd.f32 0.0, %v3031
      %3033 = vmatmul.bf16.gmra.mxu0 %v2180
      %v3034 = vpop.f32.mrf.mxu0
      %v3035 = vadd.f32 0.0, %v3034
      %v3036 = vpop.f32.mrf.mxu0
      %v3037 = vadd.f32 0.0, %v3036
      %3038 = vmatmul.bf16.gmra.mxu0 %v2856
      %v3039 = vpop.f32.mrf.mxu0
      %v3040 = vadd.f32 0.0, %v3039
      %v3041 = vpop.f32.mrf.mxu0
      %v3042 = vadd.f32 0.0, %v3041
      %3043 = vmatmul.bf16.gmra.mxu0 %v2857
      %v3044 = vpop.f32.mrf.mxu0
      %v3045 = vadd.f32 0.0, %v3044
      %v3046 = vpop.f32.mrf.mxu0
      %v3047 = vadd.f32 0.0, %v3046
      %3048 = vmatmul.bf16.gmra.mxu0 %v2858
      %v3049 = vpop.f32.mrf.mxu0
      %v3050 = vadd.f32 0.0, %v3049
      %v3051 = vpop.f32.mrf.mxu0
      %v3052 = vadd.f32 0.0, %v3051
      %3053 = vdwg.mxu0
      %v3054 = vadd.f32 %v2751, %v2920
      %v3055 = vadd.f32 %v2752, %v2922
      %v3056 = vadd.f32 %v2753, %v2925
      %v3057 = vadd.f32 %v2754, %v2927
      %v3058 = vadd.f32 %v2755, %v2930
      %v3059 = vadd.f32 %v2756, %v2932
      %v3060 = vadd.f32 %v2757, %v2935
      %v3061 = vadd.f32 %v2758, %v2937
      %v3062 = vadd.f32 %v2759, %v2940
      %v3063 = vadd.f32 %v2760, %v2942
      %v3064 = vadd.f32 %v2761, %v2945
      %v3065 = vadd.f32 %v2762, %v2947
      %v3066 = vadd.f32 %v2763, %v2950
      %v3067 = vadd.f32 %v2764, %v2952
      %v3068 = vadd.f32 %v2765, %v2955
      %v3069 = vadd.f32 %v2766, %v2957
      %v3070 = vadd.f32 %v2767, %v2960
      %v3071 = vadd.f32 %v2768, %v2962
      %v3072 = vadd.f32 %v2769, %v2965
      %v3073 = vadd.f32 %v2770, %v2967
      %v3074 = vadd.f32 %v2771, %v2970
      %v3075 = vadd.f32 %v2772, %v2972
      %v3076 = vadd.f32 %v2773, %v2975
      %v3077 = vadd.f32 %v2774, %v2977
      %v3078 = vadd.f32 %v2775, %v2980
      %v3079 = vadd.f32 %v2776, %v2982
      %v3080 = vadd.f32 %v2777, %v2985
      %v3081 = vadd.f32 %v2778, %v2987
      %v3082 = vadd.f32 %v2779, %v2990
      %v3083 = vadd.f32 %v2780, %v2992
      %v3084 = vadd.f32 %v2781, %v2995
      %v3085 = vadd.f32 %v2782, %v2997
      %v3086 = vadd.f32 %v2783, %v3000
      %v3087 = vadd.f32 %v2784, %v3002
      %v3088 = vadd.f32 %v2785, %v3005
      %v3089 = vadd.f32 %v2786, %v3007
      %v3090 = vadd.f32 %v2787, %v3010
      %v3091 = vadd.f32 %v2788, %v3012
      %v3092 = vadd.f32 %v2789, %v3015
      %v3093 = vadd.f32 %v2790, %v3017
      %v3094 = vadd.f32 %v2791, %v3020
      %v3095 = vadd.f32 %v2792, %v3022
      %v3096 = vadd.f32 %v2793, %v3025
      %v3097 = vadd.f32 %v2794, %v3027
      %v3098 = vadd.f32 %v2795, %v3030
      %v3099 = vadd.f32 %v2796, %v3032
      %v3100 = vadd.f32 %v2797, %v3035
      %v3101 = vadd.f32 %v2798, %v3037
      %v3102 = vadd.f32 %v2799, %v3040
      %v3103 = vadd.f32 %v2800, %v3042
      %v3104 = vadd.f32 %v2801, %v3045
      %v3105 = vadd.f32 %v2802, %v3047
      %v3106 = vadd.f32 %v2803, %v3050
      %v3107 = vadd.f32 %v2804, %v3052
      %s3108 = scalar_lea.vmem %s1, 384
      %v3109 = vld [vmem:[%s3108] sm:$0xf]
      %v3110 = vld [vmem:[%s3108 + $0x4] sm:$0xf]
      %v3111 = vld [vmem:[%s3108 + $0x8] sm:$0xf]
      %v3112 = vld [vmem:[%s3108 + $0xc] sm:$0xf]
      %v3113 = vld [vmem:[%s3108 + $0x10] sm:$0xf]
      %v3114 = vld [vmem:[%s3108 + $0x14] sm:$0xf]
      %v3115 = vld [vmem:[%s3108 + $0x18] sm:$0xf]
      %v3116 = vld [vmem:[%s3108 + $0x1c] sm:$0xf]
      %v3117 = vld [vmem:[%s3108 + $0x20] sm:$0xf]
      %v3118 = vld [vmem:[%s3108 + $0x24] sm:$0xf]
      %v3119 = vld [vmem:[%s3108 + $0x28] sm:$0xf]
      %v3120 = vld [vmem:[%s3108 + $0x2c] sm:$0xf]
      %v3121 = vld [vmem:[%s3108 + $0x30] sm:$0xf]
      %v3122 = vld [vmem:[%s3108 + $0x34] sm:$0xf]
      %v3123 = vld [vmem:[%s3108 + $0x38] sm:$0xf]
      %v3124 = vld [vmem:[%s3108 + $0x3c] sm:$0xf]
      %v3125 = vunpack.c.l.b16 %v306
      %v3126 = vunpack.c.l.b16 %v307
      %v3127 = vunpack.c.l.b16 %v308
      %v3128 = vunpack.c.l.b16 %v310
      %v3129 = vunpack.c.l.b16 %v311
      %v3130 = vunpack.c.l.b16 %v312
      %v3131 = vunpack.c.l.b16 %v314
      %v3132 = vunpack.c.l.b16 %v315
      %v3133 = vunpack.c.l.b16 %v316
      %v3134 = vunpack.c.l.b16 %v318
      %v3135 = vunpack.c.l.b16 %v319
      %v3136 = vunpack.c.l.b16 %v320
      %v3137 = vunpack.c.l.b16 %v322
      %v3138 = vunpack.c.l.b16 %v323
      %v3139 = vunpack.c.l.b16 %v324
      %v3140 = vunpack.c.l.b16 %v326
      %v3141 = vunpack.c.l.b16 %v327
      %v3142 = vunpack.c.l.b16 %v328
      %v3143 = vunpack.c.l.b16 %v330
      %v3144 = vunpack.c.l.b16 %v331
      %v3145 = vunpack.c.l.b16 %v332
      %v3146 = vunpack.c.l.b16 %v334
      %v3147 = vunpack.c.l.b16 %v335
      %v3148 = vunpack.c.l.b16 %v336
      %v3149 = vunpack.c.l.b16 %v338
      %v3150 = vunpack.c.l.b16 %v339
      %v3151 = vunpack.c.l.b16 %v340
      %v3152 = vunpack.c.l.b16 %v342
      %v3153 = vunpack.c.l.b16 %v343
      %v3154 = vunpack.c.l.b16 %v344
      %v3155 = vunpack.c.l.b16 %v346
      %v3156 = vunpack.c.l.b16 %v347
      %v3157 = vunpack.c.l.b16 %v348
      %v3158 = vunpack.c.l.b16 %v350
      %v3159 = vunpack.c.l.b16 %v351
      %v3160 = vunpack.c.l.b16 %v352
      %v3161 = vunpack.c.l.b16 %v354
      %v3162 = vunpack.c.l.b16 %v355
      %v3163 = vunpack.c.l.b16 %v356
      %v3164 = vunpack.c.l.b16 %v358
      %v3165 = vunpack.c.l.b16 %v359
      %v3166 = vunpack.c.l.b16 %v360
      %v3167 = vunpack.c.l.b16 %v362
      %v3168 = vunpack.c.l.b16 %v363
      %v3169 = vunpack.c.l.b16 %v364
      %v3170 = vunpack.c.l.b16 %v366
      %v3171 = vunpack.c.l.b16 %v367
      %v3172 = vunpack.c.l.b16 %v368
      %v3173 = vunpack.c.l.b16 %v370
      %v3174 = vunpack.c.l.b16 %v371
      %v3175 = vunpack.c.l.b16 %v372
      %v3176 = vunpack.c.l.b16 %v374
      %v3177 = vunpack.c.l.b16 %v375
      %v3178 = vunpack.c.l.b16 %v376
      %v3179 = vpack.c.b16 %v3126, %v3125
      %v3180 = vpack.c.b16 %v3128, %v3127
      %v3181 = vpack.c.b16 %v3130, %v3129
      %v3182 = vpack.c.b16 %v3132, %v3131
      %v3183 = vpack.c.b16 %v3134, %v3133
      %v3184 = vpack.c.b16 %v3136, %v3135
      %v3185 = vpack.c.b16 %v3138, %v3137
      %v3186 = vpack.c.b16 %v3140, %v3139
      %v3187 = vpack.c.b16 %v3142, %v3141
      %v3188 = vpack.c.b16 %v3144, %v3143
      %v3189 = vpack.c.b16 %v3146, %v3145
      %v3190 = vpack.c.b16 %v3148, %v3147
      %v3191 = vpack.c.b16 %v3150, %v3149
      %v3192 = vpack.c.b16 %v3152, %v3151
      %v3193 = vpack.c.b16 %v3154, %v3153
      %v3194 = vpack.c.b16 %v3156, %v3155
      %v3195 = vpack.c.b16 %v3158, %v3157
      %v3196 = vpack.c.b16 %v3160, %v3159
      %v3197 = vpack.c.b16 %v3162, %v3161
      %v3198 = vpack.c.b16 %v3164, %v3163
      %v3199 = vpack.c.b16 %v3166, %v3165
      %v3200 = vpack.c.b16 %v3168, %v3167
      %v3201 = vpack.c.b16 %v3170, %v3169
      %v3202 = vpack.c.b16 %v3172, %v3171
      %v3203 = vpack.c.b16 %v3174, %v3173
      %v3204 = vpack.c.b16 %v3176, %v3175
      %v3205 = vpack.c.b16 %v3178, %v3177
      %v3249 = vunpack.c.l.b16 %v3109
      %v3250 = vunpack.c.l.b16 %v3110
      %v3251 = vunpack.c.l.b16 %v3111
      %v3252 = vunpack.c.l.b16 %v3112
      %v3253 = vunpack.c.l.b16 %v3113
      %v3254 = vunpack.c.l.b16 %v3114
      %v3255 = vunpack.c.l.b16 %v3115
      %v3256 = vunpack.c.l.b16 %v3116
      %v3257 = vunpack.c.l.b16 %v3117
      %v3258 = vunpack.c.l.b16 %v3118
      %v3259 = vunpack.c.l.b16 %v3119
      %v3260 = vunpack.c.l.b16 %v3120
      %v3261 = vunpack.c.l.b16 %v3121
      %v3262 = vunpack.c.l.b16 %v3122
      %v3263 = vunpack.c.l.b16 %v3123
      %v3264 = vunpack.c.l.b16 %v3124
      %v3265 = vpack.c.b16 %v3250, %v3249
      %v3266 = vpack.c.b16 %v3252, %v3251
      %v3267 = vpack.c.b16 %v3254, %v3253
      %v3268 = vpack.c.b16 %v3256, %v3255
      %v3269 = vpack.c.b16 %v3258, %v3257
      %v3270 = vpack.c.b16 %v3260, %v3259
      %v3271 = vpack.c.b16 %v3262, %v3261
      %v3272 = vpack.c.b16 %v3264, %v3263
      %3281 = vmatpush.bf16.msra.mxu0 %v3272
      %3282 = vmatpush.bf16.msra.mxu0 %v3271
      %3283 = vmatpush.bf16.msra.mxu0 %v3270
      %3284 = vmatpush.bf16.msra.mxu0 %v3269
      %3285 = vmatpush.bf16.msra.mxu0 %v3268
      %3286 = vmatpush.bf16.msra.mxu0 %v3267
      %3287 = vmatpush.bf16.msra.mxu0 %v3266
      %3288 = vmatpush.bf16.msra.mxu0 %v3265
      %3289 = vmatmul.bf16.gmra.mxu0 %v3179
      %v3290 = vpop.f32.mrf.mxu0
      %v3291 = vadd.f32 0.0, %v3290
      %v3292 = vpop.f32.mrf.mxu0
      %v3293 = vadd.f32 0.0, %v3292
      %3294 = vmatmul.bf16.gmra.mxu0 %v3180
      %v3295 = vpop.f32.mrf.mxu0
      %v3296 = vadd.f32 0.0, %v3295
      %v3297 = vpop.f32.mrf.mxu0
      %v3298 = vadd.f32 0.0, %v3297
      %3299 = vmatmul.bf16.gmra.mxu0 %v3181
      %v3300 = vpop.f32.mrf.mxu0
      %v3301 = vadd.f32 0.0, %v3300
      %v3302 = vpop.f32.mrf.mxu0
      %v3303 = vadd.f32 0.0, %v3302
      %3304 = vmatmul.bf16.gmra.mxu0 %v3182
      %v3305 = vpop.f32.mrf.mxu0
      %v3306 = vadd.f32 0.0, %v3305
      %v3307 = vpop.f32.mrf.mxu0
      %v3308 = vadd.f32 0.0, %v3307
      %3309 = vmatmul.bf16.gmra.mxu0 %v3183
      %v3310 = vpop.f32.mrf.mxu0
      %v3311 = vadd.f32 0.0, %v3310
      %v3312 = vpop.f32.mrf.mxu0
      %v3313 = vadd.f32 0.0, %v3312
      %3314 = vmatmul.bf16.gmra.mxu0 %v3184
      %v3315 = vpop.f32.mrf.mxu0
      %v3316 = vadd.f32 0.0, %v3315
      %v3317 = vpop.f32.mrf.mxu0
      %v3318 = vadd.f32 0.0, %v3317
      %3319 = vmatmul.bf16.gmra.mxu0 %v3185
      %v3320 = vpop.f32.mrf.mxu0
      %v3321 = vadd.f32 0.0, %v3320
      %v3322 = vpop.f32.mrf.mxu0
      %v3323 = vadd.f32 0.0, %v3322
      %3324 = vmatmul.bf16.gmra.mxu0 %v3186
      %v3325 = vpop.f32.mrf.mxu0
      %v3326 = vadd.f32 0.0, %v3325
      %v3327 = vpop.f32.mrf.mxu0
      %v3328 = vadd.f32 0.0, %v3327
      %3329 = vmatmul.bf16.gmra.mxu0 %v3187
      %v3330 = vpop.f32.mrf.mxu0
      %v3331 = vadd.f32 0.0, %v3330
      %v3332 = vpop.f32.mrf.mxu0
      %v3333 = vadd.f32 0.0, %v3332
      %3334 = vmatmul.bf16.gmra.mxu0 %v3188
      %v3335 = vpop.f32.mrf.mxu0
      %v3336 = vadd.f32 0.0, %v3335
      %v3337 = vpop.f32.mrf.mxu0
      %v3338 = vadd.f32 0.0, %v3337
      %3339 = vmatmul.bf16.gmra.mxu0 %v3189
      %v3340 = vpop.f32.mrf.mxu0
      %v3341 = vadd.f32 0.0, %v3340
      %v3342 = vpop.f32.mrf.mxu0
      %v3343 = vadd.f32 0.0, %v3342
      %3344 = vmatmul.bf16.gmra.mxu0 %v3190
      %v3345 = vpop.f32.mrf.mxu0
      %v3346 = vadd.f32 0.0, %v3345
      %v3347 = vpop.f32.mrf.mxu0
      %v3348 = vadd.f32 0.0, %v3347
      %3349 = vmatmul.bf16.gmra.mxu0 %v3191
      %v3350 = vpop.f32.mrf.mxu0
      %v3351 = vadd.f32 0.0, %v3350
      %v3352 = vpop.f32.mrf.mxu0
      %v3353 = vadd.f32 0.0, %v3352
      %3354 = vmatmul.bf16.gmra.mxu0 %v3192
      %v3355 = vpop.f32.mrf.mxu0
      %v3356 = vadd.f32 0.0, %v3355
      %v3357 = vpop.f32.mrf.mxu0
      %v3358 = vadd.f32 0.0, %v3357
      %3359 = vmatmul.bf16.gmra.mxu0 %v3193
      %v3360 = vpop.f32.mrf.mxu0
      %v3361 = vadd.f32 0.0, %v3360
      %v3362 = vpop.f32.mrf.mxu0
      %v3363 = vadd.f32 0.0, %v3362
      %3364 = vmatmul.bf16.gmra.mxu0 %v3194
      %v3365 = vpop.f32.mrf.mxu0
      %v3366 = vadd.f32 0.0, %v3365
      %v3367 = vpop.f32.mrf.mxu0
      %v3368 = vadd.f32 0.0, %v3367
      %3369 = vmatmul.bf16.gmra.mxu0 %v3195
      %v3370 = vpop.f32.mrf.mxu0
      %v3371 = vadd.f32 0.0, %v3370
      %v3372 = vpop.f32.mrf.mxu0
      %v3373 = vadd.f32 0.0, %v3372
      %3374 = vmatmul.bf16.gmra.mxu0 %v3196
      %v3375 = vpop.f32.mrf.mxu0
      %v3376 = vadd.f32 0.0, %v3375
      %v3377 = vpop.f32.mrf.mxu0
      %v3378 = vadd.f32 0.0, %v3377
      %3379 = vmatmul.bf16.gmra.mxu0 %v3197
      %v3380 = vpop.f32.mrf.mxu0
      %v3381 = vadd.f32 0.0, %v3380
      %v3382 = vpop.f32.mrf.mxu0
      %v3383 = vadd.f32 0.0, %v3382
      %3384 = vmatmul.bf16.gmra.mxu0 %v3198
      %v3385 = vpop.f32.mrf.mxu0
      %v3386 = vadd.f32 0.0, %v3385
      %v3387 = vpop.f32.mrf.mxu0
      %v3388 = vadd.f32 0.0, %v3387
      %3389 = vmatmul.bf16.gmra.mxu0 %v3199
      %v3390 = vpop.f32.mrf.mxu0
      %v3391 = vadd.f32 0.0, %v3390
      %v3392 = vpop.f32.mrf.mxu0
      %v3393 = vadd.f32 0.0, %v3392
      %3394 = vmatmul.bf16.gmra.mxu0 %v3200
      %v3395 = vpop.f32.mrf.mxu0
      %v3396 = vadd.f32 0.0, %v3395
      %v3397 = vpop.f32.mrf.mxu0
      %v3398 = vadd.f32 0.0, %v3397
      %3399 = vmatmul.bf16.gmra.mxu0 %v3201
      %v3400 = vpop.f32.mrf.mxu0
      %v3401 = vadd.f32 0.0, %v3400
      %v3402 = vpop.f32.mrf.mxu0
      %v3403 = vadd.f32 0.0, %v3402
      %3404 = vmatmul.bf16.gmra.mxu0 %v3202
      %v3405 = vpop.f32.mrf.mxu0
      %v3406 = vadd.f32 0.0, %v3405
      %v3407 = vpop.f32.mrf.mxu0
      %v3408 = vadd.f32 0.0, %v3407
      %3409 = vmatmul.bf16.gmra.mxu0 %v3203
      %v3410 = vpop.f32.mrf.mxu0
      %v3411 = vadd.f32 0.0, %v3410
      %v3412 = vpop.f32.mrf.mxu0
      %v3413 = vadd.f32 0.0, %v3412
      %3414 = vmatmul.bf16.gmra.mxu0 %v3204
      %v3415 = vpop.f32.mrf.mxu0
      %v3416 = vadd.f32 0.0, %v3415
      %v3417 = vpop.f32.mrf.mxu0
      %v3418 = vadd.f32 0.0, %v3417
      %3419 = vmatmul.bf16.gmra.mxu0 %v3205
      %v3420 = vpop.f32.mrf.mxu0
      %v3421 = vadd.f32 0.0, %v3420
      %v3422 = vpop.f32.mrf.mxu0
      %v3423 = vadd.f32 0.0, %v3422
      %3424 = vdwg.mxu0
      %v3425 = vadd.f32 %v3054, %v3291
      %v3426 = vadd.f32 %v3055, %v3293
      %v3427 = vadd.f32 %v3056, %v3296
      %v3428 = vadd.f32 %v3057, %v3298
      %v3429 = vadd.f32 %v3058, %v3301
      %v3430 = vadd.f32 %v3059, %v3303
      %v3431 = vadd.f32 %v3060, %v3306
      %v3432 = vadd.f32 %v3061, %v3308
      %v3433 = vadd.f32 %v3062, %v3311
      %v3434 = vadd.f32 %v3063, %v3313
      %v3435 = vadd.f32 %v3064, %v3316
      %v3436 = vadd.f32 %v3065, %v3318
      %v3437 = vadd.f32 %v3066, %v3321
      %v3438 = vadd.f32 %v3067, %v3323
      %v3439 = vadd.f32 %v3068, %v3326
      %v3440 = vadd.f32 %v3069, %v3328
      %v3441 = vadd.f32 %v3070, %v3331
      %v3442 = vadd.f32 %v3071, %v3333
      %v3443 = vadd.f32 %v3072, %v3336
      %v3444 = vadd.f32 %v3073, %v3338
      %v3445 = vadd.f32 %v3074, %v3341
      %v3446 = vadd.f32 %v3075, %v3343
      %v3447 = vadd.f32 %v3076, %v3346
      %v3448 = vadd.f32 %v3077, %v3348
      %v3449 = vadd.f32 %v3078, %v3351
      %v3450 = vadd.f32 %v3079, %v3353
      %v3451 = vadd.f32 %v3080, %v3356
      %v3452 = vadd.f32 %v3081, %v3358
      %v3453 = vadd.f32 %v3082, %v3361
      %v3454 = vadd.f32 %v3083, %v3363
      %v3455 = vadd.f32 %v3084, %v3366
      %v3456 = vadd.f32 %v3085, %v3368
      %v3457 = vadd.f32 %v3086, %v3371
      %v3458 = vadd.f32 %v3087, %v3373
      %v3459 = vadd.f32 %v3088, %v3376
      %v3460 = vadd.f32 %v3089, %v3378
      %v3461 = vadd.f32 %v3090, %v3381
      %v3462 = vadd.f32 %v3091, %v3383
      %v3463 = vadd.f32 %v3092, %v3386
      %v3464 = vadd.f32 %v3093, %v3388
      %v3465 = vadd.f32 %v3094, %v3391
      %v3466 = vadd.f32 %v3095, %v3393
      %v3467 = vadd.f32 %v3096, %v3396
      %v3468 = vadd.f32 %v3097, %v3398
      %v3469 = vadd.f32 %v3098, %v3401
      %v3470 = vadd.f32 %v3099, %v3403
      %v3471 = vadd.f32 %v3100, %v3406
      %v3472 = vadd.f32 %v3101, %v3408
      %v3473 = vadd.f32 %v3102, %v3411
      %v3474 = vadd.f32 %v3103, %v3413
      %v3475 = vadd.f32 %v3104, %v3416
      %v3476 = vadd.f32 %v3105, %v3418
      %v3477 = vadd.f32 %v3106, %v3421
      %v3478 = vadd.f32 %v3107, %v3423
      %s3479 = scalar_lea.vmem %s1, 448
      %v3480 = vld [vmem:[%s3479] sm:$0xf]
      %v3481 = vld [vmem:[%s3479 + $0x4] sm:$0xf]
      %v3482 = vld [vmem:[%s3479 + $0x8] sm:$0xf]
      %v3483 = vld [vmem:[%s3479 + $0xc] sm:$0xf]
      %v3484 = vld [vmem:[%s3479 + $0x10] sm:$0xf]
      %v3485 = vld [vmem:[%s3479 + $0x14] sm:$0xf]
      %v3486 = vld [vmem:[%s3479 + $0x18] sm:$0xf]
      %v3487 = vld [vmem:[%s3479 + $0x1c] sm:$0xf]
      %v3488 = vld [vmem:[%s3479 + $0x20] sm:$0xf]
      %v3489 = vld [vmem:[%s3479 + $0x24] sm:$0xf]
      %v3490 = vld [vmem:[%s3479 + $0x28] sm:$0xf]
      %v3491 = vld [vmem:[%s3479 + $0x2c] sm:$0xf]
      %v3492 = vld [vmem:[%s3479 + $0x30] sm:$0xf]
      %v3493 = vld [vmem:[%s3479 + $0x34] sm:$0xf]
      %v3494 = vld [vmem:[%s3479 + $0x38] sm:$0xf]
      %v3495 = vld [vmem:[%s3479 + $0x3c] sm:$0xf]
      %v3496 = vunpack.c.l.b16 %v378
      %v3497 = vunpack.c.l.b16 %v379
      %v3498 = vunpack.c.l.b16 %v380
      %v3499 = vpack.c.b16 %v3129, %v3128
      %v3500 = vpack.c.b16 %v3131, %v3130
      %v3501 = vpack.c.b16 %v3133, %v3132
      %v3502 = vpack.c.b16 %v3135, %v3134
      %v3503 = vpack.c.b16 %v3137, %v3136
      %v3504 = vpack.c.b16 %v3139, %v3138
      %v3505 = vpack.c.b16 %v3141, %v3140
      %v3506 = vpack.c.b16 %v3143, %v3142
      %v3507 = vpack.c.b16 %v3145, %v3144
      %v3508 = vpack.c.b16 %v3147, %v3146
      %v3509 = vpack.c.b16 %v3149, %v3148
      %v3510 = vpack.c.b16 %v3151, %v3150
      %v3511 = vpack.c.b16 %v3153, %v3152
      %v3512 = vpack.c.b16 %v3155, %v3154
      %v3513 = vpack.c.b16 %v3157, %v3156
      %v3514 = vpack.c.b16 %v3159, %v3158
      %v3515 = vpack.c.b16 %v3161, %v3160
      %v3516 = vpack.c.b16 %v3163, %v3162
      %v3517 = vpack.c.b16 %v3165, %v3164
      %v3518 = vpack.c.b16 %v3167, %v3166
      %v3519 = vpack.c.b16 %v3169, %v3168
      %v3520 = vpack.c.b16 %v3171, %v3170
      %v3521 = vpack.c.b16 %v3173, %v3172
      %v3522 = vpack.c.b16 %v3175, %v3174
      %v3523 = vpack.c.b16 %v3177, %v3176
      %v3524 = vpack.c.b16 %v3496, %v3178
      %v3525 = vpack.c.b16 %v3498, %v3497
      %v3569 = vunpack.c.l.b16 %v3480
      %v3570 = vunpack.c.l.b16 %v3481
      %v3571 = vunpack.c.l.b16 %v3482
      %v3572 = vunpack.c.l.b16 %v3483
      %v3573 = vunpack.c.l.b16 %v3484
      %v3574 = vunpack.c.l.b16 %v3485
      %v3575 = vunpack.c.l.b16 %v3486
      %v3576 = vunpack.c.l.b16 %v3487
      %v3577 = vunpack.c.l.b16 %v3488
      %v3578 = vunpack.c.l.b16 %v3489
      %v3579 = vunpack.c.l.b16 %v3490
      %v3580 = vunpack.c.l.b16 %v3491
      %v3581 = vunpack.c.l.b16 %v3492
      %v3582 = vunpack.c.l.b16 %v3493
      %v3583 = vunpack.c.l.b16 %v3494
      %v3584 = vunpack.c.l.b16 %v3495
      %v3585 = vpack.c.b16 %v3570, %v3569
      %v3586 = vpack.c.b16 %v3572, %v3571
      %v3587 = vpack.c.b16 %v3574, %v3573
      %v3588 = vpack.c.b16 %v3576, %v3575
      %v3589 = vpack.c.b16 %v3578, %v3577
      %v3590 = vpack.c.b16 %v3580, %v3579
      %v3591 = vpack.c.b16 %v3582, %v3581
      %v3592 = vpack.c.b16 %v3584, %v3583
      %3601 = vmatpush.bf16.msra.mxu0 %v3592
      %3602 = vmatpush.bf16.msra.mxu0 %v3591
      %3603 = vmatpush.bf16.msra.mxu0 %v3590
      %3604 = vmatpush.bf16.msra.mxu0 %v3589
      %3605 = vmatpush.bf16.msra.mxu0 %v3588
      %3606 = vmatpush.bf16.msra.mxu0 %v3587
      %3607 = vmatpush.bf16.msra.mxu0 %v3586
      %3608 = vmatpush.bf16.msra.mxu0 %v3585
      %3609 = vmatmul.bf16.gmra.mxu0 %v3499
      %v3610 = vpop.f32.mrf.mxu0
      %v3611 = vadd.f32 0.0, %v3610
      %v3612 = vpop.f32.mrf.mxu0
      %v3613 = vadd.f32 0.0, %v3612
      %3614 = vmatmul.bf16.gmra.mxu0 %v3500
      %v3615 = vpop.f32.mrf.mxu0
      %v3616 = vadd.f32 0.0, %v3615
      %v3617 = vpop.f32.mrf.mxu0
      %v3618 = vadd.f32 0.0, %v3617
      %3619 = vmatmul.bf16.gmra.mxu0 %v3501
      %v3620 = vpop.f32.mrf.mxu0
      %v3621 = vadd.f32 0.0, %v3620
      %v3622 = vpop.f32.mrf.mxu0
      %v3623 = vadd.f32 0.0, %v3622
      %3624 = vmatmul.bf16.gmra.mxu0 %v3502
      %v3625 = vpop.f32.mrf.mxu0
      %v3626 = vadd.f32 0.0, %v3625
      %v3627 = vpop.f32.mrf.mxu0
      %v3628 = vadd.f32 0.0, %v3627
      %3629 = vmatmul.bf16.gmra.mxu0 %v3503
      %v3630 = vpop.f32.mrf.mxu0
      %v3631 = vadd.f32 0.0, %v3630
      %v3632 = vpop.f32.mrf.mxu0
      %v3633 = vadd.f32 0.0, %v3632
      %3634 = vmatmul.bf16.gmra.mxu0 %v3504
      %v3635 = vpop.f32.mrf.mxu0
      %v3636 = vadd.f32 0.0, %v3635
      %v3637 = vpop.f32.mrf.mxu0
      %v3638 = vadd.f32 0.0, %v3637
      %3639 = vmatmul.bf16.gmra.mxu0 %v3505
      %v3640 = vpop.f32.mrf.mxu0
      %v3641 = vadd.f32 0.0, %v3640
      %v3642 = vpop.f32.mrf.mxu0
      %v3643 = vadd.f32 0.0, %v3642
      %3644 = vmatmul.bf16.gmra.mxu0 %v3506
      %v3645 = vpop.f32.mrf.mxu0
      %v3646 = vadd.f32 0.0, %v3645
      %v3647 = vpop.f32.mrf.mxu0
      %v3648 = vadd.f32 0.0, %v3647
      %3649 = vmatmul.bf16.gmra.mxu0 %v3507
      %v3650 = vpop.f32.mrf.mxu0
      %v3651 = vadd.f32 0.0, %v3650
      %v3652 = vpop.f32.mrf.mxu0
      %v3653 = vadd.f32 0.0, %v3652
      %3654 = vmatmul.bf16.gmra.mxu0 %v3508
      %v3655 = vpop.f32.mrf.mxu0
      %v3656 = vadd.f32 0.0, %v3655
      %v3657 = vpop.f32.mrf.mxu0
      %v3658 = vadd.f32 0.0, %v3657
      %3659 = vmatmul.bf16.gmra.mxu0 %v3509
      %v3660 = vpop.f32.mrf.mxu0
      %v3661 = vadd.f32 0.0, %v3660
      %v3662 = vpop.f32.mrf.mxu0
      %v3663 = vadd.f32 0.0, %v3662
      %3664 = vmatmul.bf16.gmra.mxu0 %v3510
      %v3665 = vpop.f32.mrf.mxu0
      %v3666 = vadd.f32 0.0, %v3665
      %v3667 = vpop.f32.mrf.mxu0
      %v3668 = vadd.f32 0.0, %v3667
      %3669 = vmatmul.bf16.gmra.mxu0 %v3511
      %v3670 = vpop.f32.mrf.mxu0
      %v3671 = vadd.f32 0.0, %v3670
      %v3672 = vpop.f32.mrf.mxu0
      %v3673 = vadd.f32 0.0, %v3672
      %3674 = vmatmul.bf16.gmra.mxu0 %v3512
      %v3675 = vpop.f32.mrf.mxu0
      %v3676 = vadd.f32 0.0, %v3675
      %v3677 = vpop.f32.mrf.mxu0
      %v3678 = vadd.f32 0.0, %v3677
      %3679 = vmatmul.bf16.gmra.mxu0 %v3513
      %v3680 = vpop.f32.mrf.mxu0
      %v3681 = vadd.f32 0.0, %v3680
      %v3682 = vpop.f32.mrf.mxu0
      %v3683 = vadd.f32 0.0, %v3682
      %3684 = vmatmul.bf16.gmra.mxu0 %v3514
      %v3685 = vpop.f32.mrf.mxu0
      %v3686 = vadd.f32 0.0, %v3685
      %v3687 = vpop.f32.mrf.mxu0
      %v3688 = vadd.f32 0.0, %v3687
      %3689 = vmatmul.bf16.gmra.mxu0 %v3515
      %v3690 = vpop.f32.mrf.mxu0
      %v3691 = vadd.f32 0.0, %v3690
      %v3692 = vpop.f32.mrf.mxu0
      %v3693 = vadd.f32 0.0, %v3692
      %3694 = vmatmul.bf16.gmra.mxu0 %v3516
      %v3695 = vpop.f32.mrf.mxu0
      %v3696 = vadd.f32 0.0, %v3695
      %v3697 = vpop.f32.mrf.mxu0
      %v3698 = vadd.f32 0.0, %v3697
      %3699 = vmatmul.bf16.gmra.mxu0 %v3517
      %v3700 = vpop.f32.mrf.mxu0
      %v3701 = vadd.f32 0.0, %v3700
      %v3702 = vpop.f32.mrf.mxu0
      %v3703 = vadd.f32 0.0, %v3702
      %3704 = vmatmul.bf16.gmra.mxu0 %v3518
      %v3705 = vpop.f32.mrf.mxu0
      %v3706 = vadd.f32 0.0, %v3705
      %v3707 = vpop.f32.mrf.mxu0
      %v3708 = vadd.f32 0.0, %v3707
      %3709 = vmatmul.bf16.gmra.mxu0 %v3519
      %v3710 = vpop.f32.mrf.mxu0
      %v3711 = vadd.f32 0.0, %v3710
      %v3712 = vpop.f32.mrf.mxu0
      %v3713 = vadd.f32 0.0, %v3712
      %3714 = vmatmul.bf16.gmra.mxu0 %v3520
      %v3715 = vpop.f32.mrf.mxu0
      %v3716 = vadd.f32 0.0, %v3715
      %v3717 = vpop.f32.mrf.mxu0
      %v3718 = vadd.f32 0.0, %v3717
      %3719 = vmatmul.bf16.gmra.mxu0 %v3521
      %v3720 = vpop.f32.mrf.mxu0
      %v3721 = vadd.f32 0.0, %v3720
      %v3722 = vpop.f32.mrf.mxu0
      %v3723 = vadd.f32 0.0, %v3722
      %3724 = vmatmul.bf16.gmra.mxu0 %v3522
      %v3725 = vpop.f32.mrf.mxu0
      %v3726 = vadd.f32 0.0, %v3725
      %v3727 = vpop.f32.mrf.mxu0
      %v3728 = vadd.f32 0.0, %v3727
      %3729 = vmatmul.bf16.gmra.mxu0 %v3523
      %v3730 = vpop.f32.mrf.mxu0
      %v3731 = vadd.f32 0.0, %v3730
      %v3732 = vpop.f32.mrf.mxu0
      %v3733 = vadd.f32 0.0, %v3732
      %3734 = vmatmul.bf16.gmra.mxu0 %v3524
      %v3735 = vpop.f32.mrf.mxu0
      %v3736 = vadd.f32 0.0, %v3735
      %v3737 = vpop.f32.mrf.mxu0
      %v3738 = vadd.f32 0.0, %v3737
      %3739 = vmatmul.bf16.gmra.mxu0 %v3525
      %v3740 = vpop.f32.mrf.mxu0
      %v3741 = vadd.f32 0.0, %v3740
      %v3742 = vpop.f32.mrf.mxu0
      %v3743 = vadd.f32 0.0, %v3742
      %3744 = vdwg.mxu0
      %v3745 = vadd.f32 %v3425, %v3611
      %v3746 = vadd.f32 %v3426, %v3613
      %v3747 = vadd.f32 %v3427, %v3616
      %v3748 = vadd.f32 %v3428, %v3618
      %v3749 = vadd.f32 %v3429, %v3621
      %v3750 = vadd.f32 %v3430, %v3623
      %v3751 = vadd.f32 %v3431, %v3626
      %v3752 = vadd.f32 %v3432, %v3628
      %v3753 = vadd.f32 %v3433, %v3631
      %v3754 = vadd.f32 %v3434, %v3633
      %v3755 = vadd.f32 %v3435, %v3636
      %v3756 = vadd.f32 %v3436, %v3638
      %v3757 = vadd.f32 %v3437, %v3641
      %v3758 = vadd.f32 %v3438, %v3643
      %v3759 = vadd.f32 %v3439, %v3646
      %v3760 = vadd.f32 %v3440, %v3648
      %v3761 = vadd.f32 %v3441, %v3651
      %v3762 = vadd.f32 %v3442, %v3653
      %v3763 = vadd.f32 %v3443, %v3656
      %v3764 = vadd.f32 %v3444, %v3658
      %v3765 = vadd.f32 %v3445, %v3661
      %v3766 = vadd.f32 %v3446, %v3663
      %v3767 = vadd.f32 %v3447, %v3666
      %v3768 = vadd.f32 %v3448, %v3668
      %v3769 = vadd.f32 %v3449, %v3671
      %v3770 = vadd.f32 %v3450, %v3673
      %v3771 = vadd.f32 %v3451, %v3676
      %v3772 = vadd.f32 %v3452, %v3678
      %v3773 = vadd.f32 %v3453, %v3681
      %v3774 = vadd.f32 %v3454, %v3683
      %v3775 = vadd.f32 %v3455, %v3686
      %v3776 = vadd.f32 %v3456, %v3688
      %v3777 = vadd.f32 %v3457, %v3691
      %v3778 = vadd.f32 %v3458, %v3693
      %v3779 = vadd.f32 %v3459, %v3696
      %v3780 = vadd.f32 %v3460, %v3698
      %v3781 = vadd.f32 %v3461, %v3701
      %v3782 = vadd.f32 %v3462, %v3703
      %v3783 = vadd.f32 %v3463, %v3706
      %v3784 = vadd.f32 %v3464, %v3708
      %v3785 = vadd.f32 %v3465, %v3711
      %v3786 = vadd.f32 %v3466, %v3713
      %v3787 = vadd.f32 %v3467, %v3716
      %v3788 = vadd.f32 %v3468, %v3718
      %v3789 = vadd.f32 %v3469, %v3721
      %v3790 = vadd.f32 %v3470, %v3723
      %v3791 = vadd.f32 %v3471, %v3726
      %v3792 = vadd.f32 %v3472, %v3728
      %v3793 = vadd.f32 %v3473, %v3731
      %v3794 = vadd.f32 %v3474, %v3733
      %v3795 = vadd.f32 %v3475, %v3736
      %v3796 = vadd.f32 %v3476, %v3738
      %v3797 = vadd.f32 %v3477, %v3741
      %v3798 = vadd.f32 %v3478, %v3743
      %s3799 = scalar_lea.vmem %s1, 512
      %v3800 = vld [vmem:[%s3799] sm:$0xf]
      %v3801 = vld [vmem:[%s3799 + $0x4] sm:$0xf]
      %v3802 = vld [vmem:[%s3799 + $0x8] sm:$0xf]
      %v3803 = vld [vmem:[%s3799 + $0xc] sm:$0xf]
      %v3804 = vld [vmem:[%s3799 + $0x10] sm:$0xf]
      %v3805 = vld [vmem:[%s3799 + $0x14] sm:$0xf]
      %v3806 = vld [vmem:[%s3799 + $0x18] sm:$0xf]
      %v3807 = vld [vmem:[%s3799 + $0x1c] sm:$0xf]
      %v3808 = vld [vmem:[%s3799 + $0x20] sm:$0xf]
      %v3809 = vld [vmem:[%s3799 + $0x24] sm:$0xf]
      %v3810 = vld [vmem:[%s3799 + $0x28] sm:$0xf]
      %v3811 = vld [vmem:[%s3799 + $0x2c] sm:$0xf]
      %v3812 = vld [vmem:[%s3799 + $0x30] sm:$0xf]
      %v3813 = vld [vmem:[%s3799 + $0x34] sm:$0xf]
      %v3814 = vld [vmem:[%s3799 + $0x38] sm:$0xf]
      %v3815 = vld [vmem:[%s3799 + $0x3c] sm:$0xf]
      %v3816 = vunpack.c.l.b16 %v382
      %v3817 = vunpack.c.l.b16 %v383
      %v3818 = vunpack.c.l.b16 %v384
      %v3819 = vpack.c.b16 %v3497, %v3496
      %v3820 = vpack.c.b16 %v3816, %v3498
      %v3821 = vpack.c.b16 %v3818, %v3817
      %v3841 = vunpack.c.l.b16 %v3800
      %v3842 = vunpack.c.l.b16 %v3801
      %v3843 = vunpack.c.l.b16 %v3802
      %v3844 = vunpack.c.l.b16 %v3803
      %v3845 = vunpack.c.l.b16 %v3804
      %v3846 = vunpack.c.l.b16 %v3805
      %v3847 = vunpack.c.l.b16 %v3806
      %v3848 = vunpack.c.l.b16 %v3807
      %v3849 = vunpack.c.l.b16 %v3808
      %v3850 = vunpack.c.l.b16 %v3809
      %v3851 = vunpack.c.l.b16 %v3810
      %v3852 = vunpack.c.l.b16 %v3811
      %v3853 = vunpack.c.l.b16 %v3812
      %v3854 = vunpack.c.l.b16 %v3813
      %v3855 = vunpack.c.l.b16 %v3814
      %v3856 = vunpack.c.l.b16 %v3815
      %v3857 = vpack.c.b16 %v3842, %v3841
      %v3858 = vpack.c.b16 %v3844, %v3843
      %v3859 = vpack.c.b16 %v3846, %v3845
      %v3860 = vpack.c.b16 %v3848, %v3847
      %v3861 = vpack.c.b16 %v3850, %v3849
      %v3862 = vpack.c.b16 %v3852, %v3851
      %v3863 = vpack.c.b16 %v3854, %v3853
      %v3864 = vpack.c.b16 %v3856, %v3855
      %3873 = vmatpush.bf16.msra.mxu0 %v3864
      %3874 = vmatpush.bf16.msra.mxu0 %v3863
      %3875 = vmatpush.bf16.msra.mxu0 %v3862
      %3876 = vmatpush.bf16.msra.mxu0 %v3861
      %3877 = vmatpush.bf16.msra.mxu0 %v3860
      %3878 = vmatpush.bf16.msra.mxu0 %v3859
      %3879 = vmatpush.bf16.msra.mxu0 %v3858
      %3880 = vmatpush.bf16.msra.mxu0 %v3857
      %3881 = vmatmul.bf16.gmra.mxu0 %v3182
      %v3882 = vpop.f32.mrf.mxu0
      %v3883 = vadd.f32 0.0, %v3882
      %v3884 = vpop.f32.mrf.mxu0
      %v3885 = vadd.f32 0.0, %v3884
      %3886 = vmatmul.bf16.gmra.mxu0 %v3183
      %v3887 = vpop.f32.mrf.mxu0
      %v3888 = vadd.f32 0.0, %v3887
      %v3889 = vpop.f32.mrf.mxu0
      %v3890 = vadd.f32 0.0, %v3889
      %3891 = vmatmul.bf16.gmra.mxu0 %v3184
      %v3892 = vpop.f32.mrf.mxu0
      %v3893 = vadd.f32 0.0, %v3892
      %v3894 = vpop.f32.mrf.mxu0
      %v3895 = vadd.f32 0.0, %v3894
      %3896 = vmatmul.bf16.gmra.mxu0 %v3185
      %v3897 = vpop.f32.mrf.mxu0
      %v3898 = vadd.f32 0.0, %v3897
      %v3899 = vpop.f32.mrf.mxu0
      %v3900 = vadd.f32 0.0, %v3899
      %3901 = vmatmul.bf16.gmra.mxu0 %v3186
      %v3902 = vpop.f32.mrf.mxu0
      %v3903 = vadd.f32 0.0, %v3902
      %v3904 = vpop.f32.mrf.mxu0
      %v3905 = vadd.f32 0.0, %v3904
      %3906 = vmatmul.bf16.gmra.mxu0 %v3187
      %v3907 = vpop.f32.mrf.mxu0
      %v3908 = vadd.f32 0.0, %v3907
      %v3909 = vpop.f32.mrf.mxu0
      %v3910 = vadd.f32 0.0, %v3909
      %3911 = vmatmul.bf16.gmra.mxu0 %v3188
      %v3912 = vpop.f32.mrf.mxu0
      %v3913 = vadd.f32 0.0, %v3912
      %v3914 = vpop.f32.mrf.mxu0
      %v3915 = vadd.f32 0.0, %v3914
      %3916 = vmatmul.bf16.gmra.mxu0 %v3189
      %v3917 = vpop.f32.mrf.mxu0
      %v3918 = vadd.f32 0.0, %v3917
      %v3919 = vpop.f32.mrf.mxu0
      %v3920 = vadd.f32 0.0, %v3919
      %3921 = vmatmul.bf16.gmra.mxu0 %v3190
      %v3922 = vpop.f32.mrf.mxu0
      %v3923 = vadd.f32 0.0, %v3922
      %v3924 = vpop.f32.mrf.mxu0
      %v3925 = vadd.f32 0.0, %v3924
      %3926 = vmatmul.bf16.gmra.mxu0 %v3191
      %v3927 = vpop.f32.mrf.mxu0
      %v3928 = vadd.f32 0.0, %v3927
      %v3929 = vpop.f32.mrf.mxu0
      %v3930 = vadd.f32 0.0, %v3929
      %3931 = vmatmul.bf16.gmra.mxu0 %v3192
      %v3932 = vpop.f32.mrf.mxu0
      %v3933 = vadd.f32 0.0, %v3932
      %v3934 = vpop.f32.mrf.mxu0
      %v3935 = vadd.f32 0.0, %v3934
      %3936 = vmatmul.bf16.gmra.mxu0 %v3193
      %v3937 = vpop.f32.mrf.mxu0
      %v3938 = vadd.f32 0.0, %v3937
      %v3939 = vpop.f32.mrf.mxu0
      %v3940 = vadd.f32 0.0, %v3939
      %3941 = vmatmul.bf16.gmra.mxu0 %v3194
      %v3942 = vpop.f32.mrf.mxu0
      %v3943 = vadd.f32 0.0, %v3942
      %v3944 = vpop.f32.mrf.mxu0
      %v3945 = vadd.f32 0.0, %v3944
      %3946 = vmatmul.bf16.gmra.mxu0 %v3195
      %v3947 = vpop.f32.mrf.mxu0
      %v3948 = vadd.f32 0.0, %v3947
      %v3949 = vpop.f32.mrf.mxu0
      %v3950 = vadd.f32 0.0, %v3949
      %3951 = vmatmul.bf16.gmra.mxu0 %v3196
      %v3952 = vpop.f32.mrf.mxu0
      %v3953 = vadd.f32 0.0, %v3952
      %v3954 = vpop.f32.mrf.mxu0
      %v3955 = vadd.f32 0.0, %v3954
      %3956 = vmatmul.bf16.gmra.mxu0 %v3197
      %v3957 = vpop.f32.mrf.mxu0
      %v3958 = vadd.f32 0.0, %v3957
      %v3959 = vpop.f32.mrf.mxu0
      %v3960 = vadd.f32 0.0, %v3959
      %3961 = vmatmul.bf16.gmra.mxu0 %v3198
      %v3962 = vpop.f32.mrf.mxu0
      %v3963 = vadd.f32 0.0, %v3962
      %v3964 = vpop.f32.mrf.mxu0
      %v3965 = vadd.f32 0.0, %v3964
      %3966 = vmatmul.bf16.gmra.mxu0 %v3199
      %v3967 = vpop.f32.mrf.mxu0
      %v3968 = vadd.f32 0.0, %v3967
      %v3969 = vpop.f32.mrf.mxu0
      %v3970 = vadd.f32 0.0, %v3969
      %3971 = vmatmul.bf16.gmra.mxu0 %v3200
      %v3972 = vpop.f32.mrf.mxu0
      %v3973 = vadd.f32 0.0, %v3972
      %v3974 = vpop.f32.mrf.mxu0
      %v3975 = vadd.f32 0.0, %v3974
      %3976 = vmatmul.bf16.gmra.mxu0 %v3201
      %v3977 = vpop.f32.mrf.mxu0
      %v3978 = vadd.f32 0.0, %v3977
      %v3979 = vpop.f32.mrf.mxu0
      %v3980 = vadd.f32 0.0, %v3979
      %3981 = vmatmul.bf16.gmra.mxu0 %v3202
      %v3982 = vpop.f32.mrf.mxu0
      %v3983 = vadd.f32 0.0, %v3982
      %v3984 = vpop.f32.mrf.mxu0
      %v3985 = vadd.f32 0.0, %v3984
      %3986 = vmatmul.bf16.gmra.mxu0 %v3203
      %v3987 = vpop.f32.mrf.mxu0
      %v3988 = vadd.f32 0.0, %v3987
      %v3989 = vpop.f32.mrf.mxu0
      %v3990 = vadd.f32 0.0, %v3989
      %3991 = vmatmul.bf16.gmra.mxu0 %v3204
      %v3992 = vpop.f32.mrf.mxu0
      %v3993 = vadd.f32 0.0, %v3992
      %v3994 = vpop.f32.mrf.mxu0
      %v3995 = vadd.f32 0.0, %v3994
      %3996 = vmatmul.bf16.gmra.mxu0 %v3205
      %v3997 = vpop.f32.mrf.mxu0
      %v3998 = vadd.f32 0.0, %v3997
      %v3999 = vpop.f32.mrf.mxu0
      %v4000 = vadd.f32 0.0, %v3999
      %4001 = vmatmul.bf16.gmra.mxu0 %v3819
      %v4002 = vpop.f32.mrf.mxu0
      %v4003 = vadd.f32 0.0, %v4002
      %v4004 = vpop.f32.mrf.mxu0
      %v4005 = vadd.f32 0.0, %v4004
      %4006 = vmatmul.bf16.gmra.mxu0 %v3820
      %v4007 = vpop.f32.mrf.mxu0
      %v4008 = vadd.f32 0.0, %v4007
      %v4009 = vpop.f32.mrf.mxu0
      %v4010 = vadd.f32 0.0, %v4009
      %4011 = vmatmul.bf16.gmra.mxu0 %v3821
      %v4012 = vpop.f32.mrf.mxu0
      %v4013 = vadd.f32 0.0, %v4012
      %v4014 = vpop.f32.mrf.mxu0
      %v4015 = vadd.f32 0.0, %v4014
      %4016 = vdwg.mxu0
      %v4017 = vadd.f32 %v3745, %v3883
      %v4018 = vadd.f32 %v3746, %v3885
      %v4019 = vadd.f32 %v3747, %v3888
      %v4020 = vadd.f32 %v3748, %v3890
      %v4021 = vadd.f32 %v3749, %v3893
      %v4022 = vadd.f32 %v3750, %v3895
      %v4023 = vadd.f32 %v3751, %v3898
      %v4024 = vadd.f32 %v3752, %v3900
      %v4025 = vadd.f32 %v3753, %v3903
      %v4026 = vadd.f32 %v3754, %v3905
      %v4027 = vadd.f32 %v3755, %v3908
      %v4028 = vadd.f32 %v3756, %v3910
      %v4029 = vadd.f32 %v3757, %v3913
      %v4030 = vadd.f32 %v3758, %v3915
      %v4031 = vadd.f32 %v3759, %v3918
      %v4032 = vadd.f32 %v3760, %v3920
      %v4033 = vadd.f32 %v3761, %v3923
      %v4034 = vadd.f32 %v3762, %v3925
      %v4035 = vadd.f32 %v3763, %v3928
      %v4036 = vadd.f32 %v3764, %v3930
      %v4037 = vadd.f32 %v3765, %v3933
      %v4038 = vadd.f32 %v3766, %v3935
      %v4039 = vadd.f32 %v3767, %v3938
      %v4040 = vadd.f32 %v3768, %v3940
      %v4041 = vadd.f32 %v3769, %v3943
      %v4042 = vadd.f32 %v3770, %v3945
      %v4043 = vadd.f32 %v3771, %v3948
      %v4044 = vadd.f32 %v3772, %v3950
      %v4045 = vadd.f32 %v3773, %v3953
      %v4046 = vadd.f32 %v3774, %v3955
      %v4047 = vadd.f32 %v3775, %v3958
      %v4048 = vadd.f32 %v3776, %v3960
      %v4049 = vadd.f32 %v3777, %v3963
      %v4050 = vadd.f32 %v3778, %v3965
      %v4051 = vadd.f32 %v3779, %v3968
      %v4052 = vadd.f32 %v3780, %v3970
      %v4053 = vadd.f32 %v3781, %v3973
      %v4054 = vadd.f32 %v3782, %v3975
      %v4055 = vadd.f32 %v3783, %v3978
      %v4056 = vadd.f32 %v3784, %v3980
      %v4057 = vadd.f32 %v3785, %v3983
      %v4058 = vadd.f32 %v3786, %v3985
      %v4059 = vadd.f32 %v3787, %v3988
      %v4060 = vadd.f32 %v3788, %v3990
      %v4061 = vadd.f32 %v3789, %v3993
      %v4062 = vadd.f32 %v3790, %v3995
      %v4063 = vadd.f32 %v3791, %v3998
      %v4064 = vadd.f32 %v3792, %v4000
      %v4065 = vadd.f32 %v3793, %v4003
      %v4066 = vadd.f32 %v3794, %v4005
      %v4067 = vadd.f32 %v3795, %v4008
      %v4068 = vadd.f32 %v3796, %v4010
      %v4069 = vadd.f32 %v3797, %v4013
      %v4070 = vadd.f32 %v3798, %v4015
      %v4071 = vld [vmem:[%s2] sm:$0x1]
      %v4073 = vperm.slane %v4071, 0
      %v4075 = vadd.f32 %v4017, %v4073
      %v4076 = vadd.f32 %v4018, %v4073
      %v4077 = vadd.f32 %v4019, %v4073
      %v4078 = vadd.f32 %v4020, %v4073
      %v4079 = vadd.f32 %v4021, %v4073
      %v4080 = vadd.f32 %v4022, %v4073
      %v4081 = vadd.f32 %v4023, %v4073
      %v4082 = vadd.f32 %v4024, %v4073
      %v4083 = vadd.f32 %v4025, %v4073
      %v4084 = vadd.f32 %v4026, %v4073
      %v4085 = vadd.f32 %v4027, %v4073
      %v4086 = vadd.f32 %v4028, %v4073
      %v4087 = vadd.f32 %v4029, %v4073
      %v4088 = vadd.f32 %v4030, %v4073
      %v4089 = vadd.f32 %v4031, %v4073
      %v4090 = vadd.f32 %v4032, %v4073
      %v4091 = vadd.f32 %v4033, %v4073
      %v4092 = vadd.f32 %v4034, %v4073
      %v4093 = vadd.f32 %v4035, %v4073
      %v4094 = vadd.f32 %v4036, %v4073
      %v4095 = vadd.f32 %v4037, %v4073
      %v4096 = vadd.f32 %v4038, %v4073
      %v4097 = vadd.f32 %v4039, %v4073
      %v4098 = vadd.f32 %v4040, %v4073
      %v4099 = vadd.f32 %v4041, %v4073
      %v4100 = vadd.f32 %v4042, %v4073
      %v4101 = vadd.f32 %v4043, %v4073
      %v4102 = vadd.f32 %v4044, %v4073
      %v4103 = vadd.f32 %v4045, %v4073
      %v4104 = vadd.f32 %v4046, %v4073
      %v4105 = vadd.f32 %v4047, %v4073
      %v4106 = vadd.f32 %v4048, %v4073
      %v4107 = vadd.f32 %v4049, %v4073
      %v4108 = vadd.f32 %v4050, %v4073
      %v4109 = vadd.f32 %v4051, %v4073
      %v4110 = vadd.f32 %v4052, %v4073
      %v4111 = vadd.f32 %v4053, %v4073
      %v4112 = vadd.f32 %v4054, %v4073
      %v4113 = vadd.f32 %v4055, %v4073
      %v4114 = vadd.f32 %v4056, %v4073
      %v4115 = vadd.f32 %v4057, %v4073
      %v4116 = vadd.f32 %v4058, %v4073
      %v4117 = vadd.f32 %v4059, %v4073
      %v4118 = vadd.f32 %v4060, %v4073
      %v4119 = vadd.f32 %v4061, %v4073
      %v4120 = vadd.f32 %v4062, %v4073
      %v4121 = vadd.f32 %v4063, %v4073
      %v4122 = vadd.f32 %v4064, %v4073
      %v4123 = vadd.f32 %v4065, %v4073
      %v4124 = vadd.f32 %v4066, %v4073
      %v4125 = vadd.f32 %v4067, %v4073
      %v4126 = vadd.f32 %v4068, %v4073
      %v4127 = vadd.f32 %v4069, %v4073
      %v4128 = vadd.f32 %v4070, %v4073
      %v4129 = vmax.f32 %v4075, 0.0
      %v4130 = vmax.f32 %v4076, 0.0
      %v4131 = vmax.f32 %v4077, 0.0
      %v4132 = vmax.f32 %v4078, 0.0
      %v4133 = vmax.f32 %v4079, 0.0
      %v4134 = vmax.f32 %v4080, 0.0
      %v4135 = vmax.f32 %v4081, 0.0
      %v4136 = vmax.f32 %v4082, 0.0
      %v4137 = vmax.f32 %v4083, 0.0
      %v4138 = vmax.f32 %v4084, 0.0
      %v4139 = vmax.f32 %v4085, 0.0
      %v4140 = vmax.f32 %v4086, 0.0
      %v4141 = vmax.f32 %v4087, 0.0
      %v4142 = vmax.f32 %v4088, 0.0
      %v4143 = vmax.f32 %v4089, 0.0
      %v4144 = vmax.f32 %v4090, 0.0
      %v4145 = vmax.f32 %v4091, 0.0
      %v4146 = vmax.f32 %v4092, 0.0
      %v4147 = vmax.f32 %v4093, 0.0
      %v4148 = vmax.f32 %v4094, 0.0
      %v4149 = vmax.f32 %v4095, 0.0
      %v4150 = vmax.f32 %v4096, 0.0
      %v4151 = vmax.f32 %v4097, 0.0
      %v4152 = vmax.f32 %v4098, 0.0
      %v4153 = vmax.f32 %v4099, 0.0
      %v4154 = vmax.f32 %v4100, 0.0
      %v4155 = vmax.f32 %v4101, 0.0
      %v4156 = vmax.f32 %v4102, 0.0
      %v4157 = vmax.f32 %v4103, 0.0
      %v4158 = vmax.f32 %v4104, 0.0
      %v4159 = vmax.f32 %v4105, 0.0
      %v4160 = vmax.f32 %v4106, 0.0
      %v4161 = vmax.f32 %v4107, 0.0
      %v4162 = vmax.f32 %v4108, 0.0
      %v4163 = vmax.f32 %v4109, 0.0
      %v4164 = vmax.f32 %v4110, 0.0
      %v4165 = vmax.f32 %v4111, 0.0
      %v4166 = vmax.f32 %v4112, 0.0
      %v4167 = vmax.f32 %v4113, 0.0
      %v4168 = vmax.f32 %v4114, 0.0
      %v4169 = vmax.f32 %v4115, 0.0
      %v4170 = vmax.f32 %v4116, 0.0
      %v4171 = vmax.f32 %v4117, 0.0
      %v4172 = vmax.f32 %v4118, 0.0
      %v4173 = vmax.f32 %v4119, 0.0
      %v4174 = vmax.f32 %v4120, 0.0
      %v4175 = vmax.f32 %v4121, 0.0
      %v4176 = vmax.f32 %v4122, 0.0
      %v4177 = vmax.f32 %v4123, 0.0
      %v4178 = vmax.f32 %v4124, 0.0
      %v4179 = vmax.f32 %v4125, 0.0
      %v4180 = vmax.f32 %v4126, 0.0
      %v4181 = vmax.f32 %v4127, 0.0
      %v4182 = vmax.f32 %v4128, 0.0
      %v4183 = vlaneseq
      %v4184 = vshrl.u32 %v4183, 7
      %v4185 = vadd.s32 %v4184, 8
      %v4186 = vadd.s32 %v4184, 16
      %vm4187 = vcmp.ge.s32.totalorder %v4184, 1
      %vm4188 = vcmp.ge.s32.totalorder %v4185, 1
      %vm4189 = vcmp.ge.s32.totalorder %v4186, 1
      %vm4190 = vmand 0, %vm4187
      %vm4191 = vmand 0, %vm4188
      %vm4192 = vmand 0, %vm4189
      %vm4193 = vmand 1, %vm4187
      %vm4194 = vmand 1, %vm4188
      %vm4195 = vmand 1, %vm4189
      %vm4196 = vcmp.le.s32.totalorder %v4184, 16
      %vm4197 = vcmp.le.s32.totalorder %v4185, 16
      %vm4198 = vcmp.le.s32.totalorder %v4186, 16
      %vm4199 = vmand %vm4190, %vm4196
      %vm4200 = vmand %vm4191, %vm4197
      %vm4201 = vmand %vm4192, %vm4198
      %vm4202 = vmand %vm4193, %vm4196
      %vm4203 = vmand %vm4194, %vm4197
      %vm4204 = vmand %vm4195, %vm4198
      %v4205 = vsel %vm4199, %v4129, 0.0
      %v4206 = vsel %vm4200, %v4130, 0.0
      %v4207 = vsel %vm4201, %v4131, 0.0
      %v4208 = vsel %vm4202, %v4132, 0.0
      %v4209 = vsel %vm4203, %v4133, 0.0
      %v4210 = vsel %vm4204, %v4134, 0.0
      %v4211 = vsel %vm4202, %v4135, 0.0
      %v4212 = vsel %vm4203, %v4136, 0.0
      %v4213 = vsel %vm4204, %v4137, 0.0
      %v4214 = vsel %vm4202, %v4138, 0.0
      %v4215 = vsel %vm4203, %v4139, 0.0
      %v4216 = vsel %vm4204, %v4140, 0.0
      %v4217 = vsel %vm4202, %v4141, 0.0
      %v4218 = vsel %vm4203, %v4142, 0.0
      %v4219 = vsel %vm4204, %v4143, 0.0
      %v4220 = vsel %vm4202, %v4144, 0.0
      %v4221 = vsel %vm4203, %v4145, 0.0
      %v4222 = vsel %vm4204, %v4146, 0.0
      %v4223 = vsel %vm4202, %v4147, 0.0
      %v4224 = vsel %vm4203, %v4148, 0.0
      %v4225 = vsel %vm4204, %v4149, 0.0
      %v4226 = vsel %vm4202, %v4150, 0.0
      %v4227 = vsel %vm4203, %v4151, 0.0
      %v4228 = vsel %vm4204, %v4152, 0.0
      %v4229 = vsel %vm4202, %v4153, 0.0
      %v4230 = vsel %vm4203, %v4154, 0.0
      %v4231 = vsel %vm4204, %v4155, 0.0
      %v4232 = vsel %vm4202, %v4156, 0.0
      %v4233 = vsel %vm4203, %v4157, 0.0
      %v4234 = vsel %vm4204, %v4158, 0.0
      %v4235 = vsel %vm4202, %v4159, 0.0
      %v4236 = vsel %vm4203, %v4160, 0.0
      %v4237 = vsel %vm4204, %v4161, 0.0
      %v4238 = vsel %vm4202, %v4162, 0.0
      %v4239 = vsel %vm4203, %v4163, 0.0
      %v4240 = vsel %vm4204, %v4164, 0.0
      %v4241 = vsel %vm4202, %v4165, 0.0
      %v4242 = vsel %vm4203, %v4166, 0.0
      %v4243 = vsel %vm4204, %v4167, 0.0
      %v4244 = vsel %vm4202, %v4168, 0.0
      %v4245 = vsel %vm4203, %v4169, 0.0
      %v4246 = vsel %vm4204, %v4170, 0.0
      %v4247 = vsel %vm4202, %v4171, 0.0
      %v4248 = vsel %vm4203, %v4172, 0.0
      %v4249 = vsel %vm4204, %v4173, 0.0
      %v4250 = vsel %vm4202, %v4174, 0.0
      %v4251 = vsel %vm4203, %v4175, 0.0
      %v4252 = vsel %vm4204, %v4176, 0.0
      %v4253 = vsel %vm4202, %v4177, 0.0
      %v4254 = vsel %vm4203, %v4178, 0.0
      %v4255 = vsel %vm4204, %v4179, 0.0
      %v4256 = vsel %vm4199, %v4180, 0.0
      %v4257 = vsel %vm4200, %v4181, 0.0
      %v4258 = vsel %vm4201, %v4182, 0.0
      %v4259 = vpack.c.bf16 %v4205, %v4205
      %v4260 = vpack.c.bf16 %v4206, %v4206
      %v4261 = vpack.c.bf16 %v4207, %v4207
      %v4262 = vpack.c.bf16 %v4208, %v4208
      %v4263 = vpack.c.bf16 %v4209, %v4209
      %v4264 = vpack.c.bf16 %v4210, %v4210
      %v4265 = vpack.c.bf16 %v4211, %v4211
      %v4266 = vpack.c.bf16 %v4212, %v4212
      %v4267 = vpack.c.bf16 %v4213, %v4213
      %v4268 = vpack.c.bf16 %v4214, %v4214
      %v4269 = vpack.c.bf16 %v4215, %v4215
      %v4270 = vpack.c.bf16 %v4216, %v4216
      %v4271 = vpack.c.bf16 %v4217, %v4217
      %v4272 = vpack.c.bf16 %v4218, %v4218
      %v4273 = vpack.c.bf16 %v4219, %v4219
      %v4274 = vpack.c.bf16 %v4220, %v4220
      %v4275 = vpack.c.bf16 %v4221, %v4221
      %v4276 = vpack.c.bf16 %v4222, %v4222
      %v4277 = vpack.c.bf16 %v4223, %v4223
      %v4278 = vpack.c.bf16 %v4224, %v4224
      %v4279 = vpack.c.bf16 %v4225, %v4225
      %v4280 = vpack.c.bf16 %v4226, %v4226
      %v4281 = vpack.c.bf16 %v4227, %v4227
      %v4282 = vpack.c.bf16 %v4228, %v4228
      %v4283 = vpack.c.bf16 %v4229, %v4229
      %v4284 = vpack.c.bf16 %v4230, %v4230
      %v4285 = vpack.c.bf16 %v4231, %v4231
      %v4286 = vpack.c.bf16 %v4232, %v4232
      %v4287 = vpack.c.bf16 %v4233, %v4233
      %v4288 = vpack.c.bf16 %v4234, %v4234
      %v4289 = vpack.c.bf16 %v4235, %v4235
      %v4290 = vpack.c.bf16 %v4236, %v4236
      %v4291 = vpack.c.bf16 %v4237, %v4237
      %v4292 = vpack.c.bf16 %v4238, %v4238
      %v4293 = vpack.c.bf16 %v4239, %v4239
      %v4294 = vpack.c.bf16 %v4240, %v4240
      %v4295 = vpack.c.bf16 %v4241, %v4241
      %v4296 = vpack.c.bf16 %v4242, %v4242
      %v4297 = vpack.c.bf16 %v4243, %v4243
      %v4298 = vpack.c.bf16 %v4244, %v4244
      %v4299 = vpack.c.bf16 %v4245, %v4245
      %v4300 = vpack.c.bf16 %v4246, %v4246
      %v4301 = vpack.c.bf16 %v4247, %v4247
      %v4302 = vpack.c.bf16 %v4248, %v4248
      %v4303 = vpack.c.bf16 %v4249, %v4249
      %v4304 = vpack.c.bf16 %v4250, %v4250
      %v4305 = vpack.c.bf16 %v4251, %v4251
      %v4306 = vpack.c.bf16 %v4252, %v4252
      %v4307 = vpack.c.bf16 %v4253, %v4253
      %v4308 = vpack.c.bf16 %v4254, %v4254
      %v4309 = vpack.c.bf16 %v4255, %v4255
      %v4310 = vpack.c.bf16 %v4256, %v4256
      %v4311 = vpack.c.bf16 %v4257, %v4257
      %v4312 = vpack.c.bf16 %v4258, %v4258
      %v4313 = vld [vmem:[%s3] sm:$0xf]
      %v4314 = vld [vmem:[%s3 + $0x4] sm:$0xf]
      %v4315 = vld [vmem:[%s3 + $0x8] sm:$0xf]
      %v4316 = vld [vmem:[%s3 + $0xc] sm:$0xf]
      %v4317 = vld [vmem:[%s3 + $0x10] sm:$0xf]
      %v4318 = vld [vmem:[%s3 + $0x14] sm:$0xf]
      %v4319 = vld [vmem:[%s3 + $0x18] sm:$0xf]
      %v4320 = vld [vmem:[%s3 + $0x1c] sm:$0xf]
      %v4321 = vld [vmem:[%s3 + $0x20] sm:$0xf]
      %v4322 = vld [vmem:[%s3 + $0x24] sm:$0xf]
      %v4323 = vld [vmem:[%s3 + $0x28] sm:$0xf]
      %v4324 = vld [vmem:[%s3 + $0x2c] sm:$0xf]
      %v4325 = vld [vmem:[%s3 + $0x30] sm:$0xf]
      %v4326 = vld [vmem:[%s3 + $0x34] sm:$0xf]
      %v4327 = vld [vmem:[%s3 + $0x38] sm:$0xf]
      %v4328 = vld [vmem:[%s3 + $0x3c] sm:$0xf]
      %s4329 = scalar_lea.vmem %s3, 64
      %v4330 = vld [vmem:[%s4329] sm:$0xf]
      %v4331 = vld [vmem:[%s4329 + $0x4] sm:$0xf]
      %v4332 = vld [vmem:[%s4329 + $0x8] sm:$0xf]
      %v4333 = vld [vmem:[%s4329 + $0xc] sm:$0xf]
      %v4334 = vld [vmem:[%s4329 + $0x10] sm:$0xf]
      %v4335 = vld [vmem:[%s4329 + $0x14] sm:$0xf]
      %v4336 = vld [vmem:[%s4329 + $0x18] sm:$0xf]
      %v4337 = vld [vmem:[%s4329 + $0x1c] sm:$0xf]
      %v4338 = vld [vmem:[%s4329 + $0x20] sm:$0xf]
      %v4339 = vld [vmem:[%s4329 + $0x24] sm:$0xf]
      %v4340 = vld [vmem:[%s4329 + $0x28] sm:$0xf]
      %v4341 = vld [vmem:[%s4329 + $0x2c] sm:$0xf]
      %v4342 = vld [vmem:[%s4329 + $0x30] sm:$0xf]
      %v4343 = vld [vmem:[%s4329 + $0x34] sm:$0xf]
      %v4344 = vld [vmem:[%s4329 + $0x38] sm:$0xf]
      %v4345 = vld [vmem:[%s4329 + $0x3c] sm:$0xf]
      %v4378 = vunpack.c.l.b16 %v4262
      %v4379 = vunpack.c.l.b16 %v4263
      %v4380 = vunpack.c.l.b16 %v4265
      %v4381 = vunpack.c.l.b16 %v4266
      %v4382 = vunpack.c.l.b16 %v4268
      %v4383 = vunpack.c.l.b16 %v4269
      %v4384 = vunpack.c.l.b16 %v4271
      %v4385 = vunpack.c.l.b16 %v4272
      %v4386 = vunpack.c.l.b16 %v4274
      %v4387 = vunpack.c.l.b16 %v4275
      %v4388 = vunpack.c.l.b16 %v4277
      %v4389 = vunpack.c.l.b16 %v4278
      %v4390 = vunpack.c.l.b16 %v4280
      %v4391 = vunpack.c.l.b16 %v4281
      %v4392 = vunpack.c.l.b16 %v4283
      %v4393 = vunpack.c.l.b16 %v4284
      %v4394 = vunpack.c.l.b16 %v4286
      %v4395 = vunpack.c.l.b16 %v4287
      %v4396 = vunpack.c.l.b16 %v4289
      %v4397 = vunpack.c.l.b16 %v4290
      %v4398 = vunpack.c.l.b16 %v4292
      %v4399 = vunpack.c.l.b16 %v4293
      %v4400 = vunpack.c.l.b16 %v4295
      %v4401 = vunpack.c.l.b16 %v4296
      %v4402 = vunpack.c.l.b16 %v4298
      %v4403 = vunpack.c.l.b16 %v4299
      %v4404 = vunpack.c.l.b16 %v4301
      %v4405 = vunpack.c.l.b16 %v4302
      %v4406 = vunpack.c.l.b16 %v4304
      %v4407 = vunpack.c.l.b16 %v4305
      %v4408 = vunpack.c.l.b16 %v4307
      %v4409 = vunpack.c.l.b16 %v4308
      %v4410 = vpack.c.b16 %v4379, %v4378
      %v4411 = vpack.c.b16 %v4381, %v4380
      %v4412 = vpack.c.b16 %v4383, %v4382
      %v4413 = vpack.c.b16 %v4385, %v4384
      %v4414 = vpack.c.b16 %v4387, %v4386
      %v4415 = vpack.c.b16 %v4389, %v4388
      %v4416 = vpack.c.b16 %v4391, %v4390
      %v4417 = vpack.c.b16 %v4393, %v4392
      %v4418 = vpack.c.b16 %v4395, %v4394
      %v4419 = vpack.c.b16 %v4397, %v4396
      %v4420 = vpack.c.b16 %v4399, %v4398
      %v4421 = vpack.c.b16 %v4401, %v4400
      %v4422 = vpack.c.b16 %v4403, %v4402
      %v4423 = vpack.c.b16 %v4405, %v4404
      %v4424 = vpack.c.b16 %v4407, %v4406
      %v4425 = vpack.c.b16 %v4409, %v4408
      %v4458 = vunpack.c.l.b16 %v4330
      %v4459 = vunpack.c.l.b16 %v4331
      %v4460 = vunpack.c.l.b16 %v4332
      %v4461 = vunpack.c.l.b16 %v4333
      %v4462 = vunpack.c.l.b16 %v4334
      %v4463 = vunpack.c.l.b16 %v4335
      %v4464 = vunpack.c.l.b16 %v4336
      %v4465 = vunpack.c.l.b16 %v4337
      %v4466 = vunpack.c.l.b16 %v4338
      %v4467 = vunpack.c.l.b16 %v4339
      %v4468 = vunpack.c.l.b16 %v4340
      %v4469 = vunpack.c.l.b16 %v4341
      %v4470 = vunpack.c.l.b16 %v4342
      %v4471 = vunpack.c.l.b16 %v4343
      %v4472 = vunpack.c.l.b16 %v4344
      %v4473 = vunpack.c.l.b16 %v4345
      %v4474 = vpack.c.b16 %v4459, %v4458
      %v4475 = vpack.c.b16 %v4461, %v4460
      %v4476 = vpack.c.b16 %v4463, %v4462
      %v4477 = vpack.c.b16 %v4465, %v4464
      %v4478 = vpack.c.b16 %v4467, %v4466
      %v4479 = vpack.c.b16 %v4469, %v4468
      %v4480 = vpack.c.b16 %v4471, %v4470
      %v4481 = vpack.c.b16 %v4473, %v4472
      %4490 = vmatpush.bf16.msra.mxu0 %v4481
      %4491 = vmatpush.bf16.msra.mxu0 %v4480
      %4492 = vmatpush.bf16.msra.mxu0 %v4479
      %4493 = vmatpush.bf16.msra.mxu0 %v4478
      %4494 = vmatpush.bf16.msra.mxu0 %v4477
      %4495 = vmatpush.bf16.msra.mxu0 %v4476
      %4496 = vmatpush.bf16.msra.mxu0 %v4475
      %4497 = vmatpush.bf16.msra.mxu0 %v4474
      %4498 = vmatmul.bf16.gmra.mxu0 %v4410
      %v4499 = vpop.f32.mrf.mxu0
      %v4500 = vadd.f32 0.0, %v4499
      %v4501 = vpop.f32.mrf.mxu0
      %v4502 = vadd.f32 0.0, %v4501
      %4503 = vmatmul.bf16.gmra.mxu0 %v4411
      %v4504 = vpop.f32.mrf.mxu0
      %v4505 = vadd.f32 0.0, %v4504
      %v4506 = vpop.f32.mrf.mxu0
      %v4507 = vadd.f32 0.0, %v4506
      %4508 = vmatmul.bf16.gmra.mxu0 %v4412
      %v4509 = vpop.f32.mrf.mxu0
      %v4510 = vadd.f32 0.0, %v4509
      %v4511 = vpop.f32.mrf.mxu0
      %v4512 = vadd.f32 0.0, %v4511
      %4513 = vmatmul.bf16.gmra.mxu0 %v4413
      %v4514 = vpop.f32.mrf.mxu0
      %v4515 = vadd.f32 0.0, %v4514
      %v4516 = vpop.f32.mrf.mxu0
      %v4517 = vadd.f32 0.0, %v4516
      %4518 = vmatmul.bf16.gmra.mxu0 %v4414
      %v4519 = vpop.f32.mrf.mxu0
      %v4520 = vadd.f32 0.0, %v4519
      %v4521 = vpop.f32.mrf.mxu0
      %v4522 = vadd.f32 0.0, %v4521
      %4523 = vmatmul.bf16.gmra.mxu0 %v4415
      %v4524 = vpop.f32.mrf.mxu0
      %v4525 = vadd.f32 0.0, %v4524
      %v4526 = vpop.f32.mrf.mxu0
      %v4527 = vadd.f32 0.0, %v4526
      %4528 = vmatmul.bf16.gmra.mxu0 %v4416
      %v4529 = vpop.f32.mrf.mxu0
      %v4530 = vadd.f32 0.0, %v4529
      %v4531 = vpop.f32.mrf.mxu0
      %v4532 = vadd.f32 0.0, %v4531
      %4533 = vmatmul.bf16.gmra.mxu0 %v4417
      %v4534 = vpop.f32.mrf.mxu0
      %v4535 = vadd.f32 0.0, %v4534
      %v4536 = vpop.f32.mrf.mxu0
      %v4537 = vadd.f32 0.0, %v4536
      %4538 = vmatmul.bf16.gmra.mxu0 %v4418
      %v4539 = vpop.f32.mrf.mxu0
      %v4540 = vadd.f32 0.0, %v4539
      %v4541 = vpop.f32.mrf.mxu0
      %v4542 = vadd.f32 0.0, %v4541
      %4543 = vmatmul.bf16.gmra.mxu0 %v4419
      %v4544 = vpop.f32.mrf.mxu0
      %v4545 = vadd.f32 0.0, %v4544
      %v4546 = vpop.f32.mrf.mxu0
      %v4547 = vadd.f32 0.0, %v4546
      %4548 = vmatmul.bf16.gmra.mxu0 %v4420
      %v4549 = vpop.f32.mrf.mxu0
      %v4550 = vadd.f32 0.0, %v4549
      %v4551 = vpop.f32.mrf.mxu0
      %v4552 = vadd.f32 0.0, %v4551
      %4553 = vmatmul.bf16.gmra.mxu0 %v4421
      %v4554 = vpop.f32.mrf.mxu0
      %v4555 = vadd.f32 0.0, %v4554
      %v4556 = vpop.f32.mrf.mxu0
      %v4557 = vadd.f32 0.0, %v4556
      %4558 = vmatmul.bf16.gmra.mxu0 %v4422
      %v4559 = vpop.f32.mrf.mxu0
      %v4560 = vadd.f32 0.0, %v4559
      %v4561 = vpop.f32.mrf.mxu0
      %v4562 = vadd.f32 0.0, %v4561
      %4563 = vmatmul.bf16.gmra.mxu0 %v4423
      %v4564 = vpop.f32.mrf.mxu0
      %v4565 = vadd.f32 0.0, %v4564
      %v4566 = vpop.f32.mrf.mxu0
      %v4567 = vadd.f32 0.0, %v4566
      %4568 = vmatmul.bf16.gmra.mxu0 %v4424
      %v4569 = vpop.f32.mrf.mxu0
      %v4570 = vadd.f32 0.0, %v4569
      %v4571 = vpop.f32.mrf.mxu0
      %v4572 = vadd.f32 0.0, %v4571
      %4573 = vmatmul.bf16.gmra.mxu0 %v4425
      %v4574 = vpop.f32.mrf.mxu0
      %v4575 = vadd.f32 0.0, %v4574
      %v4576 = vpop.f32.mrf.mxu0
      %v4577 = vadd.f32 0.0, %v4576
      %4578 = vdwg.mxu0
      %v4581 = vunpack.c.l.b16 %v4259
      %v4582 = vunpack.c.l.b16 %v4260
      %v4583 = vpack.c.b16 %v4582, %v4581
      %v4601 = vunpack.c.l.b16 %v4313
      %v4602 = vunpack.c.l.b16 %v4314
      %v4603 = vunpack.c.l.b16 %v4315
      %v4604 = vunpack.c.l.b16 %v4316
      %v4605 = vunpack.c.l.b16 %v4317
      %v4606 = vunpack.c.l.b16 %v4318
      %v4607 = vunpack.c.l.b16 %v4319
      %v4608 = vunpack.c.l.b16 %v4320
      %v4609 = vunpack.c.l.b16 %v4321
      %v4610 = vunpack.c.l.b16 %v4322
      %v4611 = vunpack.c.l.b16 %v4323
      %v4612 = vunpack.c.l.b16 %v4324
      %v4613 = vunpack.c.l.b16 %v4325
      %v4614 = vunpack.c.l.b16 %v4326
      %v4615 = vunpack.c.l.b16 %v4327
      %v4616 = vunpack.c.l.b16 %v4328
      %v4617 = vpack.c.b16 %v4602, %v4601
      %v4618 = vpack.c.b16 %v4604, %v4603
      %v4619 = vpack.c.b16 %v4606, %v4605
      %v4620 = vpack.c.b16 %v4608, %v4607
      %v4621 = vpack.c.b16 %v4610, %v4609
      %v4622 = vpack.c.b16 %v4612, %v4611
      %v4623 = vpack.c.b16 %v4614, %v4613
      %v4624 = vpack.c.b16 %v4616, %v4615
      %4633 = vmatpush.bf16.msra.mxu0 %v4624
      %4634 = vmatpush.bf16.msra.mxu0 %v4623
      %4635 = vmatpush.bf16.msra.mxu0 %v4622
      %4636 = vmatpush.bf16.msra.mxu0 %v4621
      %4637 = vmatpush.bf16.msra.mxu0 %v4620
      %4638 = vmatpush.bf16.msra.mxu0 %v4619
      %4639 = vmatpush.bf16.msra.mxu0 %v4618
      %4640 = vmatpush.bf16.msra.mxu0 %v4617
      %4641 = vmatmul.bf16.gmra.mxu0 %v4583
      %v4642 = vpop.f32.mrf.mxu0
      %v4643 = vadd.f32 %v4500, %v4642
      %v4644 = vpop.f32.mrf.mxu0
      %v4645 = vadd.f32 %v4502, %v4644
      %4646 = vmatmul.bf16.gmra.mxu0 %v4410
      %v4647 = vpop.f32.mrf.mxu0
      %v4648 = vadd.f32 %v4505, %v4647
      %v4649 = vpop.f32.mrf.mxu0
      %v4650 = vadd.f32 %v4507, %v4649
      %4651 = vmatmul.bf16.gmra.mxu0 %v4411
      %v4652 = vpop.f32.mrf.mxu0
      %v4653 = vadd.f32 %v4510, %v4652
      %v4654 = vpop.f32.mrf.mxu0
      %v4655 = vadd.f32 %v4512, %v4654
      %4656 = vmatmul.bf16.gmra.mxu0 %v4412
      %v4657 = vpop.f32.mrf.mxu0
      %v4658 = vadd.f32 %v4515, %v4657
      %v4659 = vpop.f32.mrf.mxu0
      %v4660 = vadd.f32 %v4517, %v4659
      %4661 = vmatmul.bf16.gmra.mxu0 %v4413
      %v4662 = vpop.f32.mrf.mxu0
      %v4663 = vadd.f32 %v4520, %v4662
      %v4664 = vpop.f32.mrf.mxu0
      %v4665 = vadd.f32 %v4522, %v4664
      %4666 = vmatmul.bf16.gmra.mxu0 %v4414
      %v4667 = vpop.f32.mrf.mxu0
      %v4668 = vadd.f32 %v4525, %v4667
      %v4669 = vpop.f32.mrf.mxu0
      %v4670 = vadd.f32 %v4527, %v4669
      %4671 = vmatmul.bf16.gmra.mxu0 %v4415
      %v4672 = vpop.f32.mrf.mxu0
      %v4673 = vadd.f32 %v4530, %v4672
      %v4674 = vpop.f32.mrf.mxu0
      %v4675 = vadd.f32 %v4532, %v4674
      %4676 = vmatmul.bf16.gmra.mxu0 %v4416
      %v4677 = vpop.f32.mrf.mxu0
      %v4678 = vadd.f32 %v4535, %v4677
      %v4679 = vpop.f32.mrf.mxu0
      %v4680 = vadd.f32 %v4537, %v4679
      %4681 = vmatmul.bf16.gmra.mxu0 %v4417
      %v4682 = vpop.f32.mrf.mxu0
      %v4683 = vadd.f32 %v4540, %v4682
      %v4684 = vpop.f32.mrf.mxu0
      %v4685 = vadd.f32 %v4542, %v4684
      %4686 = vmatmul.bf16.gmra.mxu0 %v4418
      %v4687 = vpop.f32.mrf.mxu0
      %v4688 = vadd.f32 %v4545, %v4687
      %v4689 = vpop.f32.mrf.mxu0
      %v4690 = vadd.f32 %v4547, %v4689
      %4691 = vmatmul.bf16.gmra.mxu0 %v4419
      %v4692 = vpop.f32.mrf.mxu0
      %v4693 = vadd.f32 %v4550, %v4692
      %v4694 = vpop.f32.mrf.mxu0
      %v4695 = vadd.f32 %v4552, %v4694
      %4696 = vmatmul.bf16.gmra.mxu0 %v4420
      %v4697 = vpop.f32.mrf.mxu0
      %v4698 = vadd.f32 %v4555, %v4697
      %v4699 = vpop.f32.mrf.mxu0
      %v4700 = vadd.f32 %v4557, %v4699
      %4701 = vmatmul.bf16.gmra.mxu0 %v4421
      %v4702 = vpop.f32.mrf.mxu0
      %v4703 = vadd.f32 %v4560, %v4702
      %v4704 = vpop.f32.mrf.mxu0
      %v4705 = vadd.f32 %v4562, %v4704
      %4706 = vmatmul.bf16.gmra.mxu0 %v4422
      %v4707 = vpop.f32.mrf.mxu0
      %v4708 = vadd.f32 %v4565, %v4707
      %v4709 = vpop.f32.mrf.mxu0
      %v4710 = vadd.f32 %v4567, %v4709
      %4711 = vmatmul.bf16.gmra.mxu0 %v4423
      %v4712 = vpop.f32.mrf.mxu0
      %v4713 = vadd.f32 %v4570, %v4712
      %v4714 = vpop.f32.mrf.mxu0
      %v4715 = vadd.f32 %v4572, %v4714
      %4716 = vmatmul.bf16.gmra.mxu0 %v4424
      %v4717 = vpop.f32.mrf.mxu0
      %v4718 = vadd.f32 %v4575, %v4717
      %v4719 = vpop.f32.mrf.mxu0
      %v4720 = vadd.f32 %v4577, %v4719
      %4721 = vdwg.mxu0
      %s4722 = scalar_lea.vmem %s3, 128
      %v4723 = vld [vmem:[%s4722] sm:$0xf]
      %v4724 = vld [vmem:[%s4722 + $0x4] sm:$0xf]
      %v4725 = vld [vmem:[%s4722 + $0x8] sm:$0xf]
      %v4726 = vld [vmem:[%s4722 + $0xc] sm:$0xf]
      %v4727 = vld [vmem:[%s4722 + $0x10] sm:$0xf]
      %v4728 = vld [vmem:[%s4722 + $0x14] sm:$0xf]
      %v4729 = vld [vmem:[%s4722 + $0x18] sm:$0xf]
      %v4730 = vld [vmem:[%s4722 + $0x1c] sm:$0xf]
      %v4731 = vld [vmem:[%s4722 + $0x20] sm:$0xf]
      %v4732 = vld [vmem:[%s4722 + $0x24] sm:$0xf]
      %v4733 = vld [vmem:[%s4722 + $0x28] sm:$0xf]
      %v4734 = vld [vmem:[%s4722 + $0x2c] sm:$0xf]
      %v4735 = vld [vmem:[%s4722 + $0x30] sm:$0xf]
      %v4736 = vld [vmem:[%s4722 + $0x34] sm:$0xf]
      %v4737 = vld [vmem:[%s4722 + $0x38] sm:$0xf]
      %v4738 = vld [vmem:[%s4722 + $0x3c] sm:$0xf]
      %v4741 = vunpack.c.l.b16 %v4310
      %v4742 = vunpack.c.l.b16 %v4311
      %v4743 = vpack.c.b16 %v4742, %v4741
      %v4761 = vunpack.c.l.b16 %v4723
      %v4762 = vunpack.c.l.b16 %v4724
      %v4763 = vunpack.c.l.b16 %v4725
      %v4764 = vunpack.c.l.b16 %v4726
      %v4765 = vunpack.c.l.b16 %v4727
      %v4766 = vunpack.c.l.b16 %v4728
      %v4767 = vunpack.c.l.b16 %v4729
      %v4768 = vunpack.c.l.b16 %v4730
      %v4769 = vunpack.c.l.b16 %v4731
      %v4770 = vunpack.c.l.b16 %v4732
      %v4771 = vunpack.c.l.b16 %v4733
      %v4772 = vunpack.c.l.b16 %v4734
      %v4773 = vunpack.c.l.b16 %v4735
      %v4774 = vunpack.c.l.b16 %v4736
      %v4775 = vunpack.c.l.b16 %v4737
      %v4776 = vunpack.c.l.b16 %v4738
      %v4777 = vpack.c.b16 %v4762, %v4761
      %v4778 = vpack.c.b16 %v4764, %v4763
      %v4779 = vpack.c.b16 %v4766, %v4765
      %v4780 = vpack.c.b16 %v4768, %v4767
      %v4781 = vpack.c.b16 %v4770, %v4769
      %v4782 = vpack.c.b16 %v4772, %v4771
      %v4783 = vpack.c.b16 %v4774, %v4773
      %v4784 = vpack.c.b16 %v4776, %v4775
      %4793 = vmatpush.bf16.msra.mxu0 %v4784
      %4794 = vmatpush.bf16.msra.mxu0 %v4783
      %4795 = vmatpush.bf16.msra.mxu0 %v4782
      %4796 = vmatpush.bf16.msra.mxu0 %v4781
      %4797 = vmatpush.bf16.msra.mxu0 %v4780
      %4798 = vmatpush.bf16.msra.mxu0 %v4779
      %4799 = vmatpush.bf16.msra.mxu0 %v4778
      %4800 = vmatpush.bf16.msra.mxu0 %v4777
      %4801 = vmatmul.bf16.gmra.mxu0 %v4411
      %v4802 = vpop.f32.mrf.mxu0
      %v4803 = vadd.f32 0.0, %v4802
      %v4804 = vpop.f32.mrf.mxu0
      %v4805 = vadd.f32 0.0, %v4804
      %4806 = vmatmul.bf16.gmra.mxu0 %v4412
      %v4807 = vpop.f32.mrf.mxu0
      %v4808 = vadd.f32 0.0, %v4807
      %v4809 = vpop.f32.mrf.mxu0
      %v4810 = vadd.f32 0.0, %v4809
      %4811 = vmatmul.bf16.gmra.mxu0 %v4413
      %v4812 = vpop.f32.mrf.mxu0
      %v4813 = vadd.f32 0.0, %v4812
      %v4814 = vpop.f32.mrf.mxu0
      %v4815 = vadd.f32 0.0, %v4814
      %4816 = vmatmul.bf16.gmra.mxu0 %v4414
      %v4817 = vpop.f32.mrf.mxu0
      %v4818 = vadd.f32 0.0, %v4817
      %v4819 = vpop.f32.mrf.mxu0
      %v4820 = vadd.f32 0.0, %v4819
      %4821 = vmatmul.bf16.gmra.mxu0 %v4415
      %v4822 = vpop.f32.mrf.mxu0
      %v4823 = vadd.f32 0.0, %v4822
      %v4824 = vpop.f32.mrf.mxu0
      %v4825 = vadd.f32 0.0, %v4824
      %4826 = vmatmul.bf16.gmra.mxu0 %v4416
      %v4827 = vpop.f32.mrf.mxu0
      %v4828 = vadd.f32 0.0, %v4827
      %v4829 = vpop.f32.mrf.mxu0
      %v4830 = vadd.f32 0.0, %v4829
      %4831 = vmatmul.bf16.gmra.mxu0 %v4417
      %v4832 = vpop.f32.mrf.mxu0
      %v4833 = vadd.f32 0.0, %v4832
      %v4834 = vpop.f32.mrf.mxu0
      %v4835 = vadd.f32 0.0, %v4834
      %4836 = vmatmul.bf16.gmra.mxu0 %v4418
      %v4837 = vpop.f32.mrf.mxu0
      %v4838 = vadd.f32 0.0, %v4837
      %v4839 = vpop.f32.mrf.mxu0
      %v4840 = vadd.f32 0.0, %v4839
      %4841 = vmatmul.bf16.gmra.mxu0 %v4419
      %v4842 = vpop.f32.mrf.mxu0
      %v4843 = vadd.f32 0.0, %v4842
      %v4844 = vpop.f32.mrf.mxu0
      %v4845 = vadd.f32 0.0, %v4844
      %4846 = vmatmul.bf16.gmra.mxu0 %v4420
      %v4847 = vpop.f32.mrf.mxu0
      %v4848 = vadd.f32 0.0, %v4847
      %v4849 = vpop.f32.mrf.mxu0
      %v4850 = vadd.f32 0.0, %v4849
      %4851 = vmatmul.bf16.gmra.mxu0 %v4421
      %v4852 = vpop.f32.mrf.mxu0
      %v4853 = vadd.f32 0.0, %v4852
      %v4854 = vpop.f32.mrf.mxu0
      %v4855 = vadd.f32 0.0, %v4854
      %4856 = vmatmul.bf16.gmra.mxu0 %v4422
      %v4857 = vpop.f32.mrf.mxu0
      %v4858 = vadd.f32 0.0, %v4857
      %v4859 = vpop.f32.mrf.mxu0
      %v4860 = vadd.f32 0.0, %v4859
      %4861 = vmatmul.bf16.gmra.mxu0 %v4423
      %v4862 = vpop.f32.mrf.mxu0
      %v4863 = vadd.f32 0.0, %v4862
      %v4864 = vpop.f32.mrf.mxu0
      %v4865 = vadd.f32 0.0, %v4864
      %4866 = vmatmul.bf16.gmra.mxu0 %v4424
      %v4867 = vpop.f32.mrf.mxu0
      %v4868 = vadd.f32 0.0, %v4867
      %v4869 = vpop.f32.mrf.mxu0
      %v4870 = vadd.f32 0.0, %v4869
      %4871 = vmatmul.bf16.gmra.mxu0 %v4425
      %v4872 = vpop.f32.mrf.mxu0
      %v4873 = vadd.f32 0.0, %v4872
      %v4874 = vpop.f32.mrf.mxu0
      %v4875 = vadd.f32 0.0, %v4874
      %4876 = vmatmul.bf16.gmra.mxu0 %v4743
      %v4877 = vpop.f32.mrf.mxu0
      %v4878 = vadd.f32 0.0, %v4877
      %v4879 = vpop.f32.mrf.mxu0
      %v4880 = vadd.f32 0.0, %v4879
      %4881 = vdwg.mxu0
      %v4882 = vadd.f32 %v4643, %v4803
      %v4883 = vadd.f32 %v4645, %v4805
      %v4884 = vadd.f32 %v4648, %v4808
      %v4885 = vadd.f32 %v4650, %v4810
      %v4886 = vadd.f32 %v4653, %v4813
      %v4887 = vadd.f32 %v4655, %v4815
      %v4888 = vadd.f32 %v4658, %v4818
      %v4889 = vadd.f32 %v4660, %v4820
      %v4890 = vadd.f32 %v4663, %v4823
      %v4891 = vadd.f32 %v4665, %v4825
      %v4892 = vadd.f32 %v4668, %v4828
      %v4893 = vadd.f32 %v4670, %v4830
      %v4894 = vadd.f32 %v4673, %v4833
      %v4895 = vadd.f32 %v4675, %v4835
      %v4896 = vadd.f32 %v4678, %v4838
      %v4897 = vadd.f32 %v4680, %v4840
      %v4898 = vadd.f32 %v4683, %v4843
      %v4899 = vadd.f32 %v4685, %v4845
      %v4900 = vadd.f32 %v4688, %v4848
      %v4901 = vadd.f32 %v4690, %v4850
      %v4902 = vadd.f32 %v4693, %v4853
      %v4903 = vadd.f32 %v4695, %v4855
      %v4904 = vadd.f32 %v4698, %v4858
      %v4905 = vadd.f32 %v4700, %v4860
      %v4906 = vadd.f32 %v4703, %v4863
      %v4907 = vadd.f32 %v4705, %v4865
      %v4908 = vadd.f32 %v4708, %v4868
      %v4909 = vadd.f32 %v4710, %v4870
      %v4910 = vadd.f32 %v4713, %v4873
      %v4911 = vadd.f32 %v4715, %v4875
      %v4912 = vadd.f32 %v4718, %v4878
      %v4913 = vadd.f32 %v4720, %v4880
      %vm4914 = vsmask.f32 3328
      %vm4915 = vsmask.f32 7440
      %vm4916 = vmor %vm4914, %vm4915
      %v4918 = vshrl.u32 %v4259, 16
      %v4920 = vrot.slane %v4918, 4
      %v4921 = vshll.u32 %v4259, 16
      %v4923 = vrot.slane %v4921, 5
      %v4924 = vor.u32 %v4920, %v4923
      %v4925 = vrot.slane %v4924, 4
      %v4927 = vshll.u32 %v4260, 16
      %v4929 = vrot.slane %v4927, 5
      %v4930 = vsel %vm4916, %v4925, %v4929
      %v4931 = vshrl.u32 %v4260, 16
      %v4933 = vrot.slane %v4931, 4
      %v4934 = vor.u32 %v4933, %v4929
      %v4935 = vrot.slane %v4934, 4
      %v4937 = vshll.u32 %v4261, 16
      %v4939 = vrot.slane %v4937, 5
      %v4940 = vsel %vm4916, %v4935, %v4939
      %v4942 = vshrl.u32 %v4262, 16
      %v4944 = vrot.slane %v4942, 4
      %v4945 = vshll.u32 %v4262, 16
      %v4947 = vrot.slane %v4945, 5
      %v4948 = vor.u32 %v4944, %v4947
      %v4949 = vrot.slane %v4948, 4
      %v4951 = vshll.u32 %v4263, 16
      %v4953 = vrot.slane %v4951, 5
      %v4954 = vsel %vm4916, %v4949, %v4953
      %v4955 = vshrl.u32 %v4263, 16
      %v4957 = vrot.slane %v4955, 4
      %v4958 = vor.u32 %v4957, %v4953
      %v4959 = vrot.slane %v4958, 4
      %v4961 = vshll.u32 %v4264, 16
      %v4963 = vrot.slane %v4961, 5
      %v4964 = vsel %vm4916, %v4959, %v4963
      %v4966 = vshrl.u32 %v4265, 16
      %v4968 = vrot.slane %v4966, 4
      %v4969 = vshll.u32 %v4265, 16
      %v4971 = vrot.slane %v4969, 5
      %v4972 = vor.u32 %v4968, %v4971
      %v4973 = vrot.slane %v4972, 4
      %v4975 = vshll.u32 %v4266, 16
      %v4977 = vrot.slane %v4975, 5
      %v4978 = vsel %vm4916, %v4973, %v4977
      %v4979 = vshrl.u32 %v4266, 16
      %v4981 = vrot.slane %v4979, 4
      %v4982 = vor.u32 %v4981, %v4977
      %v4983 = vrot.slane %v4982, 4
      %v4985 = vshll.u32 %v4267, 16
      %v4987 = vrot.slane %v4985, 5
      %v4988 = vsel %vm4916, %v4983, %v4987
      %v4990 = vshrl.u32 %v4268, 16
      %v4992 = vrot.slane %v4990, 4
      %v4993 = vshll.u32 %v4268, 16
      %v4995 = vrot.slane %v4993, 5
      %v4996 = vor.u32 %v4992, %v4995
      %v4997 = vrot.slane %v4996, 4
      %v4999 = vshll.u32 %v4269, 16
      %v5001 = vrot.slane %v4999, 5
      %v5002 = vsel %vm4916, %v4997, %v5001
      %v5003 = vshrl.u32 %v4269, 16
      %v5005 = vrot.slane %v5003, 4
      %v5006 = vor.u32 %v5005, %v5001
      %v5007 = vrot.slane %v5006, 4
      %v5009 = vshll.u32 %v4270, 16
      %v5011 = vrot.slane %v5009, 5
      %v5012 = vsel %vm4916, %v5007, %v5011
      %v5014 = vshrl.u32 %v4271, 16
      %v5016 = vrot.slane %v5014, 4
      %v5017 = vshll.u32 %v4271, 16
      %v5019 = vrot.slane %v5017, 5
      %v5020 = vor.u32 %v5016, %v5019
      %v5021 = vrot.slane %v5020, 4
      %v5023 = vshll.u32 %v4272, 16
      %v5025 = vrot.slane %v5023, 5
      %v5026 = vsel %vm4916, %v5021, %v5025
      %v5027 = vshrl.u32 %v4272, 16
      %v5029 = vrot.slane %v5027, 4
      %v5030 = vor.u32 %v5029, %v5025
      %v5031 = vrot.slane %v5030, 4
      %v5033 = vshll.u32 %v4273, 16
      %v5035 = vrot.slane %v5033, 5
      %v5036 = vsel %vm4916, %v5031, %v5035
      %v5038 = vshrl.u32 %v4274, 16
      %v5040 = vrot.slane %v5038, 4
      %v5041 = vshll.u32 %v4274, 16
      %v5043 = vrot.slane %v5041, 5
      %v5044 = vor.u32 %v5040, %v5043
      %v5045 = vrot.slane %v5044, 4
      %v5047 = vshll.u32 %v4275, 16
      %v5049 = vrot.slane %v5047, 5
      %v5050 = vsel %vm4916, %v5045, %v5049
      %v5051 = vshrl.u32 %v4275, 16
      %v5053 = vrot.slane %v5051, 4
      %v5054 = vor.u32 %v5053, %v5049
      %v5055 = vrot.slane %v5054, 4
      %v5057 = vshll.u32 %v4276, 16
      %v5059 = vrot.slane %v5057, 5
      %v5060 = vsel %vm4916, %v5055, %v5059
      %v5062 = vshrl.u32 %v4277, 16
      %v5064 = vrot.slane %v5062, 4
      %v5065 = vshll.u32 %v4277, 16
      %v5067 = vrot.slane %v5065, 5
      %v5068 = vor.u32 %v5064, %v5067
      %v5069 = vrot.slane %v5068, 4
      %v5071 = vshll.u32 %v4278, 16
      %v5073 = vrot.slane %v5071, 5
      %v5074 = vsel %vm4916, %v5069, %v5073
      %v5075 = vshrl.u32 %v4278, 16
      %v5077 = vrot.slane %v5075, 4
      %v5078 = vor.u32 %v5077, %v5073
      %v5079 = vrot.slane %v5078, 4
      %v5081 = vshll.u32 %v4279, 16
      %v5083 = vrot.slane %v5081, 5
      %v5084 = vsel %vm4916, %v5079, %v5083
      %v5086 = vshrl.u32 %v4280, 16
      %v5088 = vrot.slane %v5086, 4
      %v5089 = vshll.u32 %v4280, 16
      %v5091 = vrot.slane %v5089, 5
      %v5092 = vor.u32 %v5088, %v5091
      %v5093 = vrot.slane %v5092, 4
      %v5095 = vshll.u32 %v4281, 16
      %v5097 = vrot.slane %v5095, 5
      %v5098 = vsel %vm4916, %v5093, %v5097
      %v5099 = vshrl.u32 %v4281, 16
      %v5101 = vrot.slane %v5099, 4
      %v5102 = vor.u32 %v5101, %v5097
      %v5103 = vrot.slane %v5102, 4
      %v5105 = vshll.u32 %v4282, 16
      %v5107 = vrot.slane %v5105, 5
      %v5108 = vsel %vm4916, %v5103, %v5107
      %v5110 = vshrl.u32 %v4283, 16
      %v5112 = vrot.slane %v5110, 4
      %v5113 = vshll.u32 %v4283, 16
      %v5115 = vrot.slane %v5113, 5
      %v5116 = vor.u32 %v5112, %v5115
      %v5117 = vrot.slane %v5116, 4
      %v5119 = vshll.u32 %v4284, 16
      %v5121 = vrot.slane %v5119, 5
      %v5122 = vsel %vm4916, %v5117, %v5121
      %v5123 = vshrl.u32 %v4284, 16
      %v5125 = vrot.slane %v5123, 4
      %v5126 = vor.u32 %v5125, %v5121
      %v5127 = vrot.slane %v5126, 4
      %v5129 = vshll.u32 %v4285, 16
      %v5131 = vrot.slane %v5129, 5
      %v5132 = vsel %vm4916, %v5127, %v5131
      %v5134 = vshrl.u32 %v4286, 16
      %v5136 = vrot.slane %v5134, 4
      %v5137 = vshll.u32 %v4286, 16
      %v5139 = vrot.slane %v5137, 5
      %v5140 = vor.u32 %v5136, %v5139
      %v5141 = vrot.slane %v5140, 4
      %v5143 = vshll.u32 %v4287, 16
      %v5145 = vrot.slane %v5143, 5
      %v5146 = vsel %vm4916, %v5141, %v5145
      %v5147 = vshrl.u32 %v4287, 16
      %v5149 = vrot.slane %v5147, 4
      %v5150 = vor.u32 %v5149, %v5145
      %v5151 = vrot.slane %v5150, 4
      %v5153 = vshll.u32 %v4288, 16
      %v5155 = vrot.slane %v5153, 5
      %v5156 = vsel %vm4916, %v5151, %v5155
      %v5158 = vshrl.u32 %v4289, 16
      %v5160 = vrot.slane %v5158, 4
      %v5161 = vshll.u32 %v4289, 16
      %v5163 = vrot.slane %v5161, 5
      %v5164 = vor.u32 %v5160, %v5163
      %v5165 = vrot.slane %v5164, 4
      %v5167 = vshll.u32 %v4290, 16
      %v5169 = vrot.slane %v5167, 5
      %v5170 = vsel %vm4916, %v5165, %v5169
      %v5171 = vshrl.u32 %v4290, 16
      %v5173 = vrot.slane %v5171, 4
      %v5174 = vor.u32 %v5173, %v5169
      %v5175 = vrot.slane %v5174, 4
      %v5177 = vshll.u32 %v4291, 16
      %v5179 = vrot.slane %v5177, 5
      %v5180 = vsel %vm4916, %v5175, %v5179
      %v5182 = vshrl.u32 %v4292, 16
      %v5184 = vrot.slane %v5182, 4
      %v5185 = vshll.u32 %v4292, 16
      %v5187 = vrot.slane %v5185, 5
      %v5188 = vor.u32 %v5184, %v5187
      %v5189 = vrot.slane %v5188, 4
      %v5191 = vshll.u32 %v4293, 16
      %v5193 = vrot.slane %v5191, 5
      %v5194 = vsel %vm4916, %v5189, %v5193
      %v5195 = vshrl.u32 %v4293, 16
      %v5197 = vrot.slane %v5195, 4
      %v5198 = vor.u32 %v5197, %v5193
      %v5199 = vrot.slane %v5198, 4
      %v5201 = vshll.u32 %v4294, 16
      %v5203 = vrot.slane %v5201, 5
      %v5204 = vsel %vm4916, %v5199, %v5203
      %v5206 = vshrl.u32 %v4295, 16
      %v5208 = vrot.slane %v5206, 4
      %v5209 = vshll.u32 %v4295, 16
      %v5211 = vrot.slane %v5209, 5
      %v5212 = vor.u32 %v5208, %v5211
      %v5213 = vrot.slane %v5212, 4
      %v5215 = vshll.u32 %v4296, 16
      %v5217 = vrot.slane %v5215, 5
      %v5218 = vsel %vm4916, %v5213, %v5217
      %v5219 = vshrl.u32 %v4296, 16
      %v5221 = vrot.slane %v5219, 4
      %v5222 = vor.u32 %v5221, %v5217
      %v5223 = vrot.slane %v5222, 4
      %v5225 = vshll.u32 %v4297, 16
      %v5227 = vrot.slane %v5225, 5
      %v5228 = vsel %vm4916, %v5223, %v5227
      %v5230 = vshrl.u32 %v4298, 16
      %v5232 = vrot.slane %v5230, 4
      %v5233 = vshll.u32 %v4298, 16
      %v5235 = vrot.slane %v5233, 5
      %v5236 = vor.u32 %v5232, %v5235
      %v5237 = vrot.slane %v5236, 4
      %v5239 = vshll.u32 %v4299, 16
      %v5241 = vrot.slane %v5239, 5
      %v5242 = vsel %vm4916, %v5237, %v5241
      %v5243 = vshrl.u32 %v4299, 16
      %v5245 = vrot.slane %v5243, 4
      %v5246 = vor.u32 %v5245, %v5241
      %v5247 = vrot.slane %v5246, 4
      %v5249 = vshll.u32 %v4300, 16
      %v5251 = vrot.slane %v5249, 5
      %v5252 = vsel %vm4916, %v5247, %v5251
      %v5254 = vshrl.u32 %v4301, 16
      %v5256 = vrot.slane %v5254, 4
      %v5257 = vshll.u32 %v4301, 16
      %v5259 = vrot.slane %v5257, 5
      %v5260 = vor.u32 %v5256, %v5259
      %v5261 = vrot.slane %v5260, 4
      %v5263 = vshll.u32 %v4302, 16
      %v5265 = vrot.slane %v5263, 5
      %v5266 = vsel %vm4916, %v5261, %v5265
      %v5267 = vshrl.u32 %v4302, 16
      %v5269 = vrot.slane %v5267, 4
      %v5270 = vor.u32 %v5269, %v5265
      %v5271 = vrot.slane %v5270, 4
      %v5273 = vshll.u32 %v4303, 16
      %v5275 = vrot.slane %v5273, 5
      %v5276 = vsel %vm4916, %v5271, %v5275
      %v5278 = vshrl.u32 %v4304, 16
      %v5280 = vrot.slane %v5278, 4
      %v5281 = vshll.u32 %v4304, 16
      %v5283 = vrot.slane %v5281, 5
      %v5284 = vor.u32 %v5280, %v5283
      %v5285 = vrot.slane %v5284, 4
      %v5287 = vshll.u32 %v4305, 16
      %v5289 = vrot.slane %v5287, 5
      %v5290 = vsel %vm4916, %v5285, %v5289
      %v5291 = vshrl.u32 %v4305, 16
      %v5293 = vrot.slane %v5291, 4
      %v5294 = vor.u32 %v5293, %v5289
      %v5295 = vrot.slane %v5294, 4
      %v5297 = vshll.u32 %v4306, 16
      %v5299 = vrot.slane %v5297, 5
      %v5300 = vsel %vm4916, %v5295, %v5299
      %s5301 = scalar_lea.vmem %s3, 192
      %v5302 = vld [vmem:[%s5301] sm:$0xf]
      %v5303 = vld [vmem:[%s5301 + $0x4] sm:$0xf]
      %v5304 = vld [vmem:[%s5301 + $0x8] sm:$0xf]
      %v5305 = vld [vmem:[%s5301 + $0xc] sm:$0xf]
      %v5306 = vld [vmem:[%s5301 + $0x10] sm:$0xf]
      %v5307 = vld [vmem:[%s5301 + $0x14] sm:$0xf]
      %v5308 = vld [vmem:[%s5301 + $0x18] sm:$0xf]
      %v5309 = vld [vmem:[%s5301 + $0x1c] sm:$0xf]
      %v5310 = vld [vmem:[%s5301 + $0x20] sm:$0xf]
      %v5311 = vld [vmem:[%s5301 + $0x24] sm:$0xf]
      %v5312 = vld [vmem:[%s5301 + $0x28] sm:$0xf]
      %v5313 = vld [vmem:[%s5301 + $0x2c] sm:$0xf]
      %v5314 = vld [vmem:[%s5301 + $0x30] sm:$0xf]
      %v5315 = vld [vmem:[%s5301 + $0x34] sm:$0xf]
      %v5316 = vld [vmem:[%s5301 + $0x38] sm:$0xf]
      %v5317 = vld [vmem:[%s5301 + $0x3c] sm:$0xf]
      %v5318 = vunpack.c.l.b16 %v4930
      %v5319 = vunpack.c.l.b16 %v4940
      %v5320 = vunpack.c.l.b16 %v4954
      %v5321 = vunpack.c.l.b16 %v4964
      %v5322 = vunpack.c.l.b16 %v4978
      %v5323 = vunpack.c.l.b16 %v4988
      %v5324 = vunpack.c.l.b16 %v5002
      %v5325 = vunpack.c.l.b16 %v5012
      %v5326 = vunpack.c.l.b16 %v5026
      %v5327 = vunpack.c.l.b16 %v5036
      %v5328 = vunpack.c.l.b16 %v5050
      %v5329 = vunpack.c.l.b16 %v5060
      %v5330 = vunpack.c.l.b16 %v5074
      %v5331 = vunpack.c.l.b16 %v5084
      %v5332 = vunpack.c.l.b16 %v5098
      %v5333 = vunpack.c.l.b16 %v5108
      %v5334 = vunpack.c.l.b16 %v5122
      %v5335 = vunpack.c.l.b16 %v5132
      %v5336 = vunpack.c.l.b16 %v5146
      %v5337 = vunpack.c.l.b16 %v5156
      %v5338 = vunpack.c.l.b16 %v5170
      %v5339 = vunpack.c.l.b16 %v5180
      %v5340 = vunpack.c.l.b16 %v5194
      %v5341 = vunpack.c.l.b16 %v5204
      %v5342 = vunpack.c.l.b16 %v5218
      %v5343 = vunpack.c.l.b16 %v5228
      %v5344 = vunpack.c.l.b16 %v5242
      %v5345 = vunpack.c.l.b16 %v5252
      %v5346 = vunpack.c.l.b16 %v5266
      %v5347 = vunpack.c.l.b16 %v5276
      %v5348 = vunpack.c.l.b16 %v5290
      %v5349 = vunpack.c.l.b16 %v5300
      %v5350 = vpack.c.b16 %v5319, %v5318
      %v5351 = vpack.c.b16 %v5321, %v5320
      %v5352 = vpack.c.b16 %v5323, %v5322
      %v5353 = vpack.c.b16 %v5325, %v5324
      %v5354 = vpack.c.b16 %v5327, %v5326
      %v5355 = vpack.c.b16 %v5329, %v5328
      %v5356 = vpack.c.b16 %v5331, %v5330
      %v5357 = vpack.c.b16 %v5333, %v5332
      %v5358 = vpack.c.b16 %v5335, %v5334
      %v5359 = vpack.c.b16 %v5337, %v5336
      %v5360 = vpack.c.b16 %v5339, %v5338
      %v5361 = vpack.c.b16 %v5341, %v5340
      %v5362 = vpack.c.b16 %v5343, %v5342
      %v5363 = vpack.c.b16 %v5345, %v5344
      %v5364 = vpack.c.b16 %v5347, %v5346
      %v5365 = vpack.c.b16 %v5349, %v5348
      %v5398 = vunpack.c.l.b16 %v5302
      %v5399 = vunpack.c.l.b16 %v5303
      %v5400 = vunpack.c.l.b16 %v5304
      %v5401 = vunpack.c.l.b16 %v5305
      %v5402 = vunpack.c.l.b16 %v5306
      %v5403 = vunpack.c.l.b16 %v5307
      %v5404 = vunpack.c.l.b16 %v5308
      %v5405 = vunpack.c.l.b16 %v5309
      %v5406 = vunpack.c.l.b16 %v5310
      %v5407 = vunpack.c.l.b16 %v5311
      %v5408 = vunpack.c.l.b16 %v5312
      %v5409 = vunpack.c.l.b16 %v5313
      %v5410 = vunpack.c.l.b16 %v5314
      %v5411 = vunpack.c.l.b16 %v5315
      %v5412 = vunpack.c.l.b16 %v5316
      %v5413 = vunpack.c.l.b16 %v5317
      %v5414 = vpack.c.b16 %v5399, %v5398
      %v5415 = vpack.c.b16 %v5401, %v5400
      %v5416 = vpack.c.b16 %v5403, %v5402
      %v5417 = vpack.c.b16 %v5405, %v5404
      %v5418 = vpack.c.b16 %v5407, %v5406
      %v5419 = vpack.c.b16 %v5409, %v5408
      %v5420 = vpack.c.b16 %v5411, %v5410
      %v5421 = vpack.c.b16 %v5413, %v5412
      %5430 = vmatpush.bf16.msra.mxu0 %v5421
      %5431 = vmatpush.bf16.msra.mxu0 %v5420
      %5432 = vmatpush.bf16.msra.mxu0 %v5419
      %5433 = vmatpush.bf16.msra.mxu0 %v5418
      %5434 = vmatpush.bf16.msra.mxu0 %v5417
      %5435 = vmatpush.bf16.msra.mxu0 %v5416
      %5436 = vmatpush.bf16.msra.mxu0 %v5415
      %5437 = vmatpush.bf16.msra.mxu0 %v5414
      %5438 = vmatmul.bf16.gmra.mxu0 %v5350
      %v5439 = vpop.f32.mrf.mxu0
      %v5440 = vadd.f32 0.0, %v5439
      %v5441 = vpop.f32.mrf.mxu0
      %v5442 = vadd.f32 0.0, %v5441
      %5443 = vmatmul.bf16.gmra.mxu0 %v5351
      %v5444 = vpop.f32.mrf.mxu0
      %v5445 = vadd.f32 0.0, %v5444
      %v5446 = vpop.f32.mrf.mxu0
      %v5447 = vadd.f32 0.0, %v5446
      %5448 = vmatmul.bf16.gmra.mxu0 %v5352
      %v5449 = vpop.f32.mrf.mxu0
      %v5450 = vadd.f32 0.0, %v5449
      %v5451 = vpop.f32.mrf.mxu0
      %v5452 = vadd.f32 0.0, %v5451
      %5453 = vmatmul.bf16.gmra.mxu0 %v5353
      %v5454 = vpop.f32.mrf.mxu0
      %v5455 = vadd.f32 0.0, %v5454
      %v5456 = vpop.f32.mrf.mxu0
      %v5457 = vadd.f32 0.0, %v5456
      %5458 = vmatmul.bf16.gmra.mxu0 %v5354
      %v5459 = vpop.f32.mrf.mxu0
      %v5460 = vadd.f32 0.0, %v5459
      %v5461 = vpop.f32.mrf.mxu0
      %v5462 = vadd.f32 0.0, %v5461
      %5463 = vmatmul.bf16.gmra.mxu0 %v5355
      %v5464 = vpop.f32.mrf.mxu0
      %v5465 = vadd.f32 0.0, %v5464
      %v5466 = vpop.f32.mrf.mxu0
      %v5467 = vadd.f32 0.0, %v5466
      %5468 = vmatmul.bf16.gmra.mxu0 %v5356
      %v5469 = vpop.f32.mrf.mxu0
      %v5470 = vadd.f32 0.0, %v5469
      %v5471 = vpop.f32.mrf.mxu0
      %v5472 = vadd.f32 0.0, %v5471
      %5473 = vmatmul.bf16.gmra.mxu0 %v5357
      %v5474 = vpop.f32.mrf.mxu0
      %v5475 = vadd.f32 0.0, %v5474
      %v5476 = vpop.f32.mrf.mxu0
      %v5477 = vadd.f32 0.0, %v5476
      %5478 = vmatmul.bf16.gmra.mxu0 %v5358
      %v5479 = vpop.f32.mrf.mxu0
      %v5480 = vadd.f32 0.0, %v5479
      %v5481 = vpop.f32.mrf.mxu0
      %v5482 = vadd.f32 0.0, %v5481
      %5483 = vmatmul.bf16.gmra.mxu0 %v5359
      %v5484 = vpop.f32.mrf.mxu0
      %v5485 = vadd.f32 0.0, %v5484
      %v5486 = vpop.f32.mrf.mxu0
      %v5487 = vadd.f32 0.0, %v5486
      %5488 = vmatmul.bf16.gmra.mxu0 %v5360
      %v5489 = vpop.f32.mrf.mxu0
      %v5490 = vadd.f32 0.0, %v5489
      %v5491 = vpop.f32.mrf.mxu0
      %v5492 = vadd.f32 0.0, %v5491
      %5493 = vmatmul.bf16.gmra.mxu0 %v5361
      %v5494 = vpop.f32.mrf.mxu0
      %v5495 = vadd.f32 0.0, %v5494
      %v5496 = vpop.f32.mrf.mxu0
      %v5497 = vadd.f32 0.0, %v5496
      %5498 = vmatmul.bf16.gmra.mxu0 %v5362
      %v5499 = vpop.f32.mrf.mxu0
      %v5500 = vadd.f32 0.0, %v5499
      %v5501 = vpop.f32.mrf.mxu0
      %v5502 = vadd.f32 0.0, %v5501
      %5503 = vmatmul.bf16.gmra.mxu0 %v5363
      %v5504 = vpop.f32.mrf.mxu0
      %v5505 = vadd.f32 0.0, %v5504
      %v5506 = vpop.f32.mrf.mxu0
      %v5507 = vadd.f32 0.0, %v5506
      %5508 = vmatmul.bf16.gmra.mxu0 %v5364
      %v5509 = vpop.f32.mrf.mxu0
      %v5510 = vadd.f32 0.0, %v5509
      %v5511 = vpop.f32.mrf.mxu0
      %v5512 = vadd.f32 0.0, %v5511
      %5513 = vmatmul.bf16.gmra.mxu0 %v5365
      %v5514 = vpop.f32.mrf.mxu0
      %v5515 = vadd.f32 0.0, %v5514
      %v5516 = vpop.f32.mrf.mxu0
      %v5517 = vadd.f32 0.0, %v5516
      %5518 = vdwg.mxu0
      %v5519 = vadd.f32 %v4882, %v5440
      %v5520 = vadd.f32 %v4883, %v5442
      %v5521 = vadd.f32 %v4884, %v5445
      %v5522 = vadd.f32 %v4885, %v5447
      %v5523 = vadd.f32 %v4886, %v5450
      %v5524 = vadd.f32 %v4887, %v5452
      %v5525 = vadd.f32 %v4888, %v5455
      %v5526 = vadd.f32 %v4889, %v5457
      %v5527 = vadd.f32 %v4890, %v5460
      %v5528 = vadd.f32 %v4891, %v5462
      %v5529 = vadd.f32 %v4892, %v5465
      %v5530 = vadd.f32 %v4893, %v5467
      %v5531 = vadd.f32 %v4894, %v5470
      %v5532 = vadd.f32 %v4895, %v5472
      %v5533 = vadd.f32 %v4896, %v5475
      %v5534 = vadd.f32 %v4897, %v5477
      %v5535 = vadd.f32 %v4898, %v5480
      %v5536 = vadd.f32 %v4899, %v5482
      %v5537 = vadd.f32 %v4900, %v5485
      %v5538 = vadd.f32 %v4901, %v5487
      %v5539 = vadd.f32 %v4902, %v5490
      %v5540 = vadd.f32 %v4903, %v5492
      %v5541 = vadd.f32 %v4904, %v5495
      %v5542 = vadd.f32 %v4905, %v5497
      %v5543 = vadd.f32 %v4906, %v5500
      %v5544 = vadd.f32 %v4907, %v5502
      %v5545 = vadd.f32 %v4908, %v5505
      %v5546 = vadd.f32 %v4909, %v5507
      %v5547 = vadd.f32 %v4910, %v5510
      %v5548 = vadd.f32 %v4911, %v5512
      %v5549 = vadd.f32 %v4912, %v5515
      %v5550 = vadd.f32 %v4913, %v5517
      %v5552 = vshrl.u32 %v4307, 16
      %v5554 = vrot.slane %v5552, 4
      %v5555 = vshll.u32 %v4307, 16
      %v5557 = vrot.slane %v5555, 5
      %v5558 = vor.u32 %v5554, %v5557
      %v5559 = vrot.slane %v5558, 4
      %v5561 = vshll.u32 %v4308, 16
      %v5563 = vrot.slane %v5561, 5
      %v5564 = vsel %vm4916, %v5559, %v5563
      %v5565 = vshrl.u32 %v4308, 16
      %v5567 = vrot.slane %v5565, 4
      %v5568 = vor.u32 %v5567, %v5563
      %v5569 = vrot.slane %v5568, 4
      %v5571 = vshll.u32 %v4309, 16
      %v5573 = vrot.slane %v5571, 5
      %v5574 = vsel %vm4916, %v5569, %v5573
      %s5575 = scalar_lea.vmem %s3, 256
      %v5576 = vld [vmem:[%s5575] sm:$0xf]
      %v5577 = vld [vmem:[%s5575 + $0x4] sm:$0xf]
      %v5578 = vld [vmem:[%s5575 + $0x8] sm:$0xf]
      %v5579 = vld [vmem:[%s5575 + $0xc] sm:$0xf]
      %v5580 = vld [vmem:[%s5575 + $0x10] sm:$0xf]
      %v5581 = vld [vmem:[%s5575 + $0x14] sm:$0xf]
      %v5582 = vld [vmem:[%s5575 + $0x18] sm:$0xf]
      %v5583 = vld [vmem:[%s5575 + $0x1c] sm:$0xf]
      %v5584 = vld [vmem:[%s5575 + $0x20] sm:$0xf]
      %v5585 = vld [vmem:[%s5575 + $0x24] sm:$0xf]
      %v5586 = vld [vmem:[%s5575 + $0x28] sm:$0xf]
      %v5587 = vld [vmem:[%s5575 + $0x2c] sm:$0xf]
      %v5588 = vld [vmem:[%s5575 + $0x30] sm:$0xf]
      %v5589 = vld [vmem:[%s5575 + $0x34] sm:$0xf]
      %v5590 = vld [vmem:[%s5575 + $0x38] sm:$0xf]
      %v5591 = vld [vmem:[%s5575 + $0x3c] sm:$0xf]
      %v5592 = vunpack.c.l.b16 %v5564
      %v5593 = vunpack.c.l.b16 %v5574
      %v5594 = vpack.c.b16 %v5593, %v5592
      %v5612 = vunpack.c.l.b16 %v5576
      %v5613 = vunpack.c.l.b16 %v5577
      %v5614 = vunpack.c.l.b16 %v5578
      %v5615 = vunpack.c.l.b16 %v5579
      %v5616 = vunpack.c.l.b16 %v5580
      %v5617 = vunpack.c.l.b16 %v5581
      %v5618 = vunpack.c.l.b16 %v5582
      %v5619 = vunpack.c.l.b16 %v5583
      %v5620 = vunpack.c.l.b16 %v5584
      %v5621 = vunpack.c.l.b16 %v5585
      %v5622 = vunpack.c.l.b16 %v5586
      %v5623 = vunpack.c.l.b16 %v5587
      %v5624 = vunpack.c.l.b16 %v5588
      %v5625 = vunpack.c.l.b16 %v5589
      %v5626 = vunpack.c.l.b16 %v5590
      %v5627 = vunpack.c.l.b16 %v5591
      %v5628 = vpack.c.b16 %v5613, %v5612
      %v5629 = vpack.c.b16 %v5615, %v5614
      %v5630 = vpack.c.b16 %v5617, %v5616
      %v5631 = vpack.c.b16 %v5619, %v5618
      %v5632 = vpack.c.b16 %v5621, %v5620
      %v5633 = vpack.c.b16 %v5623, %v5622
      %v5634 = vpack.c.b16 %v5625, %v5624
      %v5635 = vpack.c.b16 %v5627, %v5626
      %5644 = vmatpush.bf16.msra.mxu0 %v5635
      %5645 = vmatpush.bf16.msra.mxu0 %v5634
      %5646 = vmatpush.bf16.msra.mxu0 %v5633
      %5647 = vmatpush.bf16.msra.mxu0 %v5632
      %5648 = vmatpush.bf16.msra.mxu0 %v5631
      %5649 = vmatpush.bf16.msra.mxu0 %v5630
      %5650 = vmatpush.bf16.msra.mxu0 %v5629
      %5651 = vmatpush.bf16.msra.mxu0 %v5628
      %5652 = vmatmul.bf16.gmra.mxu0 %v5351
      %v5653 = vpop.f32.mrf.mxu0
      %v5654 = vadd.f32 0.0, %v5653
      %v5655 = vpop.f32.mrf.mxu0
      %v5656 = vadd.f32 0.0, %v5655
      %5657 = vmatmul.bf16.gmra.mxu0 %v5352
      %v5658 = vpop.f32.mrf.mxu0
      %v5659 = vadd.f32 0.0, %v5658
      %v5660 = vpop.f32.mrf.mxu0
      %v5661 = vadd.f32 0.0, %v5660
      %5662 = vmatmul.bf16.gmra.mxu0 %v5353
      %v5663 = vpop.f32.mrf.mxu0
      %v5664 = vadd.f32 0.0, %v5663
      %v5665 = vpop.f32.mrf.mxu0
      %v5666 = vadd.f32 0.0, %v5665
      %5667 = vmatmul.bf16.gmra.mxu0 %v5354
      %v5668 = vpop.f32.mrf.mxu0
      %v5669 = vadd.f32 0.0, %v5668
      %v5670 = vpop.f32.mrf.mxu0
      %v5671 = vadd.f32 0.0, %v5670
      %5672 = vmatmul.bf16.gmra.mxu0 %v5355
      %v5673 = vpop.f32.mrf.mxu0
      %v5674 = vadd.f32 0.0, %v5673
      %v5675 = vpop.f32.mrf.mxu0
      %v5676 = vadd.f32 0.0, %v5675
      %5677 = vmatmul.bf16.gmra.mxu0 %v5356
      %v5678 = vpop.f32.mrf.mxu0
      %v5679 = vadd.f32 0.0, %v5678
      %v5680 = vpop.f32.mrf.mxu0
      %v5681 = vadd.f32 0.0, %v5680
      %5682 = vmatmul.bf16.gmra.mxu0 %v5357
      %v5683 = vpop.f32.mrf.mxu0
      %v5684 = vadd.f32 0.0, %v5683
      %v5685 = vpop.f32.mrf.mxu0
      %v5686 = vadd.f32 0.0, %v5685
      %5687 = vmatmul.bf16.gmra.mxu0 %v5358
      %v5688 = vpop.f32.mrf.mxu0
      %v5689 = vadd.f32 0.0, %v5688
      %v5690 = vpop.f32.mrf.mxu0
      %v5691 = vadd.f32 0.0, %v5690
      %5692 = vmatmul.bf16.gmra.mxu0 %v5359
      %v5693 = vpop.f32.mrf.mxu0
      %v5694 = vadd.f32 0.0, %v5693
      %v5695 = vpop.f32.mrf.mxu0
      %v5696 = vadd.f32 0.0, %v5695
      %5697 = vmatmul.bf16.gmra.mxu0 %v5360
      %v5698 = vpop.f32.mrf.mxu0
      %v5699 = vadd.f32 0.0, %v5698
      %v5700 = vpop.f32.mrf.mxu0
      %v5701 = vadd.f32 0.0, %v5700
      %5702 = vmatmul.bf16.gmra.mxu0 %v5361
      %v5703 = vpop.f32.mrf.mxu0
      %v5704 = vadd.f32 0.0, %v5703
      %v5705 = vpop.f32.mrf.mxu0
      %v5706 = vadd.f32 0.0, %v5705
      %5707 = vmatmul.bf16.gmra.mxu0 %v5362
      %v5708 = vpop.f32.mrf.mxu0
      %v5709 = vadd.f32 0.0, %v5708
      %v5710 = vpop.f32.mrf.mxu0
      %v5711 = vadd.f32 0.0, %v5710
      %5712 = vmatmul.bf16.gmra.mxu0 %v5363
      %v5713 = vpop.f32.mrf.mxu0
      %v5714 = vadd.f32 0.0, %v5713
      %v5715 = vpop.f32.mrf.mxu0
      %v5716 = vadd.f32 0.0, %v5715
      %5717 = vmatmul.bf16.gmra.mxu0 %v5364
      %v5718 = vpop.f32.mrf.mxu0
      %v5719 = vadd.f32 0.0, %v5718
      %v5720 = vpop.f32.mrf.mxu0
      %v5721 = vadd.f32 0.0, %v5720
      %5722 = vmatmul.bf16.gmra.mxu0 %v5365
      %v5723 = vpop.f32.mrf.mxu0
      %v5724 = vadd.f32 0.0, %v5723
      %v5725 = vpop.f32.mrf.mxu0
      %v5726 = vadd.f32 0.0, %v5725
      %5727 = vmatmul.bf16.gmra.mxu0 %v5594
      %v5728 = vpop.f32.mrf.mxu0
      %v5729 = vadd.f32 0.0, %v5728
      %v5730 = vpop.f32.mrf.mxu0
      %v5731 = vadd.f32 0.0, %v5730
      %5732 = vdwg.mxu0
      %v5733 = vadd.f32 %v5519, %v5654
      %v5734 = vadd.f32 %v5520, %v5656
      %v5735 = vadd.f32 %v5521, %v5659
      %v5736 = vadd.f32 %v5522, %v5661
      %v5737 = vadd.f32 %v5523, %v5664
      %v5738 = vadd.f32 %v5524, %v5666
      %v5739 = vadd.f32 %v5525, %v5669
      %v5740 = vadd.f32 %v5526, %v5671
      %v5741 = vadd.f32 %v5527, %v5674
      %v5742 = vadd.f32 %v5528, %v5676
      %v5743 = vadd.f32 %v5529, %v5679
      %v5744 = vadd.f32 %v5530, %v5681
      %v5745 = vadd.f32 %v5531, %v5684
      %v5746 = vadd.f32 %v5532, %v5686
      %v5747 = vadd.f32 %v5533, %v5689
      %v5748 = vadd.f32 %v5534, %v5691
      %v5749 = vadd.f32 %v5535, %v5694
      %v5750 = vadd.f32 %v5536, %v5696
      %v5751 = vadd.f32 %v5537, %v5699
      %v5752 = vadd.f32 %v5538, %v5701
      %v5753 = vadd.f32 %v5539, %v5704
      %v5754 = vadd.f32 %v5540, %v5706
      %v5755 = vadd.f32 %v5541, %v5709
      %v5756 = vadd.f32 %v5542, %v5711
      %v5757 = vadd.f32 %v5543, %v5714
      %v5758 = vadd.f32 %v5544, %v5716
      %v5759 = vadd.f32 %v5545, %v5719
      %v5760 = vadd.f32 %v5546, %v5721
      %v5761 = vadd.f32 %v5547, %v5724
      %v5762 = vadd.f32 %v5548, %v5726
      %v5763 = vadd.f32 %v5549, %v5729
      %v5764 = vadd.f32 %v5550, %v5731
      %v5766 = vshrl.u32 %v4310, 16
      %v5768 = vrot.slane %v5766, 4
      %v5769 = vshll.u32 %v4310, 16
      %v5771 = vrot.slane %v5769, 5
      %v5772 = vor.u32 %v5768, %v5771
      %v5773 = vrot.slane %v5772, 4
      %v5775 = vshll.u32 %v4311, 16
      %v5777 = vrot.slane %v5775, 5
      %v5778 = vsel %vm4916, %v5773, %v5777
      %v5779 = vshrl.u32 %v4311, 16
      %v5781 = vrot.slane %v5779, 4
      %v5782 = vor.u32 %v5781, %v5777
      %v5783 = vrot.slane %v5782, 4
      %v5785 = vshll.u32 %v4312, 16
      %v5787 = vrot.slane %v5785, 5
      %v5788 = vsel %vm4916, %v5783, %v5787
      %s5789 = scalar_lea.vmem %s3, 320
      %v5790 = vld [vmem:[%s5789] sm:$0xf]
      %v5791 = vld [vmem:[%s5789 + $0x4] sm:$0xf]
      %v5792 = vld [vmem:[%s5789 + $0x8] sm:$0xf]
      %v5793 = vld [vmem:[%s5789 + $0xc] sm:$0xf]
      %v5794 = vld [vmem:[%s5789 + $0x10] sm:$0xf]
      %v5795 = vld [vmem:[%s5789 + $0x14] sm:$0xf]
      %v5796 = vld [vmem:[%s5789 + $0x18] sm:$0xf]
      %v5797 = vld [vmem:[%s5789 + $0x1c] sm:$0xf]
      %v5798 = vld [vmem:[%s5789 + $0x20] sm:$0xf]
      %v5799 = vld [vmem:[%s5789 + $0x24] sm:$0xf]
      %v5800 = vld [vmem:[%s5789 + $0x28] sm:$0xf]
      %v5801 = vld [vmem:[%s5789 + $0x2c] sm:$0xf]
      %v5802 = vld [vmem:[%s5789 + $0x30] sm:$0xf]
      %v5803 = vld [vmem:[%s5789 + $0x34] sm:$0xf]
      %v5804 = vld [vmem:[%s5789 + $0x38] sm:$0xf]
      %v5805 = vld [vmem:[%s5789 + $0x3c] sm:$0xf]
      %v5806 = vunpack.c.l.b16 %v5778
      %v5807 = vunpack.c.l.b16 %v5788
      %v5808 = vpack.c.b16 %v5807, %v5806
      %v5826 = vunpack.c.l.b16 %v5790
      %v5827 = vunpack.c.l.b16 %v5791
      %v5828 = vunpack.c.l.b16 %v5792
      %v5829 = vunpack.c.l.b16 %v5793
      %v5830 = vunpack.c.l.b16 %v5794
      %v5831 = vunpack.c.l.b16 %v5795
      %v5832 = vunpack.c.l.b16 %v5796
      %v5833 = vunpack.c.l.b16 %v5797
      %v5834 = vunpack.c.l.b16 %v5798
      %v5835 = vunpack.c.l.b16 %v5799
      %v5836 = vunpack.c.l.b16 %v5800
      %v5837 = vunpack.c.l.b16 %v5801
      %v5838 = vunpack.c.l.b16 %v5802
      %v5839 = vunpack.c.l.b16 %v5803
      %v5840 = vunpack.c.l.b16 %v5804
      %v5841 = vunpack.c.l.b16 %v5805
      %v5842 = vpack.c.b16 %v5827, %v5826
      %v5843 = vpack.c.b16 %v5829, %v5828
      %v5844 = vpack.c.b16 %v5831, %v5830
      %v5845 = vpack.c.b16 %v5833, %v5832
      %v5846 = vpack.c.b16 %v5835, %v5834
      %v5847 = vpack.c.b16 %v5837, %v5836
      %v5848 = vpack.c.b16 %v5839, %v5838
      %v5849 = vpack.c.b16 %v5841, %v5840
      %5858 = vmatpush.bf16.msra.mxu0 %v5849
      %5859 = vmatpush.bf16.msra.mxu0 %v5848
      %5860 = vmatpush.bf16.msra.mxu0 %v5847
      %5861 = vmatpush.bf16.msra.mxu0 %v5846
      %5862 = vmatpush.bf16.msra.mxu0 %v5845
      %5863 = vmatpush.bf16.msra.mxu0 %v5844
      %5864 = vmatpush.bf16.msra.mxu0 %v5843
      %5865 = vmatpush.bf16.msra.mxu0 %v5842
      %5866 = vmatmul.bf16.gmra.mxu0 %v5352
      %v5867 = vpop.f32.mrf.mxu0
      %v5868 = vadd.f32 0.0, %v5867
      %v5869 = vpop.f32.mrf.mxu0
      %v5870 = vadd.f32 0.0, %v5869
      %5871 = vmatmul.bf16.gmra.mxu0 %v5353
      %v5872 = vpop.f32.mrf.mxu0
      %v5873 = vadd.f32 0.0, %v5872
      %v5874 = vpop.f32.mrf.mxu0
      %v5875 = vadd.f32 0.0, %v5874
      %5876 = vmatmul.bf16.gmra.mxu0 %v5354
      %v5877 = vpop.f32.mrf.mxu0
      %v5878 = vadd.f32 0.0, %v5877
      %v5879 = vpop.f32.mrf.mxu0
      %v5880 = vadd.f32 0.0, %v5879
      %5881 = vmatmul.bf16.gmra.mxu0 %v5355
      %v5882 = vpop.f32.mrf.mxu0
      %v5883 = vadd.f32 0.0, %v5882
      %v5884 = vpop.f32.mrf.mxu0
      %v5885 = vadd.f32 0.0, %v5884
      %5886 = vmatmul.bf16.gmra.mxu0 %v5356
      %v5887 = vpop.f32.mrf.mxu0
      %v5888 = vadd.f32 0.0, %v5887
      %v5889 = vpop.f32.mrf.mxu0
      %v5890 = vadd.f32 0.0, %v5889
      %5891 = vmatmul.bf16.gmra.mxu0 %v5357
      %v5892 = vpop.f32.mrf.mxu0
      %v5893 = vadd.f32 0.0, %v5892
      %v5894 = vpop.f32.mrf.mxu0
      %v5895 = vadd.f32 0.0, %v5894
      %5896 = vmatmul.bf16.gmra.mxu0 %v5358
      %v5897 = vpop.f32.mrf.mxu0
      %v5898 = vadd.f32 0.0, %v5897
      %v5899 = vpop.f32.mrf.mxu0
      %v5900 = vadd.f32 0.0, %v5899
      %5901 = vmatmul.bf16.gmra.mxu0 %v5359
      %v5902 = vpop.f32.mrf.mxu0
      %v5903 = vadd.f32 0.0, %v5902
      %v5904 = vpop.f32.mrf.mxu0
      %v5905 = vadd.f32 0.0, %v5904
      %5906 = vmatmul.bf16.gmra.mxu0 %v5360
      %v5907 = vpop.f32.mrf.mxu0
      %v5908 = vadd.f32 0.0, %v5907
      %v5909 = vpop.f32.mrf.mxu0
      %v5910 = vadd.f32 0.0, %v5909
      %5911 = vmatmul.bf16.gmra.mxu0 %v5361
      %v5912 = vpop.f32.mrf.mxu0
      %v5913 = vadd.f32 0.0, %v5912
      %v5914 = vpop.f32.mrf.mxu0
      %v5915 = vadd.f32 0.0, %v5914
      %5916 = vmatmul.bf16.gmra.mxu0 %v5362
      %v5917 = vpop.f32.mrf.mxu0
      %v5918 = vadd.f32 0.0, %v5917
      %v5919 = vpop.f32.mrf.mxu0
      %v5920 = vadd.f32 0.0, %v5919
      %5921 = vmatmul.bf16.gmra.mxu0 %v5363
      %v5922 = vpop.f32.mrf.mxu0
      %v5923 = vadd.f32 0.0, %v5922
      %v5924 = vpop.f32.mrf.mxu0
      %v5925 = vadd.f32 0.0, %v5924
      %5926 = vmatmul.bf16.gmra.mxu0 %v5364
      %v5927 = vpop.f32.mrf.mxu0
      %v5928 = vadd.f32 0.0, %v5927
      %v5929 = vpop.f32.mrf.mxu0
      %v5930 = vadd.f32 0.0, %v5929
      %5931 = vmatmul.bf16.gmra.mxu0 %v5365
      %v5932 = vpop.f32.mrf.mxu0
      %v5933 = vadd.f32 0.0, %v5932
      %v5934 = vpop.f32.mrf.mxu0
      %v5935 = vadd.f32 0.0, %v5934
      %5936 = vmatmul.bf16.gmra.mxu0 %v5594
      %v5937 = vpop.f32.mrf.mxu0
      %v5938 = vadd.f32 0.0, %v5937
      %v5939 = vpop.f32.mrf.mxu0
      %v5940 = vadd.f32 0.0, %v5939
      %5941 = vmatmul.bf16.gmra.mxu0 %v5808
      %v5942 = vpop.f32.mrf.mxu0
      %v5943 = vadd.f32 0.0, %v5942
      %v5944 = vpop.f32.mrf.mxu0
      %v5945 = vadd.f32 0.0, %v5944
      %5946 = vdwg.mxu0
      %v5947 = vadd.f32 %v5733, %v5868
      %v5948 = vadd.f32 %v5734, %v5870
      %v5949 = vadd.f32 %v5735, %v5873
      %v5950 = vadd.f32 %v5736, %v5875
      %v5951 = vadd.f32 %v5737, %v5878
      %v5952 = vadd.f32 %v5738, %v5880
      %v5953 = vadd.f32 %v5739, %v5883
      %v5954 = vadd.f32 %v5740, %v5885
      %v5955 = vadd.f32 %v5741, %v5888
      %v5956 = vadd.f32 %v5742, %v5890
      %v5957 = vadd.f32 %v5743, %v5893
      %v5958 = vadd.f32 %v5744, %v5895
      %v5959 = vadd.f32 %v5745, %v5898
      %v5960 = vadd.f32 %v5746, %v5900
      %v5961 = vadd.f32 %v5747, %v5903
      %v5962 = vadd.f32 %v5748, %v5905
      %v5963 = vadd.f32 %v5749, %v5908
      %v5964 = vadd.f32 %v5750, %v5910
      %v5965 = vadd.f32 %v5751, %v5913
      %v5966 = vadd.f32 %v5752, %v5915
      %v5967 = vadd.f32 %v5753, %v5918
      %v5968 = vadd.f32 %v5754, %v5920
      %v5969 = vadd.f32 %v5755, %v5923
      %v5970 = vadd.f32 %v5756, %v5925
      %v5971 = vadd.f32 %v5757, %v5928
      %v5972 = vadd.f32 %v5758, %v5930
      %v5973 = vadd.f32 %v5759, %v5933
      %v5974 = vadd.f32 %v5760, %v5935
      %v5975 = vadd.f32 %v5761, %v5938
      %v5976 = vadd.f32 %v5762, %v5940
      %v5977 = vadd.f32 %v5763, %v5943
      %v5978 = vadd.f32 %v5764, %v5945
      %vm5995 = vcmask 1042432
      %vm5996 = vcmask 1046532
      %vm5997 = vmor %vm5995, %vm5996
      %v5998 = vrot.slane %v4259, 5
      %v5999 = vrot.slane %v5998, 4
      %v6000 = vrot.slane %v4260, 5
      %v6001 = vsel %vm5997, %v5999, %v6000
      %v6002 = vrot.slane %v6000, 4
      %v6003 = vrot.slane %v4261, 5
      %v6004 = vsel %vm5997, %v6002, %v6003
      %v6005 = vrot.slane %v4262, 5
      %v6006 = vrot.slane %v6005, 4
      %v6007 = vrot.slane %v4263, 5
      %v6008 = vsel %vm5997, %v6006, %v6007
      %v6009 = vrot.slane %v6007, 4
      %v6010 = vrot.slane %v4264, 5
      %v6011 = vsel %vm5997, %v6009, %v6010
      %v6012 = vrot.slane %v4265, 5
      %v6013 = vrot.slane %v6012, 4
      %v6014 = vrot.slane %v4266, 5
      %v6015 = vsel %vm5997, %v6013, %v6014
      %v6016 = vrot.slane %v6014, 4
      %v6017 = vrot.slane %v4267, 5
      %v6018 = vsel %vm5997, %v6016, %v6017
      %v6019 = vrot.slane %v4268, 5
      %v6020 = vrot.slane %v6019, 4
      %v6021 = vrot.slane %v4269, 5
      %v6022 = vsel %vm5997, %v6020, %v6021
      %v6023 = vrot.slane %v6021, 4
      %v6024 = vrot.slane %v4270, 5
      %v6025 = vsel %vm5997, %v6023, %v6024
      %v6026 = vrot.slane %v4271, 5
      %v6027 = vrot.slane %v6026, 4
      %v6028 = vrot.slane %v4272, 5
      %v6029 = vsel %vm5997, %v6027, %v6028
      %v6030 = vrot.slane %v6028, 4
      %v6031 = vrot.slane %v4273, 5
      %v6032 = vsel %vm5997, %v6030, %v6031
      %v6033 = vrot.slane %v4274, 5
      %v6034 = vrot.slane %v6033, 4
      %v6035 = vrot.slane %v4275, 5
      %v6036 = vsel %vm5997, %v6034, %v6035
      %v6037 = vrot.slane %v6035, 4
      %v6038 = vrot.slane %v4276, 5
      %v6039 = vsel %vm5997, %v6037, %v6038
      %v6040 = vrot.slane %v4277, 5
      %v6041 = vrot.slane %v6040, 4
      %v6042 = vrot.slane %v4278, 5
      %v6043 = vsel %vm5997, %v6041, %v6042
      %v6044 = vrot.slane %v6042, 4
      %v6045 = vrot.slane %v4279, 5
      %v6046 = vsel %vm5997, %v6044, %v6045
      %v6047 = vrot.slane %v4280, 5
      %v6048 = vrot.slane %v6047, 4
      %v6049 = vrot.slane %v4281, 5
      %v6050 = vsel %vm5997, %v6048, %v6049
      %v6051 = vrot.slane %v6049, 4
      %v6052 = vrot.slane %v4282, 5
      %v6053 = vsel %vm5997, %v6051, %v6052
      %v6054 = vrot.slane %v4283, 5
      %v6055 = vrot.slane %v6054, 4
      %v6056 = vrot.slane %v4284, 5
      %v6057 = vsel %vm5997, %v6055, %v6056
      %v6058 = vrot.slane %v6056, 4
      %v6059 = vrot.slane %v4285, 5
      %v6060 = vsel %vm5997, %v6058, %v6059
      %v6061 = vrot.slane %v4286, 5
      %v6062 = vrot.slane %v6061, 4
      %v6063 = vrot.slane %v4287, 5
      %v6064 = vsel %vm5997, %v6062, %v6063
      %v6065 = vrot.slane %v6063, 4
      %v6066 = vrot.slane %v4288, 5
      %v6067 = vsel %vm5997, %v6065, %v6066
      %v6068 = vrot.slane %v4289, 5
      %v6069 = vrot.slane %v6068, 4
      %v6070 = vrot.slane %v4290, 5
      %v6071 = vsel %vm5997, %v6069, %v6070
      %v6072 = vrot.slane %v6070, 4
      %v6073 = vrot.slane %v4291, 5
      %v6074 = vsel %vm5997, %v6072, %v6073
      %v6075 = vrot.slane %v4292, 5
      %v6076 = vrot.slane %v6075, 4
      %v6077 = vrot.slane %v4293, 5
      %v6078 = vsel %vm5997, %v6076, %v6077
      %v6079 = vrot.slane %v6077, 4
      %v6080 = vrot.slane %v4294, 5
      %v6081 = vsel %vm5997, %v6079, %v6080
      %v6082 = vrot.slane %v4295, 5
      %v6083 = vrot.slane %v6082, 4
      %v6084 = vrot.slane %v4296, 5
      %v6085 = vsel %vm5997, %v6083, %v6084
      %v6086 = vrot.slane %v6084, 4
      %v6087 = vrot.slane %v4297, 5
      %v6088 = vsel %vm5997, %v6086, %v6087
      %v6089 = vrot.slane %v4298, 5
      %v6090 = vrot.slane %v6089, 4
      %v6091 = vrot.slane %v4299, 5
      %v6092 = vsel %vm5997, %v6090, %v6091
      %v6093 = vrot.slane %v6091, 4
      %v6094 = vrot.slane %v4300, 5
      %v6095 = vsel %vm5997, %v6093, %v6094
      %v6096 = vrot.slane %v4301, 5
      %v6097 = vrot.slane %v6096, 4
      %v6098 = vrot.slane %v4302, 5
      %v6099 = vsel %vm5997, %v6097, %v6098
      %v6100 = vrot.slane %v6098, 4
      %v6101 = vrot.slane %v4303, 5
      %v6102 = vsel %vm5997, %v6100, %v6101
      %v6103 = vrot.slane %v4304, 5
      %v6104 = vrot.slane %v6103, 4
      %v6105 = vrot.slane %v4305, 5
      %v6106 = vsel %vm5997, %v6104, %v6105
      %v6107 = vrot.slane %v6105, 4
      %v6108 = vrot.slane %v4306, 5
      %v6109 = vsel %vm5997, %v6107, %v6108
      %s6110 = scalar_lea.vmem %s3, 384
      %v6111 = vld [vmem:[%s6110] sm:$0xf]
      %v6112 = vld [vmem:[%s6110 + $0x4] sm:$0xf]
      %v6113 = vld [vmem:[%s6110 + $0x8] sm:$0xf]
      %v6114 = vld [vmem:[%s6110 + $0xc] sm:$0xf]
      %v6115 = vld [vmem:[%s6110 + $0x10] sm:$0xf]
      %v6116 = vld [vmem:[%s6110 + $0x14] sm:$0xf]
      %v6117 = vld [vmem:[%s6110 + $0x18] sm:$0xf]
      %v6118 = vld [vmem:[%s6110 + $0x1c] sm:$0xf]
      %v6119 = vld [vmem:[%s6110 + $0x20] sm:$0xf]
      %v6120 = vld [vmem:[%s6110 + $0x24] sm:$0xf]
      %v6121 = vld [vmem:[%s6110 + $0x28] sm:$0xf]
      %v6122 = vld [vmem:[%s6110 + $0x2c] sm:$0xf]
      %v6123 = vld [vmem:[%s6110 + $0x30] sm:$0xf]
      %v6124 = vld [vmem:[%s6110 + $0x34] sm:$0xf]
      %v6125 = vld [vmem:[%s6110 + $0x38] sm:$0xf]
      %v6126 = vld [vmem:[%s6110 + $0x3c] sm:$0xf]
      %v6127 = vunpack.c.l.b16 %v6001
      %v6128 = vunpack.c.l.b16 %v6004
      %v6129 = vunpack.c.l.b16 %v6008
      %v6130 = vunpack.c.l.b16 %v6011
      %v6131 = vunpack.c.l.b16 %v6015
      %v6132 = vunpack.c.l.b16 %v6018
      %v6133 = vunpack.c.l.b16 %v6022
      %v6134 = vunpack.c.l.b16 %v6025
      %v6135 = vunpack.c.l.b16 %v6029
      %v6136 = vunpack.c.l.b16 %v6032
      %v6137 = vunpack.c.l.b16 %v6036
      %v6138 = vunpack.c.l.b16 %v6039
      %v6139 = vunpack.c.l.b16 %v6043
      %v6140 = vunpack.c.l.b16 %v6046
      %v6141 = vunpack.c.l.b16 %v6050
      %v6142 = vunpack.c.l.b16 %v6053
      %v6143 = vunpack.c.l.b16 %v6057
      %v6144 = vunpack.c.l.b16 %v6060
      %v6145 = vunpack.c.l.b16 %v6064
      %v6146 = vunpack.c.l.b16 %v6067
      %v6147 = vunpack.c.l.b16 %v6071
      %v6148 = vunpack.c.l.b16 %v6074
      %v6149 = vunpack.c.l.b16 %v6078
      %v6150 = vunpack.c.l.b16 %v6081
      %v6151 = vunpack.c.l.b16 %v6085
      %v6152 = vunpack.c.l.b16 %v6088
      %v6153 = vunpack.c.l.b16 %v6092
      %v6154 = vunpack.c.l.b16 %v6095
      %v6155 = vunpack.c.l.b16 %v6099
      %v6156 = vunpack.c.l.b16 %v6102
      %v6157 = vunpack.c.l.b16 %v6106
      %v6158 = vunpack.c.l.b16 %v6109
      %v6159 = vpack.c.b16 %v6128, %v6127
      %v6160 = vpack.c.b16 %v6130, %v6129
      %v6161 = vpack.c.b16 %v6132, %v6131
      %v6162 = vpack.c.b16 %v6134, %v6133
      %v6163 = vpack.c.b16 %v6136, %v6135
      %v6164 = vpack.c.b16 %v6138, %v6137
      %v6165 = vpack.c.b16 %v6140, %v6139
      %v6166 = vpack.c.b16 %v6142, %v6141
      %v6167 = vpack.c.b16 %v6144, %v6143
      %v6168 = vpack.c.b16 %v6146, %v6145
      %v6169 = vpack.c.b16 %v6148, %v6147
      %v6170 = vpack.c.b16 %v6150, %v6149
      %v6171 = vpack.c.b16 %v6152, %v6151
      %v6172 = vpack.c.b16 %v6154, %v6153
      %v6173 = vpack.c.b16 %v6156, %v6155
      %v6174 = vpack.c.b16 %v6158, %v6157
      %v6207 = vunpack.c.l.b16 %v6111
      %v6208 = vunpack.c.l.b16 %v6112
      %v6209 = vunpack.c.l.b16 %v6113
      %v6210 = vunpack.c.l.b16 %v6114
      %v6211 = vunpack.c.l.b16 %v6115
      %v6212 = vunpack.c.l.b16 %v6116
      %v6213 = vunpack.c.l.b16 %v6117
      %v6214 = vunpack.c.l.b16 %v6118
      %v6215 = vunpack.c.l.b16 %v6119
      %v6216 = vunpack.c.l.b16 %v6120
      %v6217 = vunpack.c.l.b16 %v6121
      %v6218 = vunpack.c.l.b16 %v6122
      %v6219 = vunpack.c.l.b16 %v6123
      %v6220 = vunpack.c.l.b16 %v6124
      %v6221 = vunpack.c.l.b16 %v6125
      %v6222 = vunpack.c.l.b16 %v6126
      %v6223 = vpack.c.b16 %v6208, %v6207
      %v6224 = vpack.c.b16 %v6210, %v6209
      %v6225 = vpack.c.b16 %v6212, %v6211
      %v6226 = vpack.c.b16 %v6214, %v6213
      %v6227 = vpack.c.b16 %v6216, %v6215
      %v6228 = vpack.c.b16 %v6218, %v6217
      %v6229 = vpack.c.b16 %v6220, %v6219
      %v6230 = vpack.c.b16 %v6222, %v6221
      %6239 = vmatpush.bf16.msra.mxu0 %v6230
      %6240 = vmatpush.bf16.msra.mxu0 %v6229
      %6241 = vmatpush.bf16.msra.mxu0 %v6228
      %6242 = vmatpush.bf16.msra.mxu0 %v6227
      %6243 = vmatpush.bf16.msra.mxu0 %v6226
      %6244 = vmatpush.bf16.msra.mxu0 %v6225
      %6245 = vmatpush.bf16.msra.mxu0 %v6224
      %6246 = vmatpush.bf16.msra.mxu0 %v6223
      %6247 = vmatmul.bf16.gmra.mxu0 %v6159
      %v6248 = vpop.f32.mrf.mxu0
      %v6249 = vadd.f32 0.0, %v6248
      %v6250 = vpop.f32.mrf.mxu0
      %v6251 = vadd.f32 0.0, %v6250
      %6252 = vmatmul.bf16.gmra.mxu0 %v6160
      %v6253 = vpop.f32.mrf.mxu0
      %v6254 = vadd.f32 0.0, %v6253
      %v6255 = vpop.f32.mrf.mxu0
      %v6256 = vadd.f32 0.0, %v6255
      %6257 = vmatmul.bf16.gmra.mxu0 %v6161
      %v6258 = vpop.f32.mrf.mxu0
      %v6259 = vadd.f32 0.0, %v6258
      %v6260 = vpop.f32.mrf.mxu0
      %v6261 = vadd.f32 0.0, %v6260
      %6262 = vmatmul.bf16.gmra.mxu0 %v6162
      %v6263 = vpop.f32.mrf.mxu0
      %v6264 = vadd.f32 0.0, %v6263
      %v6265 = vpop.f32.mrf.mxu0
      %v6266 = vadd.f32 0.0, %v6265
      %6267 = vmatmul.bf16.gmra.mxu0 %v6163
      %v6268 = vpop.f32.mrf.mxu0
      %v6269 = vadd.f32 0.0, %v6268
      %v6270 = vpop.f32.mrf.mxu0
      %v6271 = vadd.f32 0.0, %v6270
      %6272 = vmatmul.bf16.gmra.mxu0 %v6164
      %v6273 = vpop.f32.mrf.mxu0
      %v6274 = vadd.f32 0.0, %v6273
      %v6275 = vpop.f32.mrf.mxu0
      %v6276 = vadd.f32 0.0, %v6275
      %6277 = vmatmul.bf16.gmra.mxu0 %v6165
      %v6278 = vpop.f32.mrf.mxu0
      %v6279 = vadd.f32 0.0, %v6278
      %v6280 = vpop.f32.mrf.mxu0
      %v6281 = vadd.f32 0.0, %v6280
      %6282 = vmatmul.bf16.gmra.mxu0 %v6166
      %v6283 = vpop.f32.mrf.mxu0
      %v6284 = vadd.f32 0.0, %v6283
      %v6285 = vpop.f32.mrf.mxu0
      %v6286 = vadd.f32 0.0, %v6285
      %6287 = vmatmul.bf16.gmra.mxu0 %v6167
      %v6288 = vpop.f32.mrf.mxu0
      %v6289 = vadd.f32 0.0, %v6288
      %v6290 = vpop.f32.mrf.mxu0
      %v6291 = vadd.f32 0.0, %v6290
      %6292 = vmatmul.bf16.gmra.mxu0 %v6168
      %v6293 = vpop.f32.mrf.mxu0
      %v6294 = vadd.f32 0.0, %v6293
      %v6295 = vpop.f32.mrf.mxu0
      %v6296 = vadd.f32 0.0, %v6295
      %6297 = vmatmul.bf16.gmra.mxu0 %v6169
      %v6298 = vpop.f32.mrf.mxu0
      %v6299 = vadd.f32 0.0, %v6298
      %v6300 = vpop.f32.mrf.mxu0
      %v6301 = vadd.f32 0.0, %v6300
      %6302 = vmatmul.bf16.gmra.mxu0 %v6170
      %v6303 = vpop.f32.mrf.mxu0
      %v6304 = vadd.f32 0.0, %v6303
      %v6305 = vpop.f32.mrf.mxu0
      %v6306 = vadd.f32 0.0, %v6305
      %6307 = vmatmul.bf16.gmra.mxu0 %v6171
      %v6308 = vpop.f32.mrf.mxu0
      %v6309 = vadd.f32 0.0, %v6308
      %v6310 = vpop.f32.mrf.mxu0
      %v6311 = vadd.f32 0.0, %v6310
      %6312 = vmatmul.bf16.gmra.mxu0 %v6172
      %v6313 = vpop.f32.mrf.mxu0
      %v6314 = vadd.f32 0.0, %v6313
      %v6315 = vpop.f32.mrf.mxu0
      %v6316 = vadd.f32 0.0, %v6315
      %6317 = vmatmul.bf16.gmra.mxu0 %v6173
      %v6318 = vpop.f32.mrf.mxu0
      %v6319 = vadd.f32 0.0, %v6318
      %v6320 = vpop.f32.mrf.mxu0
      %v6321 = vadd.f32 0.0, %v6320
      %6322 = vmatmul.bf16.gmra.mxu0 %v6174
      %v6323 = vpop.f32.mrf.mxu0
      %v6324 = vadd.f32 0.0, %v6323
      %v6325 = vpop.f32.mrf.mxu0
      %v6326 = vadd.f32 0.0, %v6325
      %6327 = vdwg.mxu0
      %v6328 = vadd.f32 %v5947, %v6249
      %v6329 = vadd.f32 %v5948, %v6251
      %v6330 = vadd.f32 %v5949, %v6254
      %v6331 = vadd.f32 %v5950, %v6256
      %v6332 = vadd.f32 %v5951, %v6259
      %v6333 = vadd.f32 %v5952, %v6261
      %v6334 = vadd.f32 %v5953, %v6264
      %v6335 = vadd.f32 %v5954, %v6266
      %v6336 = vadd.f32 %v5955, %v6269
      %v6337 = vadd.f32 %v5956, %v6271
      %v6338 = vadd.f32 %v5957, %v6274
      %v6339 = vadd.f32 %v5958, %v6276
      %v6340 = vadd.f32 %v5959, %v6279
      %v6341 = vadd.f32 %v5960, %v6281
      %v6342 = vadd.f32 %v5961, %v6284
      %v6343 = vadd.f32 %v5962, %v6286
      %v6344 = vadd.f32 %v5963, %v6289
      %v6345 = vadd.f32 %v5964, %v6291
      %v6346 = vadd.f32 %v5965, %v6294
      %v6347 = vadd.f32 %v5966, %v6296
      %v6348 = vadd.f32 %v5967, %v6299
      %v6349 = vadd.f32 %v5968, %v6301
      %v6350 = vadd.f32 %v5969, %v6304
      %v6351 = vadd.f32 %v5970, %v6306
      %v6352 = vadd.f32 %v5971, %v6309
      %v6353 = vadd.f32 %v5972, %v6311
      %v6354 = vadd.f32 %v5973, %v6314
      %v6355 = vadd.f32 %v5974, %v6316
      %v6356 = vadd.f32 %v5975, %v6319
      %v6357 = vadd.f32 %v5976, %v6321
      %v6358 = vadd.f32 %v5977, %v6324
      %v6359 = vadd.f32 %v5978, %v6326
      %v6361 = vrot.slane %v4307, 5
      %v6362 = vrot.slane %v6361, 4
      %v6363 = vrot.slane %v4308, 5
      %v6364 = vsel %vm5997, %v6362, %v6363
      %v6365 = vrot.slane %v6363, 4
      %v6366 = vrot.slane %v4309, 5
      %v6367 = vsel %vm5997, %v6365, %v6366
      %s6368 = scalar_lea.vmem %s3, 448
      %v6369 = vld [vmem:[%s6368] sm:$0xf]
      %v6370 = vld [vmem:[%s6368 + $0x4] sm:$0xf]
      %v6371 = vld [vmem:[%s6368 + $0x8] sm:$0xf]
      %v6372 = vld [vmem:[%s6368 + $0xc] sm:$0xf]
      %v6373 = vld [vmem:[%s6368 + $0x10] sm:$0xf]
      %v6374 = vld [vmem:[%s6368 + $0x14] sm:$0xf]
      %v6375 = vld [vmem:[%s6368 + $0x18] sm:$0xf]
      %v6376 = vld [vmem:[%s6368 + $0x1c] sm:$0xf]
      %v6377 = vld [vmem:[%s6368 + $0x20] sm:$0xf]
      %v6378 = vld [vmem:[%s6368 + $0x24] sm:$0xf]
      %v6379 = vld [vmem:[%s6368 + $0x28] sm:$0xf]
      %v6380 = vld [vmem:[%s6368 + $0x2c] sm:$0xf]
      %v6381 = vld [vmem:[%s6368 + $0x30] sm:$0xf]
      %v6382 = vld [vmem:[%s6368 + $0x34] sm:$0xf]
      %v6383 = vld [vmem:[%s6368 + $0x38] sm:$0xf]
      %v6384 = vld [vmem:[%s6368 + $0x3c] sm:$0xf]
      %v6385 = vunpack.c.l.b16 %v6364
      %v6386 = vunpack.c.l.b16 %v6367
      %v6387 = vpack.c.b16 %v6386, %v6385
      %v6405 = vunpack.c.l.b16 %v6369
      %v6406 = vunpack.c.l.b16 %v6370
      %v6407 = vunpack.c.l.b16 %v6371
      %v6408 = vunpack.c.l.b16 %v6372
      %v6409 = vunpack.c.l.b16 %v6373
      %v6410 = vunpack.c.l.b16 %v6374
      %v6411 = vunpack.c.l.b16 %v6375
      %v6412 = vunpack.c.l.b16 %v6376
      %v6413 = vunpack.c.l.b16 %v6377
      %v6414 = vunpack.c.l.b16 %v6378
      %v6415 = vunpack.c.l.b16 %v6379
      %v6416 = vunpack.c.l.b16 %v6380
      %v6417 = vunpack.c.l.b16 %v6381
      %v6418 = vunpack.c.l.b16 %v6382
      %v6419 = vunpack.c.l.b16 %v6383
      %v6420 = vunpack.c.l.b16 %v6384
      %v6421 = vpack.c.b16 %v6406, %v6405
      %v6422 = vpack.c.b16 %v6408, %v6407
      %v6423 = vpack.c.b16 %v6410, %v6409
      %v6424 = vpack.c.b16 %v6412, %v6411
      %v6425 = vpack.c.b16 %v6414, %v6413
      %v6426 = vpack.c.b16 %v6416, %v6415
      %v6427 = vpack.c.b16 %v6418, %v6417
      %v6428 = vpack.c.b16 %v6420, %v6419
      %6437 = vmatpush.bf16.msra.mxu0 %v6428
      %6438 = vmatpush.bf16.msra.mxu0 %v6427
      %6439 = vmatpush.bf16.msra.mxu0 %v6426
      %6440 = vmatpush.bf16.msra.mxu0 %v6425
      %6441 = vmatpush.bf16.msra.mxu0 %v6424
      %6442 = vmatpush.bf16.msra.mxu0 %v6423
      %6443 = vmatpush.bf16.msra.mxu0 %v6422
      %6444 = vmatpush.bf16.msra.mxu0 %v6421
      %6445 = vmatmul.bf16.gmra.mxu0 %v6160
      %v6446 = vpop.f32.mrf.mxu0
      %v6447 = vadd.f32 0.0, %v6446
      %v6448 = vpop.f32.mrf.mxu0
      %v6449 = vadd.f32 0.0, %v6448
      %6450 = vmatmul.bf16.gmra.mxu0 %v6161
      %v6451 = vpop.f32.mrf.mxu0
      %v6452 = vadd.f32 0.0, %v6451
      %v6453 = vpop.f32.mrf.mxu0
      %v6454 = vadd.f32 0.0, %v6453
      %6455 = vmatmul.bf16.gmra.mxu0 %v6162
      %v6456 = vpop.f32.mrf.mxu0
      %v6457 = vadd.f32 0.0, %v6456
      %v6458 = vpop.f32.mrf.mxu0
      %v6459 = vadd.f32 0.0, %v6458
      %6460 = vmatmul.bf16.gmra.mxu0 %v6163
      %v6461 = vpop.f32.mrf.mxu0
      %v6462 = vadd.f32 0.0, %v6461
      %v6463 = vpop.f32.mrf.mxu0
      %v6464 = vadd.f32 0.0, %v6463
      %6465 = vmatmul.bf16.gmra.mxu0 %v6164
      %v6466 = vpop.f32.mrf.mxu0
      %v6467 = vadd.f32 0.0, %v6466
      %v6468 = vpop.f32.mrf.mxu0
      %v6469 = vadd.f32 0.0, %v6468
      %6470 = vmatmul.bf16.gmra.mxu0 %v6165
      %v6471 = vpop.f32.mrf.mxu0
      %v6472 = vadd.f32 0.0, %v6471
      %v6473 = vpop.f32.mrf.mxu0
      %v6474 = vadd.f32 0.0, %v6473
      %6475 = vmatmul.bf16.gmra.mxu0 %v6166
      %v6476 = vpop.f32.mrf.mxu0
      %v6477 = vadd.f32 0.0, %v6476
      %v6478 = vpop.f32.mrf.mxu0
      %v6479 = vadd.f32 0.0, %v6478
      %6480 = vmatmul.bf16.gmra.mxu0 %v6167
      %v6481 = vpop.f32.mrf.mxu0
      %v6482 = vadd.f32 0.0, %v6481
      %v6483 = vpop.f32.mrf.mxu0
      %v6484 = vadd.f32 0.0, %v6483
      %6485 = vmatmul.bf16.gmra.mxu0 %v6168
      %v6486 = vpop.f32.mrf.mxu0
      %v6487 = vadd.f32 0.0, %v6486
      %v6488 = vpop.f32.mrf.mxu0
      %v6489 = vadd.f32 0.0, %v6488
      %6490 = vmatmul.bf16.gmra.mxu0 %v6169
      %v6491 = vpop.f32.mrf.mxu0
      %v6492 = vadd.f32 0.0, %v6491
      %v6493 = vpop.f32.mrf.mxu0
      %v6494 = vadd.f32 0.0, %v6493
      %6495 = vmatmul.bf16.gmra.mxu0 %v6170
      %v6496 = vpop.f32.mrf.mxu0
      %v6497 = vadd.f32 0.0, %v6496
      %v6498 = vpop.f32.mrf.mxu0
      %v6499 = vadd.f32 0.0, %v6498
      %6500 = vmatmul.bf16.gmra.mxu0 %v6171
      %v6501 = vpop.f32.mrf.mxu0
      %v6502 = vadd.f32 0.0, %v6501
      %v6503 = vpop.f32.mrf.mxu0
      %v6504 = vadd.f32 0.0, %v6503
      %6505 = vmatmul.bf16.gmra.mxu0 %v6172
      %v6506 = vpop.f32.mrf.mxu0
      %v6507 = vadd.f32 0.0, %v6506
      %v6508 = vpop.f32.mrf.mxu0
      %v6509 = vadd.f32 0.0, %v6508
      %6510 = vmatmul.bf16.gmra.mxu0 %v6173
      %v6511 = vpop.f32.mrf.mxu0
      %v6512 = vadd.f32 0.0, %v6511
      %v6513 = vpop.f32.mrf.mxu0
      %v6514 = vadd.f32 0.0, %v6513
      %6515 = vmatmul.bf16.gmra.mxu0 %v6174
      %v6516 = vpop.f32.mrf.mxu0
      %v6517 = vadd.f32 0.0, %v6516
      %v6518 = vpop.f32.mrf.mxu0
      %v6519 = vadd.f32 0.0, %v6518
      %6520 = vmatmul.bf16.gmra.mxu0 %v6387
      %v6521 = vpop.f32.mrf.mxu0
      %v6522 = vadd.f32 0.0, %v6521
      %v6523 = vpop.f32.mrf.mxu0
      %v6524 = vadd.f32 0.0, %v6523
      %6525 = vdwg.mxu0
      %v6526 = vadd.f32 %v6328, %v6447
      %v6527 = vadd.f32 %v6329, %v6449
      %v6528 = vadd.f32 %v6330, %v6452
      %v6529 = vadd.f32 %v6331, %v6454
      %v6530 = vadd.f32 %v6332, %v6457
      %v6531 = vadd.f32 %v6333, %v6459
      %v6532 = vadd.f32 %v6334, %v6462
      %v6533 = vadd.f32 %v6335, %v6464
      %v6534 = vadd.f32 %v6336, %v6467
      %v6535 = vadd.f32 %v6337, %v6469
      %v6536 = vadd.f32 %v6338, %v6472
      %v6537 = vadd.f32 %v6339, %v6474
      %v6538 = vadd.f32 %v6340, %v6477
      %v6539 = vadd.f32 %v6341, %v6479
      %v6540 = vadd.f32 %v6342, %v6482
      %v6541 = vadd.f32 %v6343, %v6484
      %v6542 = vadd.f32 %v6344, %v6487
      %v6543 = vadd.f32 %v6345, %v6489
      %v6544 = vadd.f32 %v6346, %v6492
      %v6545 = vadd.f32 %v6347, %v6494
      %v6546 = vadd.f32 %v6348, %v6497
      %v6547 = vadd.f32 %v6349, %v6499
      %v6548 = vadd.f32 %v6350, %v6502
      %v6549 = vadd.f32 %v6351, %v6504
      %v6550 = vadd.f32 %v6352, %v6507
      %v6551 = vadd.f32 %v6353, %v6509
      %v6552 = vadd.f32 %v6354, %v6512
      %v6553 = vadd.f32 %v6355, %v6514
      %v6554 = vadd.f32 %v6356, %v6517
      %v6555 = vadd.f32 %v6357, %v6519
      %v6556 = vadd.f32 %v6358, %v6522
      %v6557 = vadd.f32 %v6359, %v6524
      %v6559 = vrot.slane %v4310, 5
      %v6560 = vrot.slane %v6559, 4
      %v6561 = vrot.slane %v4311, 5
      %v6562 = vsel %vm5997, %v6560, %v6561
      %v6563 = vrot.slane %v6561, 4
      %v6564 = vrot.slane %v4312, 5
      %v6565 = vsel %vm5997, %v6563, %v6564
      %s6566 = scalar_lea.vmem %s3, 512
      %v6567 = vld [vmem:[%s6566] sm:$0xf]
      %v6568 = vld [vmem:[%s6566 + $0x4] sm:$0xf]
      %v6569 = vld [vmem:[%s6566 + $0x8] sm:$0xf]
      %v6570 = vld [vmem:[%s6566 + $0xc] sm:$0xf]
      %v6571 = vld [vmem:[%s6566 + $0x10] sm:$0xf]
      %v6572 = vld [vmem:[%s6566 + $0x14] sm:$0xf]
      %v6573 = vld [vmem:[%s6566 + $0x18] sm:$0xf]
      %v6574 = vld [vmem:[%s6566 + $0x1c] sm:$0xf]
      %v6575 = vld [vmem:[%s6566 + $0x20] sm:$0xf]
      %v6576 = vld [vmem:[%s6566 + $0x24] sm:$0xf]
      %v6577 = vld [vmem:[%s6566 + $0x28] sm:$0xf]
      %v6578 = vld [vmem:[%s6566 + $0x2c] sm:$0xf]
      %v6579 = vld [vmem:[%s6566 + $0x30] sm:$0xf]
      %v6580 = vld [vmem:[%s6566 + $0x34] sm:$0xf]
      %v6581 = vld [vmem:[%s6566 + $0x38] sm:$0xf]
      %v6582 = vld [vmem:[%s6566 + $0x3c] sm:$0xf]
      %v6583 = vunpack.c.l.b16 %v6562
      %v6584 = vunpack.c.l.b16 %v6565
      %v6585 = vpack.c.b16 %v6584, %v6583
      %v6603 = vunpack.c.l.b16 %v6567
      %v6604 = vunpack.c.l.b16 %v6568
      %v6605 = vunpack.c.l.b16 %v6569
      %v6606 = vunpack.c.l.b16 %v6570
      %v6607 = vunpack.c.l.b16 %v6571
      %v6608 = vunpack.c.l.b16 %v6572
      %v6609 = vunpack.c.l.b16 %v6573
      %v6610 = vunpack.c.l.b16 %v6574
      %v6611 = vunpack.c.l.b16 %v6575
      %v6612 = vunpack.c.l.b16 %v6576
      %v6613 = vunpack.c.l.b16 %v6577
      %v6614 = vunpack.c.l.b16 %v6578
      %v6615 = vunpack.c.l.b16 %v6579
      %v6616 = vunpack.c.l.b16 %v6580
      %v6617 = vunpack.c.l.b16 %v6581
      %v6618 = vunpack.c.l.b16 %v6582
      %v6619 = vpack.c.b16 %v6604, %v6603
      %v6620 = vpack.c.b16 %v6606, %v6605
      %v6621 = vpack.c.b16 %v6608, %v6607
      %v6622 = vpack.c.b16 %v6610, %v6609
      %v6623 = vpack.c.b16 %v6612, %v6611
      %v6624 = vpack.c.b16 %v6614, %v6613
      %v6625 = vpack.c.b16 %v6616, %v6615
      %v6626 = vpack.c.b16 %v6618, %v6617
      %6635 = vmatpush.bf16.msra.mxu0 %v6626
      %6636 = vmatpush.bf16.msra.mxu0 %v6625
      %6637 = vmatpush.bf16.msra.mxu0 %v6624
      %6638 = vmatpush.bf16.msra.mxu0 %v6623
      %6639 = vmatpush.bf16.msra.mxu0 %v6622
      %6640 = vmatpush.bf16.msra.mxu0 %v6621
      %6641 = vmatpush.bf16.msra.mxu0 %v6620
      %6642 = vmatpush.bf16.msra.mxu0 %v6619
      %6643 = vmatmul.bf16.gmra.mxu0 %v6161
      %v6644 = vpop.f32.mrf.mxu0
      %v6645 = vadd.f32 0.0, %v6644
      %v6646 = vpop.f32.mrf.mxu0
      %v6647 = vadd.f32 0.0, %v6646
      %6648 = vmatmul.bf16.gmra.mxu0 %v6162
      %v6649 = vpop.f32.mrf.mxu0
      %v6650 = vadd.f32 0.0, %v6649
      %v6651 = vpop.f32.mrf.mxu0
      %v6652 = vadd.f32 0.0, %v6651
      %6653 = vmatmul.bf16.gmra.mxu0 %v6163
      %v6654 = vpop.f32.mrf.mxu0
      %v6655 = vadd.f32 0.0, %v6654
      %v6656 = vpop.f32.mrf.mxu0
      %v6657 = vadd.f32 0.0, %v6656
      %6658 = vmatmul.bf16.gmra.mxu0 %v6164
      %v6659 = vpop.f32.mrf.mxu0
      %v6660 = vadd.f32 0.0, %v6659
      %v6661 = vpop.f32.mrf.mxu0
      %v6662 = vadd.f32 0.0, %v6661
      %6663 = vmatmul.bf16.gmra.mxu0 %v6165
      %v6664 = vpop.f32.mrf.mxu0
      %v6665 = vadd.f32 0.0, %v6664
      %v6666 = vpop.f32.mrf.mxu0
      %v6667 = vadd.f32 0.0, %v6666
      %6668 = vmatmul.bf16.gmra.mxu0 %v6166
      %v6669 = vpop.f32.mrf.mxu0
      %v6670 = vadd.f32 0.0, %v6669
      %v6671 = vpop.f32.mrf.mxu0
      %v6672 = vadd.f32 0.0, %v6671
      %6673 = vmatmul.bf16.gmra.mxu0 %v6167
      %v6674 = vpop.f32.mrf.mxu0
      %v6675 = vadd.f32 0.0, %v6674
      %v6676 = vpop.f32.mrf.mxu0
      %v6677 = vadd.f32 0.0, %v6676
      %6678 = vmatmul.bf16.gmra.mxu0 %v6168
      %v6679 = vpop.f32.mrf.mxu0
      %v6680 = vadd.f32 0.0, %v6679
      %v6681 = vpop.f32.mrf.mxu0
      %v6682 = vadd.f32 0.0, %v6681
      %6683 = vmatmul.bf16.gmra.mxu0 %v6169
      %v6684 = vpop.f32.mrf.mxu0
      %v6685 = vadd.f32 0.0, %v6684
      %v6686 = vpop.f32.mrf.mxu0
      %v6687 = vadd.f32 0.0, %v6686
      %6688 = vmatmul.bf16.gmra.mxu0 %v6170
      %v6689 = vpop.f32.mrf.mxu0
      %v6690 = vadd.f32 0.0, %v6689
      %v6691 = vpop.f32.mrf.mxu0
      %v6692 = vadd.f32 0.0, %v6691
      %6693 = vmatmul.bf16.gmra.mxu0 %v6171
      %v6694 = vpop.f32.mrf.mxu0
      %v6695 = vadd.f32 0.0, %v6694
      %v6696 = vpop.f32.mrf.mxu0
      %v6697 = vadd.f32 0.0, %v6696
      %6698 = vmatmul.bf16.gmra.mxu0 %v6172
      %v6699 = vpop.f32.mrf.mxu0
      %v6700 = vadd.f32 0.0, %v6699
      %v6701 = vpop.f32.mrf.mxu0
      %v6702 = vadd.f32 0.0, %v6701
      %6703 = vmatmul.bf16.gmra.mxu0 %v6173
      %v6704 = vpop.f32.mrf.mxu0
      %v6705 = vadd.f32 0.0, %v6704
      %v6706 = vpop.f32.mrf.mxu0
      %v6707 = vadd.f32 0.0, %v6706
      %6708 = vmatmul.bf16.gmra.mxu0 %v6174
      %v6709 = vpop.f32.mrf.mxu0
      %v6710 = vadd.f32 0.0, %v6709
      %v6711 = vpop.f32.mrf.mxu0
      %v6712 = vadd.f32 0.0, %v6711
      %6713 = vmatmul.bf16.gmra.mxu0 %v6387
      %v6714 = vpop.f32.mrf.mxu0
      %v6715 = vadd.f32 0.0, %v6714
      %v6716 = vpop.f32.mrf.mxu0
      %v6717 = vadd.f32 0.0, %v6716
      %6718 = vmatmul.bf16.gmra.mxu0 %v6585
      %v6719 = vpop.f32.mrf.mxu0
      %v6720 = vadd.f32 0.0, %v6719
      %v6721 = vpop.f32.mrf.mxu0
      %v6722 = vadd.f32 0.0, %v6721
      %6723 = vdwg.mxu0
      %v6724 = vadd.f32 %v6526, %v6645
      %v6725 = vadd.f32 %v6527, %v6647
      %v6726 = vadd.f32 %v6528, %v6650
      %v6727 = vadd.f32 %v6529, %v6652
      %v6728 = vadd.f32 %v6530, %v6655
      %v6729 = vadd.f32 %v6531, %v6657
      %v6730 = vadd.f32 %v6532, %v6660
      %v6731 = vadd.f32 %v6533, %v6662
      %v6732 = vadd.f32 %v6534, %v6665
      %v6733 = vadd.f32 %v6535, %v6667
      %v6734 = vadd.f32 %v6536, %v6670
      %v6735 = vadd.f32 %v6537, %v6672
      %v6736 = vadd.f32 %v6538, %v6675
      %v6737 = vadd.f32 %v6539, %v6677
      %v6738 = vadd.f32 %v6540, %v6680
      %v6739 = vadd.f32 %v6541, %v6682
      %v6740 = vadd.f32 %v6542, %v6685
      %v6741 = vadd.f32 %v6543, %v6687
      %v6742 = vadd.f32 %v6544, %v6690
      %v6743 = vadd.f32 %v6545, %v6692
      %v6744 = vadd.f32 %v6546, %v6695
      %v6745 = vadd.f32 %v6547, %v6697
      %v6746 = vadd.f32 %v6548, %v6700
      %v6747 = vadd.f32 %v6549, %v6702
      %v6748 = vadd.f32 %v6550, %v6705
      %v6749 = vadd.f32 %v6551, %v6707
      %v6750 = vadd.f32 %v6552, %v6710
      %v6751 = vadd.f32 %v6553, %v6712
      %v6752 = vadd.f32 %v6554, %v6715
      %v6753 = vadd.f32 %v6555, %v6717
      %v6754 = vadd.f32 %v6556, %v6720
      %v6755 = vadd.f32 %v6557, %v6722
      %v6756 = vld [vmem:[%s4] sm:$0x1]
      %v6758 = vperm.slane %v6756, 0
      %v6760 = vadd.f32 %v6724, %v6758
      %v6761 = vadd.f32 %v6725, %v6758
      %v6762 = vadd.f32 %v6726, %v6758
      %v6763 = vadd.f32 %v6727, %v6758
      %v6764 = vadd.f32 %v6728, %v6758
      %v6765 = vadd.f32 %v6729, %v6758
      %v6766 = vadd.f32 %v6730, %v6758
      %v6767 = vadd.f32 %v6731, %v6758
      %v6768 = vadd.f32 %v6732, %v6758
      %v6769 = vadd.f32 %v6733, %v6758
      %v6770 = vadd.f32 %v6734, %v6758
      %v6771 = vadd.f32 %v6735, %v6758
      %v6772 = vadd.f32 %v6736, %v6758
      %v6773 = vadd.f32 %v6737, %v6758
      %v6774 = vadd.f32 %v6738, %v6758
      %v6775 = vadd.f32 %v6739, %v6758
      %v6776 = vadd.f32 %v6740, %v6758
      %v6777 = vadd.f32 %v6741, %v6758
      %v6778 = vadd.f32 %v6742, %v6758
      %v6779 = vadd.f32 %v6743, %v6758
      %v6780 = vadd.f32 %v6744, %v6758
      %v6781 = vadd.f32 %v6745, %v6758
      %v6782 = vadd.f32 %v6746, %v6758
      %v6783 = vadd.f32 %v6747, %v6758
      %v6784 = vadd.f32 %v6748, %v6758
      %v6785 = vadd.f32 %v6749, %v6758
      %v6786 = vadd.f32 %v6750, %v6758
      %v6787 = vadd.f32 %v6751, %v6758
      %v6788 = vadd.f32 %v6752, %v6758
      %v6789 = vadd.f32 %v6753, %v6758
      %v6790 = vadd.f32 %v6754, %v6758
      %v6791 = vadd.f32 %v6755, %v6758
      %v6792 = vadd.f32 %v6760, %v234
      %v6793 = vadd.f32 %v6761, %v235
      %v6794 = vadd.f32 %v6762, %v238
      %v6795 = vadd.f32 %v6763, %v239
      %v6796 = vadd.f32 %v6764, %v242
      %v6797 = vadd.f32 %v6765, %v243
      %v6798 = vadd.f32 %v6766, %v246
      %v6799 = vadd.f32 %v6767, %v247
      %v6800 = vadd.f32 %v6768, %v250
      %v6801 = vadd.f32 %v6769, %v251
      %v6802 = vadd.f32 %v6770, %v254
      %v6803 = vadd.f32 %v6771, %v255
      %v6804 = vadd.f32 %v6772, %v258
      %v6805 = vadd.f32 %v6773, %v259
      %v6806 = vadd.f32 %v6774, %v262
      %v6807 = vadd.f32 %v6775, %v263
      %v6808 = vadd.f32 %v6776, %v266
      %v6809 = vadd.f32 %v6777, %v267
      %v6810 = vadd.f32 %v6778, %v270
      %v6811 = vadd.f32 %v6779, %v271
      %v6812 = vadd.f32 %v6780, %v274
      %v6813 = vadd.f32 %v6781, %v275
      %v6814 = vadd.f32 %v6782, %v278
      %v6815 = vadd.f32 %v6783, %v279
      %v6816 = vadd.f32 %v6784, %v282
      %v6817 = vadd.f32 %v6785, %v283
      %v6818 = vadd.f32 %v6786, %v286
      %v6819 = vadd.f32 %v6787, %v287
      %v6820 = vadd.f32 %v6788, %v290
      %v6821 = vadd.f32 %v6789, %v291
      %v6822 = vadd.f32 %v6790, %v294
      %v6823 = vadd.f32 %v6791, %v295
      %v6824 = vmax.f32 %v6792, 0.0
      %v6825 = vmax.f32 %v6793, 0.0
      %v6826 = vmax.f32 %v6794, 0.0
      %v6827 = vmax.f32 %v6795, 0.0
      %v6828 = vmax.f32 %v6796, 0.0
      %v6829 = vmax.f32 %v6797, 0.0
      %v6830 = vmax.f32 %v6798, 0.0
      %v6831 = vmax.f32 %v6799, 0.0
      %v6832 = vmax.f32 %v6800, 0.0
      %v6833 = vmax.f32 %v6801, 0.0
      %v6834 = vmax.f32 %v6802, 0.0
      %v6835 = vmax.f32 %v6803, 0.0
      %v6836 = vmax.f32 %v6804, 0.0
      %v6837 = vmax.f32 %v6805, 0.0
      %v6838 = vmax.f32 %v6806, 0.0
      %v6839 = vmax.f32 %v6807, 0.0
      %v6840 = vmax.f32 %v6808, 0.0
      %v6841 = vmax.f32 %v6809, 0.0
      %v6842 = vmax.f32 %v6810, 0.0
      %v6843 = vmax.f32 %v6811, 0.0
      %v6844 = vmax.f32 %v6812, 0.0
      %v6845 = vmax.f32 %v6813, 0.0
      %v6846 = vmax.f32 %v6814, 0.0
      %v6847 = vmax.f32 %v6815, 0.0
      %v6848 = vmax.f32 %v6816, 0.0
      %v6849 = vmax.f32 %v6817, 0.0
      %v6850 = vmax.f32 %v6818, 0.0
      %v6851 = vmax.f32 %v6819, 0.0
      %v6852 = vmax.f32 %v6820, 0.0
      %v6853 = vmax.f32 %v6821, 0.0
      %v6854 = vmax.f32 %v6822, 0.0
      %v6855 = vmax.f32 %v6823, 0.0
      %6856 = vst [vmem:[%s224] sm:$0xff] %v6824
      %6857 = vst [vmem:[%s224 + $0x8] sm:$0xff] %v6825
      %6858 = vst [vmem:[%s224 + $0x10] sm:$0xff] %v6826
      %6859 = vst [vmem:[%s224 + $0x18] sm:$0xff] %v6827
      %6860 = vst [vmem:[%s224 + $0x20] sm:$0xff] %v6828
      %6861 = vst [vmem:[%s224 + $0x28] sm:$0xff] %v6829
      %6862 = vst [vmem:[%s224 + $0x30] sm:$0xff] %v6830
      %6863 = vst [vmem:[%s224 + $0x38] sm:$0xff] %v6831
      %6864 = vst [vmem:[%s224 + $0x40] sm:$0xff] %v6832
      %6865 = vst [vmem:[%s224 + $0x48] sm:$0xff] %v6833
      %6866 = vst [vmem:[%s224 + $0x50] sm:$0xff] %v6834
      %6867 = vst [vmem:[%s224 + $0x58] sm:$0xff] %v6835
      %6868 = vst [vmem:[%s224 + $0x60] sm:$0xff] %v6836
      %6869 = vst [vmem:[%s224 + $0x68] sm:$0xff] %v6837
      %6870 = vst [vmem:[%s224 + $0x70] sm:$0xff] %v6838
      %6871 = vst [vmem:[%s224 + $0x78] sm:$0xff] %v6839
      %6872 = vst [vmem:[%s224 + $0x80] sm:$0xff] %v6840
      %6873 = vst [vmem:[%s224 + $0x88] sm:$0xff] %v6841
      %6874 = vst [vmem:[%s224 + $0x90] sm:$0xff] %v6842
      %6875 = vst [vmem:[%s224 + $0x98] sm:$0xff] %v6843
      %6876 = vst [vmem:[%s224 + $0xa0] sm:$0xff] %v6844
      %6877 = vst [vmem:[%s224 + $0xa8] sm:$0xff] %v6845
      %6878 = vst [vmem:[%s224 + $0xb0] sm:$0xff] %v6846
      %6879 = vst [vmem:[%s224 + $0xb8] sm:$0xff] %v6847
      %6880 = vst [vmem:[%s224 + $0xc0] sm:$0xff] %v6848
      %6881 = vst [vmem:[%s224 + $0xc8] sm:$0xff] %v6849
      %6882 = vst [vmem:[%s224 + $0xd0] sm:$0xff] %v6850
      %6883 = vst [vmem:[%s224 + $0xd8] sm:$0xff] %v6851
      %6884 = vst [vmem:[%s224 + $0xe0] sm:$0xff] %v6852
      %6885 = vst [vmem:[%s224 + $0xe8] sm:$0xff] %v6853
      %6886 = vst [vmem:[%s224 + $0xf0] sm:$0xff] %v6854
      %6887 = vst [vmem:[%s224 + $0xf8] sm:$0xff] %v6855
      %p6888 = scmp.lt.s32.totalorder %s16, 1
      %s6889 = scalar_select %p6888, %s16, 1
      %s6890 = smul.addr %s6889, 32
      %s6891 = smul.addr %s6890, 8
      %s6892 = scalar_lea.vmem %s5, %s6891
      // Predicated region
      $region41: #{basic_block_forward.1} parent=39 // pred_check
        %p6893 = pneg %p144
      $region42: #{basic_block_forward.1} parent=39 // pred_check_branch
        %6895 = sbr.rel (%p6893) target = $region44
      $region43: #{basic_block_forward.1} parent=39 // pred_region
        _
      $region44: #{basic_block_forward.1} parent=39 // pred_fallthru
        _
    $region40: #{basic_block_forward.1} parent=5 // pred_fallthru
      _
    %p6896 = scmp.le.s32.totalorder 2, %s11
    // Predicated region
    $region45: #{basic_block_forward.1} parent=5 // pred_check
      %p6897 = pneg %p6896
    $region46: #{basic_block_forward.1} parent=5 // pred_check_branch
      %6899 = sbr.rel (%p6897) target = $region48
    $region47: #{basic_block_forward.1} parent=5 // pred_region
      %s6900 = ssub.s32 %s11, 2
      // Predicated region
      $region49: #{basic_block_forward.1} parent=47 // pred_check
        %p6901 = pneg %p150
      $region50: #{basic_block_forward.1} parent=47 // pred_check_branch
        %6903 = sbr.rel (%p6901) target = $region52
      $region51: #{basic_block_forward.1} parent=47 // pred_region
        %p6904 = scmp.lt.s32.totalorder %s17, 1
        %s6905 = scalar_select %p6904, %s17, 1
        %s6906 = smul.addr %s6905, 32
        %s6907 = smul.addr %s6906, 8
        %s6908 = scalar_lea.vmem %s5, %s6907
      $region52: #{basic_block_forward.1} parent=47 // pred_fallthru
        _
    $region48: #{basic_block_forward.1} parent=5 // pred_fallthru
      _
  $region6: #{basic_block_forward.1} parent=0 // loop_footer
    %s15 = sadd.s32 1, %s11
  $region7: #{basic_block_forward.1} parent=0 // loop_footer_branch
    %10 = sbr.rel target = $region3
  $region8: #{basic_block_forward.1} parent=0 // loop_exit
    _

</llo_original>
